<compile_context>
chip_gen: v7x
topology: tpu7x:2x2x1
jax: 0.10.0
libtpu: 0.0.40
codegen_flags: <defaults>
</compile_context>

<pallas_src>
import functools

import jax
import jax.numpy as jnp
from jax.experimental import pallas as pl
from jax.experimental.pallas import tpu as pltpu

CLASSES = 3
IN_FEATURES = 40 * 40          # 1600
HIDDEN = 512
K_PAD = 1664                   # 13 * 128 : lane-dense input width
OUT_PAD = 128                  # lane-dense final-layer width (first CLASSES lanes real)
_SUBLANE = 8


def _round_up(x, m):
    return (x + m - 1) // m * m


def _mlp_kernel(x_ref,
                w1_ref, b1_ref, w2_ref, b2_ref, w3_ref, b3_ref,
                w4_ref, b4_ref, w5_ref, b5_ref, w6_ref, b6_ref,
                out_ref):
    """One batch tile of the fused 6-layer MLP (bf16 weights/activations, f32 accum)."""
    h = x_ref[...]                                          # (TB, K_PAD) bf16

    def hidden(h, w_ref, b_ref):
        acc = jnp.dot(h, w_ref[...], preferred_element_type=jnp.float32)
        # Fused bias + ReLU + bf16 cast epilogue: inter-layer activation stays bf16,
        # halving vreg/VMEM pressure vs a resident f32 intermediate.
        return jnp.maximum(acc + b_ref[...], 0.0).astype(jnp.bfloat16)

    h = hidden(h, w1_ref, b1_ref)
    h = hidden(h, w2_ref, b2_ref)
    h = hidden(h, w3_ref, b3_ref)
    h = hidden(h, w4_ref, b4_ref)
    h = hidden(h, w5_ref, b5_ref)

    y = jnp.dot(h, w6_ref[...], preferred_element_type=jnp.float32) + b6_ref[...]
    out_ref[...] = y.astype(out_ref.dtype)                  # (TB, OUT_PAD) lane-dense


def _pack_params(params):
    """Pad to lane-dense shapes and cast weights to bf16 (biases stay f32)."""
    flat = []
    n = len(params)
    for idx, (w_t, b) in enumerate(params):
        w = w_t.astype(jnp.float32)
        b = b.astype(jnp.float32)
        if idx == 0:                                  # pad K: 1600 -> 1664 (zeros)
            w = jnp.pad(w, ((0, K_PAD - w.shape[0]), (0, 0)))
        if idx == n - 1:                              # pad N: CLASSES -> 128 (zeros)
            w = jnp.pad(w, ((0, 0), (0, OUT_PAD - w.shape[1])))
            b = jnp.pad(b, ((0, 0), (0, OUT_PAD - b.shape[1])))
        flat.append(w.astype(jnp.bfloat16))
        flat.append(b)
    return flat


def _device_kind():
    try:
        return jax.devices()[0].device_kind.lower()
    except Exception:
        return ""


def _pick_tb(B):
    """Device-aware batch-tile choice (all values sublane-aligned)."""
    if B <= _SUBLANE:
        return _SUBLANE
    if B < 128:
        return _round_up(B, _SUBLANE)                 # single small tile
    kind = _device_kind()
    if "v5" in kind:
        return 128                                    # 128x128 MXUs; 128 rows suffice
    if "v7" in kind:
        # Ensure >= 2 batch tiles so ("parallel",) actually feeds both TensorCores.
        if B < 512:
            return min(256, _round_up((B + 1) // 2, _SUBLANE))
        return 256
    # v6e and default: 256-row tiles halve grid-step overhead on the 256x256 MXU.
    return 256 if B >= 256 else 128


@functools.partial(jax.jit, static_argnames=("tb",))
def _forward_impl(x_nchw, params, *, tb):
    B = x_nchw.shape[0]
    B_pad = _round_up(B, tb)

    x_flat = x_nchw.reshape(B, -1).astype(jnp.float32)
    x_pad = jnp.pad(x_flat, ((0, B_pad - B), (0, K_PAD - x_flat.shape[1])))
    x_pad = x_pad.astype(jnp.bfloat16)

    flat_params = _pack_params(params)

    def resident_spec(a):
        zeros = (0,) * a.ndim
        # Constant index_map -> fetched once, stays VMEM-resident across batch tiles.
        return pl.BlockSpec(a.shape, lambda i, _z=zeros: _z)

    in_specs = [pl.BlockSpec((tb, K_PAD), lambda i: (i, 0))]
    in_specs += [resident_spec(a) for a in flat_params]
    out_spec = pl.BlockSpec((tb, OUT_PAD), lambda i: (i, 0))

    weight_elems = K_PAD * HIDDEN + 4 * HIDDEN * HIDDEN + HIDDEN * OUT_PAD
    flops = 2 * B_pad * weight_elems
    bytes_accessed = (weight_elems * 2                      # bf16 weights
                      + (5 * HIDDEN + OUT_PAD) * 4          # f32 biases
                      + B_pad * K_PAD * 2                   # bf16 input
                      + B_pad * OUT_PAD * 4)                # f32 output

    y_pad = pl.pallas_call(
        _mlp_kernel,
        out_shape=jax.ShapeDtypeStruct((B_pad, OUT_PAD), jnp.float32),
        grid=(B_pad // tb,),
        in_specs=in_specs,
        out_specs=out_spec,
        compiler_params=pltpu.CompilerParams(
            # Batch tiles are independent -> shard the grid across TensorCores.
            dimension_semantics=("parallel",),
            # Worst case (TB=256, everything double-buffered) is ~12 MiB; 32 MiB is
            # safe on every generation (v7x physical VMEM is 64 MiB).
            vmem_limit_bytes=32 << 20,
        ),
        cost_estimate=pl.CostEstimate(
            flops=flops, transcendentals=0, bytes_accessed=bytes_accessed),
    )(x_pad, *flat_params)

    return y_pad[:B, :CLASSES]


def simple_dnn_forward(x_nchw, params):
    """Matches SimpleDNN.forward: returns (logits, logits)."""
    B = x_nchw.shape[0]
    tb = _pick_tb(B)
    y = _forward_impl(x_nchw, params, tb=tb)
    return y, y


def init_params(key):
    """Deterministic init mimicking nn.Linear default (uniform +/- 1/sqrt(fan_in)).

    Weights are stored pre-transposed as (in, out); biases as (1, out)."""
    dims = [(IN_FEATURES, HIDDEN),
            (HIDDEN, HIDDEN),
            (HIDDEN, HIDDEN),
            (HIDDEN, HIDDEN),
            (HIDDEN, HIDDEN),
            (HIDDEN, CLASSES)]
    params = []
    for (fan_in, fan_out) in dims:
        key, kw, kb = jax.random.split(key, 3)
        bound = 1.0 / (fan_in ** 0.5)
        w_t = jax.random.uniform(kw, (fan_in, fan_out), jnp.float32, -bound, bound)
        b = jax.random.uniform(kb, (1, fan_out), jnp.float32, -bound, bound)
        params.append((w_t, b))
    return params


def _mm(a, b):
    return jnp.dot(a, b, precision=jax.lax.Precision.HIGHEST)


def reference_forward_f32(x_nchw, params):
    """Plain full-f32 reference identical to the PyTorch forward."""
    h = x_nchw.reshape(x_nchw.shape[0], -1).astype(jnp.float32)
    for i, (w_t, b) in enumerate(params):
        h = _mm(h, w_t) + b
        if i < len(params) - 1:
            h = jnp.maximum(h, 0.0)
    return h


def reference_forward_mixed(x_nchw, params):
    """Emulates the kernel's numerics: bf16 inputs/weights/activations, f32 accum."""
    bf = lambda a: a.astype(jnp.bfloat16).astype(jnp.float32)
    h = bf(x_nchw.reshape(x_nchw.shape[0], -1).astype(jnp.float32))
    for i, (w_t, b) in enumerate(params):
        h = _mm(bf(h), bf(w_t)) + b.astype(jnp.float32)
        if i < len(params) - 1:
            h = jnp.maximum(h, 0.0)
    return h


if __name__ == "__main__":
    key = jax.random.PRNGKey(0)
    key, kx = jax.random.split(key)

    # PyTorch input convention: NCHW (B, 1, 40, 40), flattened by forward() to (B, 1600).
    x = jax.random.normal(kx, (2, 1, 40, 40), dtype=jnp.float32)
    params = init_params(key)

    out1, out2 = simple_dnn_forward(x, params)
    jax.block_until_ready((out1, out2))

    ref_mixed = reference_forward_mixed(x, params)
    ref_f32 = reference_forward_f32(x, params)

    assert out1.shape == (2, CLASSES) and out2.shape == (2, CLASSES)
    # Tight check against a reference that emulates the kernel's bf16/f32 numerics.
    assert jnp.allclose(out1, ref_mixed, atol=1e-3, rtol=1e-2), \
        f"mismatch vs mixed-precision ref: {jnp.max(jnp.abs(out1 - ref_mixed))}"
    # Loose sanity check against the full-f32 PyTorch-equivalent reference
    # (bf16 weights intentionally change numerics slightly).
    assert jnp.allclose(out1, ref_f32, atol=5e-3, rtol=1e-1), \
        f"mismatch vs f32 ref: {jnp.max(jnp.abs(out1 - ref_f32))}"
    assert jnp.array_equal(out2, out1)

    print("KERNEL_OK")
</pallas_src>

<mosaic_0001>
module attributes {stable_mosaic.version = 11 : i64} {
  func.func @_mlp_kernel(%arg0: i32, %arg1: memref<8x1664xbf16, #tpu.memory_space<vmem>>, %arg2: memref<1664x512xbf16, #tpu.memory_space<vmem>>, %arg3: memref<1x512xf32, #tpu.memory_space<vmem>>, %arg4: memref<512x512xbf16, #tpu.memory_space<vmem>>, %arg5: memref<1x512xf32, #tpu.memory_space<vmem>>, %arg6: memref<512x512xbf16, #tpu.memory_space<vmem>>, %arg7: memref<1x512xf32, #tpu.memory_space<vmem>>, %arg8: memref<512x512xbf16, #tpu.memory_space<vmem>>, %arg9: memref<1x512xf32, #tpu.memory_space<vmem>>, %arg10: memref<512x512xbf16, #tpu.memory_space<vmem>>, %arg11: memref<1x512xf32, #tpu.memory_space<vmem>>, %arg12: memref<512x128xbf16, #tpu.memory_space<vmem>>, %arg13: memref<1x128xf32, #tpu.memory_space<vmem>>, %arg14: memref<8x128xf32, #tpu.memory_space<vmem>>) attributes {dimension_semantics = [#tpu.dimension_semantics<parallel>], iteration_bounds = array<i64: 1>, scalar_prefetch = 0 : i64, scratch_operands = 0 : i64, tpu.core_type = #tpu.core_type<tc>, window_params = [{transform_indices = @transform_0, window_bounds = array<i64: 8, 1664>}, {pipeline_mode = #tpu.pipeline_mode<synchronous>, transform_indices = @transform_1, window_bounds = array<i64: 1664, 512>}, {pipeline_mode = #tpu.pipeline_mode<synchronous>, transform_indices = @transform_2, window_bounds = array<i64: 1, 512>}, {pipeline_mode = #tpu.pipeline_mode<synchronous>, transform_indices = @transform_3, window_bounds = array<i64: 512, 512>}, {pipeline_mode = #tpu.pipeline_mode<synchronous>, transform_indices = @transform_4, window_bounds = array<i64: 1, 512>}, {pipeline_mode = #tpu.pipeline_mode<synchronous>, transform_indices = @transform_5, window_bounds = array<i64: 512, 512>}, {pipeline_mode = #tpu.pipeline_mode<synchronous>, transform_indices = @transform_6, window_bounds = array<i64: 1, 512>}, {pipeline_mode = #tpu.pipeline_mode<synchronous>, transform_indices = @transform_7, window_bounds = array<i64: 512, 512>}, {pipeline_mode = #tpu.pipeline_mode<synchronous>, transform_indices = @transform_8, window_bounds = array<i64: 1, 512>}, {pipeline_mode = #tpu.pipeline_mode<synchronous>, transform_indices = @transform_9, window_bounds = array<i64: 512, 512>}, {pipeline_mode = #tpu.pipeline_mode<synchronous>, transform_indices = @transform_10, window_bounds = array<i64: 1, 512>}, {pipeline_mode = #tpu.pipeline_mode<synchronous>, transform_indices = @transform_11, window_bounds = array<i64: 512, 128>}, {pipeline_mode = #tpu.pipeline_mode<synchronous>, transform_indices = @transform_12, window_bounds = array<i64: 1, 128>}, {transform_indices = @transform_13, window_bounds = array<i64: 8, 128>}]} {
    %c0 = arith.constant 0 : index
    %c0_0 = arith.constant 0 : index
    %0 = vector.load %arg1[%c0, %c0_0] : memref<8x1664xbf16, #tpu.memory_space<vmem>>, vector<8x1664xbf16>
    %c0_1 = arith.constant 0 : index
    %c0_2 = arith.constant 0 : index
    %1 = vector.load %arg2[%c0_1, %c0_2] : memref<1664x512xbf16, #tpu.memory_space<vmem>>, vector<1664x512xbf16>
    %cst = arith.constant dense<0.000000e+00> : vector<8x512xf32>
    %2 = tpu.matmul %0, %1, %cst {dimension_numbers = #tpu.dot_dimension_numbers<[1], [0], [0], [1], [0, 0, 1, 1], [], []>} : vector<8x1664xbf16>, vector<1664x512xbf16>, vector<8x512xf32> -> vector<8x512xf32>
    %c0_3 = arith.constant 0 : index
    %c0_4 = arith.constant 0 : index
    %3 = vector.load %arg3[%c0_3, %c0_4] : memref<1x512xf32, #tpu.memory_space<vmem>>, vector<1x512xf32>
    %4 = vector.broadcast %3 : vector<1x512xf32> to vector<8x512xf32>
    %5 = arith.addf %2, %4 : vector<8x512xf32>
    %cst_5 = arith.constant 0.000000e+00 : f32
    %6 = vector.broadcast %cst_5 : f32 to vector<8x512xf32>
    %7 = arith.maximumf %5, %6 : vector<8x512xf32>
    %8 = arith.truncf %7 : vector<8x512xf32> to vector<8x512xbf16>
    %c0_6 = arith.constant 0 : index
    %c0_7 = arith.constant 0 : index
    %9 = vector.load %arg4[%c0_6, %c0_7] : memref<512x512xbf16, #tpu.memory_space<vmem>>, vector<512x512xbf16>
    %cst_8 = arith.constant dense<0.000000e+00> : vector<8x512xf32>
    %10 = tpu.matmul %8, %9, %cst_8 {dimension_numbers = #tpu.dot_dimension_numbers<[1], [0], [0], [1], [0, 0, 1, 1], [], []>} : vector<8x512xbf16>, vector<512x512xbf16>, vector<8x512xf32> -> vector<8x512xf32>
    %c0_9 = arith.constant 0 : index
    %c0_10 = arith.constant 0 : index
    %11 = vector.load %arg5[%c0_9, %c0_10] : memref<1x512xf32, #tpu.memory_space<vmem>>, vector<1x512xf32>
    %12 = vector.broadcast %11 : vector<1x512xf32> to vector<8x512xf32>
    %13 = arith.addf %10, %12 : vector<8x512xf32>
    %cst_11 = arith.constant 0.000000e+00 : f32
    %14 = vector.broadcast %cst_11 : f32 to vector<8x512xf32>
    %15 = arith.maximumf %13, %14 : vector<8x512xf32>
    %16 = arith.truncf %15 : vector<8x512xf32> to vector<8x512xbf16>
    %c0_12 = arith.constant 0 : index
    %c0_13 = arith.constant 0 : index
    %17 = vector.load %arg6[%c0_12, %c0_13] : memref<512x512xbf16, #tpu.memory_space<vmem>>, vector<512x512xbf16>
    %cst_14 = arith.constant dense<0.000000e+00> : vector<8x512xf32>
    %18 = tpu.matmul %16, %17, %cst_14 {dimension_numbers = #tpu.dot_dimension_numbers<[1], [0], [0], [1], [0, 0, 1, 1], [], []>} : vector<8x512xbf16>, vector<512x512xbf16>, vector<8x512xf32> -> vector<8x512xf32>
    %c0_15 = arith.constant 0 : index
    %c0_16 = arith.constant 0 : index
    %19 = vector.load %arg7[%c0_15, %c0_16] : memref<1x512xf32, #tpu.memory_space<vmem>>, vector<1x512xf32>
    %20 = vector.broadcast %19 : vector<1x512xf32> to vector<8x512xf32>
    %21 = arith.addf %18, %20 : vector<8x512xf32>
    %cst_17 = arith.constant 0.000000e+00 : f32
    %22 = vector.broadcast %cst_17 : f32 to vector<8x512xf32>
    %23 = arith.maximumf %21, %22 : vector<8x512xf32>
    %24 = arith.truncf %23 : vector<8x512xf32> to vector<8x512xbf16>
    %c0_18 = arith.constant 0 : index
    %c0_19 = arith.constant 0 : index
    %25 = vector.load %arg8[%c0_18, %c0_19] : memref<512x512xbf16, #tpu.memory_space<vmem>>, vector<512x512xbf16>
    %cst_20 = arith.constant dense<0.000000e+00> : vector<8x512xf32>
    %26 = tpu.matmul %24, %25, %cst_20 {dimension_numbers = #tpu.dot_dimension_numbers<[1], [0], [0], [1], [0, 0, 1, 1], [], []>} : vector<8x512xbf16>, vector<512x512xbf16>, vector<8x512xf32> -> vector<8x512xf32>
    %c0_21 = arith.constant 0 : index
    %c0_22 = arith.constant 0 : index
    %27 = vector.load %arg9[%c0_21, %c0_22] : memref<1x512xf32, #tpu.memory_space<vmem>>, vector<1x512xf32>
    %28 = vector.broadcast %27 : vector<1x512xf32> to vector<8x512xf32>
    %29 = arith.addf %26, %28 : vector<8x512xf32>
    %cst_23 = arith.constant 0.000000e+00 : f32
    %30 = vector.broadcast %cst_23 : f32 to vector<8x512xf32>
    %31 = arith.maximumf %29, %30 : vector<8x512xf32>
    %32 = arith.truncf %31 : vector<8x512xf32> to vector<8x512xbf16>
    %c0_24 = arith.constant 0 : index
    %c0_25 = arith.constant 0 : index
    %33 = vector.load %arg10[%c0_24, %c0_25] : memref<512x512xbf16, #tpu.memory_space<vmem>>, vector<512x512xbf16>
    %cst_26 = arith.constant dense<0.000000e+00> : vector<8x512xf32>
    %34 = tpu.matmul %32, %33, %cst_26 {dimension_numbers = #tpu.dot_dimension_numbers<[1], [0], [0], [1], [0, 0, 1, 1], [], []>} : vector<8x512xbf16>, vector<512x512xbf16>, vector<8x512xf32> -> vector<8x512xf32>
    %c0_27 = arith.constant 0 : index
    %c0_28 = arith.constant 0 : index
    %35 = vector.load %arg11[%c0_27, %c0_28] : memref<1x512xf32, #tpu.memory_space<vmem>>, vector<1x512xf32>
    %36 = vector.broadcast %35 : vector<1x512xf32> to vector<8x512xf32>
    %37 = arith.addf %34, %36 : vector<8x512xf32>
    %cst_29 = arith.constant 0.000000e+00 : f32
    %38 = vector.broadcast %cst_29 : f32 to vector<8x512xf32>
    %39 = arith.maximumf %37, %38 : vector<8x512xf32>
    %40 = arith.truncf %39 : vector<8x512xf32> to vector<8x512xbf16>
    %c0_30 = arith.constant 0 : index
    %c0_31 = arith.constant 0 : index
    %41 = vector.load %arg12[%c0_30, %c0_31] : memref<512x128xbf16, #tpu.memory_space<vmem>>, vector<512x128xbf16>
    %cst_32 = arith.constant dense<0.000000e+00> : vector<8x128xf32>
    %42 = tpu.matmul %40, %41, %cst_32 {dimension_numbers = #tpu.dot_dimension_numbers<[1], [0], [0], [1], [0, 0, 1, 1], [], []>} : vector<8x512xbf16>, vector<512x128xbf16>, vector<8x128xf32> -> vector<8x128xf32>
    %c0_33 = arith.constant 0 : index
    %c0_34 = arith.constant 0 : index
    %43 = vector.load %arg13[%c0_33, %c0_34] : memref<1x128xf32, #tpu.memory_space<vmem>>, vector<1x128xf32>
    %44 = vector.broadcast %43 : vector<1x128xf32> to vector<8x128xf32>
    %45 = arith.addf %42, %44 : vector<8x128xf32>
    %c0_35 = arith.constant 0 : index
    %c0_36 = arith.constant 0 : index
    %46 = vector.load %arg14[%c0_35, %c0_36] : memref<8x128xf32, #tpu.memory_space<vmem>>, vector<8x128xf32>
    tpu.vector_store %arg14[%c0_35, %c0_36], %45 {strides = array<i32>} : memref<8x128xf32, #tpu.memory_space<vmem>>, vector<8x128xf32>,
    return
  }
  func.func @transform_0(%arg0: i32) -> (i32, i32) {
    %c0_i32 = arith.constant 0 : i32
    %c0_i32_0 = arith.constant 0 : i32
    return %arg0, %c0_i32 : i32, i32
  }
  func.func @transform_1(%arg0: i32) -> (i32, i32) {
    %c0_i32 = arith.constant 0 : i32
    %c0_i32_0 = arith.constant 0 : i32
    %c0_i32_1 = arith.constant 0 : i32
    return %c0_i32, %c0_i32_0 : i32, i32
  }
  func.func @transform_2(%arg0: i32) -> (i32, i32) {
    %c0_i32 = arith.constant 0 : i32
    %c0_i32_0 = arith.constant 0 : i32
    %c0_i32_1 = arith.constant 0 : i32
    return %c0_i32, %c0_i32_0 : i32, i32
  }
  func.func @transform_3(%arg0: i32) -> (i32, i32) {
    %c0_i32 = arith.constant 0 : i32
    %c0_i32_0 = arith.constant 0 : i32
    %c0_i32_1 = arith.constant 0 : i32
    return %c0_i32, %c0_i32_0 : i32, i32
  }
  func.func @transform_4(%arg0: i32) -> (i32, i32) {
    %c0_i32 = arith.constant 0 : i32
    %c0_i32_0 = arith.constant 0 : i32
    %c0_i32_1 = arith.constant 0 : i32
    return %c0_i32, %c0_i32_0 : i32, i32
  }
  func.func @transform_5(%arg0: i32) -> (i32, i32) {
    %c0_i32 = arith.constant 0 : i32
    %c0_i32_0 = arith.constant 0 : i32
    %c0_i32_1 = arith.constant 0 : i32
    return %c0_i32, %c0_i32_0 : i32, i32
  }
  func.func @transform_6(%arg0: i32) -> (i32, i32) {
    %c0_i32 = arith.constant 0 : i32
    %c0_i32_0 = arith.constant 0 : i32
    %c0_i32_1 = arith.constant 0 : i32
    return %c0_i32, %c0_i32_0 : i32, i32
  }
  func.func @transform_7(%arg0: i32) -> (i32, i32) {
    %c0_i32 = arith.constant 0 : i32
    %c0_i32_0 = arith.constant 0 : i32
    %c0_i32_1 = arith.constant 0 : i32
    return %c0_i32, %c0_i32_0 : i32, i32
  }
  func.func @transform_8(%arg0: i32) -> (i32, i32) {
    %c0_i32 = arith.constant 0 : i32
    %c0_i32_0 = arith.constant 0 : i32
    %c0_i32_1 = arith.constant 0 : i32
    return %c0_i32, %c0_i32_0 : i32, i32
  }
  func.func @transform_9(%arg0: i32) -> (i32, i32) {
    %c0_i32 = arith.constant 0 : i32
    %c0_i32_0 = arith.constant 0 : i32
    %c0_i32_1 = arith.constant 0 : i32
    return %c0_i32, %c0_i32_0 : i32, i32
  }
  func.func @transform_10(%arg0: i32) -> (i32, i32) {
    %c0_i32 = arith.constant 0 : i32
    %c0_i32_0 = arith.constant 0 : i32
    %c0_i32_1 = arith.constant 0 : i32
    return %c0_i32, %c0_i32_0 : i32, i32
  }
  func.func @transform_11(%arg0: i32) -> (i32, i32) {
    %c0_i32 = arith.constant 0 : i32
    %c0_i32_0 = arith.constant 0 : i32
    %c0_i32_1 = arith.constant 0 : i32
    return %c0_i32, %c0_i32_0 : i32, i32
  }
  func.func @transform_12(%arg0: i32) -> (i32, i32) {
    %c0_i32 = arith.constant 0 : i32
    %c0_i32_0 = arith.constant 0 : i32
    %c0_i32_1 = arith.constant 0 : i32
    return %c0_i32, %c0_i32_0 : i32, i32
  }
  func.func @transform_13(%arg0: i32) -> (i32, i32) {
    %c0_i32 = arith.constant 0 : i32
    %c0_i32_0 = arith.constant 0 : i32
    return %arg0, %c0_i32 : i32, i32
  }
}

</mosaic_0001>

<llo_original>
// kernel: _forward_impl.1
$region0: #{_forward_impl.1}
  #allocation0 [shape = 'u32[]', space=smem, size = 0x4, offset = 0x4, fixed_abs, tag = 'smem constant byte address 0x4 - core index']
  #allocation1 [shape = 'u32[144,128]{1,0:T(1,128)}', space=vmem, size = 0x12000, scoped, tag = 'internal scratch']
  %s0 = inlined_call_operand.vmem [shape: bf16[8,1664], index: 0, kind: input, shape index: {}]
  %s1 = inlined_call_operand.vmem [shape: bf16[1664,512], index: 1, kind: input, shape index: {}]
  %s2 = inlined_call_operand.vmem [shape: f32[1,512], index: 2, kind: input, shape index: {}]
  %s3 = inlined_call_operand.vmem [shape: bf16[512,512], index: 3, kind: input, shape index: {}]
  %s4 = inlined_call_operand.vmem [shape: f32[1,512], index: 4, kind: input, shape index: {}]
  %s5 = inlined_call_operand.vmem [shape: bf16[512,512], index: 5, kind: input, shape index: {}]
  %s6 = inlined_call_operand.vmem [shape: f32[1,512], index: 6, kind: input, shape index: {}]
  %s7 = inlined_call_operand.vmem [shape: bf16[512,512], index: 7, kind: input, shape index: {}]
  %s8 = inlined_call_operand.vmem [shape: f32[1,512], index: 8, kind: input, shape index: {}]
  %s9 = inlined_call_operand.vmem [shape: bf16[512,512], index: 9, kind: input, shape index: {}]
  %s10 = inlined_call_operand.vmem [shape: f32[1,512], index: 10, kind: input, shape index: {}]
  %s11 = inlined_call_operand.vmem [shape: bf16[512,128], index: 11, kind: input, shape index: {}]
  %s12 = inlined_call_operand.vmem [shape: f32[1,128], index: 12, kind: input, shape index: {}]
  %s13 = inlined_call_operand.vmem [shape: f32[8,128], index: 13, kind: output, shape index: {}]
  %s14 = sld [smem:[#allocation0]]
  $region62: #{_forward_impl.1} parent=0
    _
  %s16 = ssub.s32 1, %s14
  %s17 = scalar_select 0, %s16, %s14
  // Predicated region
  $region2: #{_forward_impl.1} parent=0 // pred_check
    _
  $region3: #{_forward_impl.1} parent=0 // pred_check_branch
    %19 = sbr.rel (0) target = $region5
  $region4: #{_forward_impl.1} parent=0 // pred_region
    _
  $region5: #{_forward_impl.1} parent=0 // pred_fallthru
    _
  // Predicated region
  $region6: #{_forward_impl.1} parent=0 // pred_check
    _
  $region7: #{_forward_impl.1} parent=0 // pred_check_branch
    %21 = sbr.rel (0) target = $region9
  $region8: #{_forward_impl.1} parent=0 // pred_region
    _
  $region9: #{_forward_impl.1} parent=0 // pred_fallthru
    _
  // Predicated region
  $region10: #{_forward_impl.1} parent=0 // pred_check
    _
  $region11: #{_forward_impl.1} parent=0 // pred_check_branch
    %23 = sbr.rel (0) target = $region13
  $region12: #{_forward_impl.1} parent=0 // pred_region
    _
  $region13: #{_forward_impl.1} parent=0 // pred_fallthru
    _
  // Predicated region
  $region14: #{_forward_impl.1} parent=0 // pred_check
    _
  $region15: #{_forward_impl.1} parent=0 // pred_check_branch
    %25 = sbr.rel (0) target = $region17
  $region16: #{_forward_impl.1} parent=0 // pred_region
    _
  $region17: #{_forward_impl.1} parent=0 // pred_fallthru
    _
  // Predicated region
  $region18: #{_forward_impl.1} parent=0 // pred_check
    _
  $region19: #{_forward_impl.1} parent=0 // pred_check_branch
    %27 = sbr.rel (0) target = $region21
  $region20: #{_forward_impl.1} parent=0 // pred_region
    _
  $region21: #{_forward_impl.1} parent=0 // pred_fallthru
    _
  // Predicated region
  $region22: #{_forward_impl.1} parent=0 // pred_check
    _
  $region23: #{_forward_impl.1} parent=0 // pred_check_branch
    %29 = sbr.rel (0) target = $region25
  $region24: #{_forward_impl.1} parent=0 // pred_region
    _
  $region25: #{_forward_impl.1} parent=0 // pred_fallthru
    _
  // Predicated region
  $region26: #{_forward_impl.1} parent=0 // pred_check
    _
  $region27: #{_forward_impl.1} parent=0 // pred_check_branch
    %31 = sbr.rel (0) target = $region29
  $region28: #{_forward_impl.1} parent=0 // pred_region
    _
  $region29: #{_forward_impl.1} parent=0 // pred_fallthru
    _
  // Predicated region
  $region30: #{_forward_impl.1} parent=0 // pred_check
    _
  $region31: #{_forward_impl.1} parent=0 // pred_check_branch
    %33 = sbr.rel (0) target = $region33
  $region32: #{_forward_impl.1} parent=0 // pred_region
    _
  $region33: #{_forward_impl.1} parent=0 // pred_fallthru
    _
  // Predicated region
  $region34: #{_forward_impl.1} parent=0 // pred_check
    _
  $region35: #{_forward_impl.1} parent=0 // pred_check_branch
    %35 = sbr.rel (0) target = $region37
  $region36: #{_forward_impl.1} parent=0 // pred_region
    _
  $region37: #{_forward_impl.1} parent=0 // pred_fallthru
    _
  // Predicated region
  $region38: #{_forward_impl.1} parent=0 // pred_check
    _
  $region39: #{_forward_impl.1} parent=0 // pred_check_branch
    %37 = sbr.rel (0) target = $region41
  $region40: #{_forward_impl.1} parent=0 // pred_region
    _
  $region41: #{_forward_impl.1} parent=0 // pred_fallthru
    _
  // Predicated region
  $region42: #{_forward_impl.1} parent=0 // pred_check
    _
  $region43: #{_forward_impl.1} parent=0 // pred_check_branch
    %39 = sbr.rel (0) target = $region45
  $region44: #{_forward_impl.1} parent=0 // pred_region
    _
  $region45: #{_forward_impl.1} parent=0 // pred_fallthru
    _
  // Predicated region
  $region46: #{_forward_impl.1} parent=0 // pred_check
    _
  $region47: #{_forward_impl.1} parent=0 // pred_check_branch
    %41 = sbr.rel (0) target = $region49
  $region48: #{_forward_impl.1} parent=0 // pred_region
    _
  $region49: #{_forward_impl.1} parent=0 // pred_fallthru
    _
  // Predicated region
  $region50: #{_forward_impl.1} parent=0 // pred_check
    _
  $region51: #{_forward_impl.1} parent=0 // pred_check_branch
    %43 = sbr.rel (0) target = $region53
  $region52: #{_forward_impl.1} parent=0 // pred_region
    _
  $region53: #{_forward_impl.1} parent=0 // pred_fallthru
    _
  %v45 = vld [vmem:[%s0] sm:$0xff]
  %v46 = vld [vmem:[%s0 + $0x8] sm:$0xff]
  %v47 = vld [vmem:[%s0 + $0x10] sm:$0xff]
  %v48 = vld [vmem:[%s0 + $0x18] sm:$0xff]
  %v49 = vld [vmem:[%s0 + $0x20] sm:$0xff]
  %v50 = vld [vmem:[%s0 + $0x28] sm:$0xff]
  %v51 = vld [vmem:[%s0 + $0x30] sm:$0xf]
  %v52 = vld [vmem:[%s1] sm:$0xff]
  %v53 = vld [vmem:[%s1 + $0x8] sm:$0xff]
  %v54 = vld [vmem:[%s1 + $0x10] sm:$0xff]
  %v55 = vld [vmem:[%s1 + $0x18] sm:$0xff]
  %v56 = vld [vmem:[%s1 + $0x20] sm:$0xff]
  %v57 = vld [vmem:[%s1 + $0x28] sm:$0xff]
  %v58 = vld [vmem:[%s1 + $0x30] sm:$0xff]
  %v59 = vld [vmem:[%s1 + $0x38] sm:$0xff]
  %v60 = vld [vmem:[%s1 + $0x40] sm:$0xff]
  %v61 = vld [vmem:[%s1 + $0x48] sm:$0xff]
  %v62 = vld [vmem:[%s1 + $0x50] sm:$0xff]
  %v63 = vld [vmem:[%s1 + $0x58] sm:$0xff]
  %v64 = vld [vmem:[%s1 + $0x60] sm:$0xff]
  %v65 = vld [vmem:[%s1 + $0x68] sm:$0xff]
  %v66 = vld [vmem:[%s1 + $0x70] sm:$0xff]
  %v67 = vld [vmem:[%s1 + $0x78] sm:$0xff]
  %v68 = vld [vmem:[%s1 + $0x80] sm:$0xff]
  %v69 = vld [vmem:[%s1 + $0x88] sm:$0xff]
  %v70 = vld [vmem:[%s1 + $0x90] sm:$0xff]
  %v71 = vld [vmem:[%s1 + $0x98] sm:$0xff]
  %v72 = vld [vmem:[%s1 + $0xa0] sm:$0xff]
  %v73 = vld [vmem:[%s1 + $0xa8] sm:$0xff]
  %v74 = vld [vmem:[%s1 + $0xb0] sm:$0xff]
  %v75 = vld [vmem:[%s1 + $0xb8] sm:$0xff]
  %v76 = vld [vmem:[%s1 + $0xc0] sm:$0xff]
  %v77 = vld [vmem:[%s1 + $0xc8] sm:$0xff]
  %v78 = vld [vmem:[%s1 + $0xd0] sm:$0xff]
  %v79 = vld [vmem:[%s1 + $0xd8] sm:$0xff]
  %v80 = vld [vmem:[%s1 + $0xe0] sm:$0xff]
  %v81 = vld [vmem:[%s1 + $0xe8] sm:$0xff]
  %v82 = vld [vmem:[%s1 + $0xf0] sm:$0xff]
  %v83 = vld [vmem:[%s1 + $0xf8] sm:$0xff]
  %v84 = vld [vmem:[%s1 + $0x100] sm:$0xff]
  %v85 = vld [vmem:[%s1 + $0x108] sm:$0xff]
  %v86 = vld [vmem:[%s1 + $0x110] sm:$0xff]
  %v87 = vld [vmem:[%s1 + $0x118] sm:$0xff]
  %v88 = vld [vmem:[%s1 + $0x120] sm:$0xff]
  %v89 = vld [vmem:[%s1 + $0x128] sm:$0xff]
  %v90 = vld [vmem:[%s1 + $0x130] sm:$0xff]
  %v91 = vld [vmem:[%s1 + $0x138] sm:$0xff]
  %v92 = vld [vmem:[%s1 + $0x140] sm:$0xff]
  %v93 = vld [vmem:[%s1 + $0x148] sm:$0xff]
  %v94 = vld [vmem:[%s1 + $0x150] sm:$0xff]
  %v95 = vld [vmem:[%s1 + $0x158] sm:$0xff]
  %v96 = vld [vmem:[%s1 + $0x160] sm:$0xff]
  %v97 = vld [vmem:[%s1 + $0x168] sm:$0xff]
  %v98 = vld [vmem:[%s1 + $0x170] sm:$0xff]
  %v99 = vld [vmem:[%s1 + $0x178] sm:$0xff]
  %v100 = vld [vmem:[%s1 + $0x180] sm:$0xff]
  %v101 = vld [vmem:[%s1 + $0x188] sm:$0xff]
  %v102 = vld [vmem:[%s1 + $0x190] sm:$0xff]
  %v103 = vld [vmem:[%s1 + $0x198] sm:$0xff]
  %v104 = vld [vmem:[%s1 + $0x1a0] sm:$0xff]
  %v105 = vld [vmem:[%s1 + $0x1a8] sm:$0xff]
  %v106 = vld [vmem:[%s1 + $0x1b0] sm:$0xff]
  %v107 = vld [vmem:[%s1 + $0x1b8] sm:$0xff]
  %v108 = vld [vmem:[%s1 + $0x1c0] sm:$0xff]
  %v109 = vld [vmem:[%s1 + $0x1c8] sm:$0xff]
  %v110 = vld [vmem:[%s1 + $0x1d0] sm:$0xff]
  %v111 = vld [vmem:[%s1 + $0x1d8] sm:$0xff]
  %v112 = vld [vmem:[%s1 + $0x1e0] sm:$0xff]
  %v113 = vld [vmem:[%s1 + $0x1e8] sm:$0xff]
  %v114 = vld [vmem:[%s1 + $0x1f0] sm:$0xff]
  %v115 = vld [vmem:[%s1 + $0x1f8] sm:$0xff]
  %v116 = vld [vmem:[%s1 + $0x200] sm:$0xff]
  %v117 = vld [vmem:[%s1 + $0x208] sm:$0xff]
  %v118 = vld [vmem:[%s1 + $0x210] sm:$0xff]
  %v119 = vld [vmem:[%s1 + $0x218] sm:$0xff]
  %v120 = vld [vmem:[%s1 + $0x220] sm:$0xff]
  %v121 = vld [vmem:[%s1 + $0x228] sm:$0xff]
  %v122 = vld [vmem:[%s1 + $0x230] sm:$0xff]
  %v123 = vld [vmem:[%s1 + $0x238] sm:$0xff]
  %v124 = vld [vmem:[%s1 + $0x240] sm:$0xff]
  %v125 = vld [vmem:[%s1 + $0x248] sm:$0xff]
  %v126 = vld [vmem:[%s1 + $0x250] sm:$0xff]
  %v127 = vld [vmem:[%s1 + $0x258] sm:$0xff]
  %v128 = vld [vmem:[%s1 + $0x260] sm:$0xff]
  %v129 = vld [vmem:[%s1 + $0x268] sm:$0xff]
  %v130 = vld [vmem:[%s1 + $0x270] sm:$0xff]
  %v131 = vld [vmem:[%s1 + $0x278] sm:$0xff]
  %v132 = vld [vmem:[%s1 + $0x280] sm:$0xff]
  %v133 = vld [vmem:[%s1 + $0x288] sm:$0xff]
  %v134 = vld [vmem:[%s1 + $0x290] sm:$0xff]
  %v135 = vld [vmem:[%s1 + $0x298] sm:$0xff]
  %v136 = vld [vmem:[%s1 + $0x2a0] sm:$0xff]
  %v137 = vld [vmem:[%s1 + $0x2a8] sm:$0xff]
  %v138 = vld [vmem:[%s1 + $0x2b0] sm:$0xff]
  %v139 = vld [vmem:[%s1 + $0x2b8] sm:$0xff]
  %v140 = vld [vmem:[%s1 + $0x2c0] sm:$0xff]
  %v141 = vld [vmem:[%s1 + $0x2c8] sm:$0xff]
  %v142 = vld [vmem:[%s1 + $0x2d0] sm:$0xff]
  %v143 = vld [vmem:[%s1 + $0x2d8] sm:$0xff]
  %v144 = vld [vmem:[%s1 + $0x2e0] sm:$0xff]
  %v145 = vld [vmem:[%s1 + $0x2e8] sm:$0xff]
  %v146 = vld [vmem:[%s1 + $0x2f0] sm:$0xff]
  %v147 = vld [vmem:[%s1 + $0x2f8] sm:$0xff]
  %v148 = vld [vmem:[%s1 + $0x300] sm:$0xff]
  %v149 = vld [vmem:[%s1 + $0x308] sm:$0xff]
  %v150 = vld [vmem:[%s1 + $0x310] sm:$0xff]
  %v151 = vld [vmem:[%s1 + $0x318] sm:$0xff]
  %v152 = vld [vmem:[%s1 + $0x320] sm:$0xff]
  %v153 = vld [vmem:[%s1 + $0x328] sm:$0xff]
  %v154 = vld [vmem:[%s1 + $0x330] sm:$0xff]
  %v155 = vld [vmem:[%s1 + $0x338] sm:$0xff]
  %v156 = vld [vmem:[%s1 + $0x340] sm:$0xff]
  %v157 = vld [vmem:[%s1 + $0x348] sm:$0xff]
  %v158 = vld [vmem:[%s1 + $0x350] sm:$0xff]
  %v159 = vld [vmem:[%s1 + $0x358] sm:$0xff]
  %v160 = vld [vmem:[%s1 + $0x360] sm:$0xff]
  %v161 = vld [vmem:[%s1 + $0x368] sm:$0xff]
  %v162 = vld [vmem:[%s1 + $0x370] sm:$0xff]
  %v163 = vld [vmem:[%s1 + $0x378] sm:$0xff]
  %v164 = vld [vmem:[%s1 + $0x380] sm:$0xff]
  %v165 = vld [vmem:[%s1 + $0x388] sm:$0xff]
  %v166 = vld [vmem:[%s1 + $0x390] sm:$0xff]
  %v167 = vld [vmem:[%s1 + $0x398] sm:$0xff]
  %v168 = vld [vmem:[%s1 + $0x3a0] sm:$0xff]
  %v169 = vld [vmem:[%s1 + $0x3a8] sm:$0xff]
  %v170 = vld [vmem:[%s1 + $0x3b0] sm:$0xff]
  %v171 = vld [vmem:[%s1 + $0x3b8] sm:$0xff]
  %v172 = vld [vmem:[%s1 + $0x3c0] sm:$0xff]
  %v173 = vld [vmem:[%s1 + $0x3c8] sm:$0xff]
  %v174 = vld [vmem:[%s1 + $0x3d0] sm:$0xff]
  %v175 = vld [vmem:[%s1 + $0x3d8] sm:$0xff]
  %v176 = vld [vmem:[%s1 + $0x3e0] sm:$0xff]
  %v177 = vld [vmem:[%s1 + $0x3e8] sm:$0xff]
  %v178 = vld [vmem:[%s1 + $0x3f0] sm:$0xff]
  %v179 = vld [vmem:[%s1 + $0x3f8] sm:$0xff]
  %v180 = vld [vmem:[%s1 + $0x400] sm:$0xff]
  %v181 = vld [vmem:[%s1 + $0x408] sm:$0xff]
  %v182 = vld [vmem:[%s1 + $0x410] sm:$0xff]
  %v183 = vld [vmem:[%s1 + $0x418] sm:$0xff]
  %v184 = vld [vmem:[%s1 + $0x420] sm:$0xff]
  %v185 = vld [vmem:[%s1 + $0x428] sm:$0xff]
  %v186 = vld [vmem:[%s1 + $0x430] sm:$0xff]
  %v187 = vld [vmem:[%s1 + $0x438] sm:$0xff]
  %v188 = vld [vmem:[%s1 + $0x440] sm:$0xff]
  %v189 = vld [vmem:[%s1 + $0x448] sm:$0xff]
  %v190 = vld [vmem:[%s1 + $0x450] sm:$0xff]
  %v191 = vld [vmem:[%s1 + $0x458] sm:$0xff]
  %v192 = vld [vmem:[%s1 + $0x460] sm:$0xff]
  %v193 = vld [vmem:[%s1 + $0x468] sm:$0xff]
  %v194 = vld [vmem:[%s1 + $0x470] sm:$0xff]
  %v195 = vld [vmem:[%s1 + $0x478] sm:$0xff]
  %v196 = vld [vmem:[%s1 + $0x480] sm:$0xff]
  %v197 = vld [vmem:[%s1 + $0x488] sm:$0xff]
  %v198 = vld [vmem:[%s1 + $0x490] sm:$0xff]
  %v199 = vld [vmem:[%s1 + $0x498] sm:$0xff]
  %v200 = vld [vmem:[%s1 + $0x4a0] sm:$0xff]
  %v201 = vld [vmem:[%s1 + $0x4a8] sm:$0xff]
  %v202 = vld [vmem:[%s1 + $0x4b0] sm:$0xff]
  %v203 = vld [vmem:[%s1 + $0x4b8] sm:$0xff]
  %v204 = vld [vmem:[%s1 + $0x4c0] sm:$0xff]
  %v205 = vld [vmem:[%s1 + $0x4c8] sm:$0xff]
  %v206 = vld [vmem:[%s1 + $0x4d0] sm:$0xff]
  %v207 = vld [vmem:[%s1 + $0x4d8] sm:$0xff]
  %v208 = vld [vmem:[%s1 + $0x4e0] sm:$0xff]
  %v209 = vld [vmem:[%s1 + $0x4e8] sm:$0xff]
  %v210 = vld [vmem:[%s1 + $0x4f0] sm:$0xff]
  %v211 = vld [vmem:[%s1 + $0x4f8] sm:$0xff]
  %v212 = vld [vmem:[%s1 + $0x500] sm:$0xff]
  %v213 = vld [vmem:[%s1 + $0x508] sm:$0xff]
  %v214 = vld [vmem:[%s1 + $0x510] sm:$0xff]
  %v215 = vld [vmem:[%s1 + $0x518] sm:$0xff]
  %v216 = vld [vmem:[%s1 + $0x520] sm:$0xff]
  %v217 = vld [vmem:[%s1 + $0x528] sm:$0xff]
  %v218 = vld [vmem:[%s1 + $0x530] sm:$0xff]
  %v219 = vld [vmem:[%s1 + $0x538] sm:$0xff]
  %v220 = vld [vmem:[%s1 + $0x540] sm:$0xff]
  %v221 = vld [vmem:[%s1 + $0x548] sm:$0xff]
  %v222 = vld [vmem:[%s1 + $0x550] sm:$0xff]
  %v223 = vld [vmem:[%s1 + $0x558] sm:$0xff]
  %v224 = vld [vmem:[%s1 + $0x560] sm:$0xff]
  %v225 = vld [vmem:[%s1 + $0x568] sm:$0xff]
  %v226 = vld [vmem:[%s1 + $0x570] sm:$0xff]
  %v227 = vld [vmem:[%s1 + $0x578] sm:$0xff]
  %v228 = vld [vmem:[%s1 + $0x580] sm:$0xff]
  %v229 = vld [vmem:[%s1 + $0x588] sm:$0xff]
  %v230 = vld [vmem:[%s1 + $0x590] sm:$0xff]
  %v231 = vld [vmem:[%s1 + $0x598] sm:$0xff]
  %v232 = vld [vmem:[%s1 + $0x5a0] sm:$0xff]
  %v233 = vld [vmem:[%s1 + $0x5a8] sm:$0xff]
  %v234 = vld [vmem:[%s1 + $0x5b0] sm:$0xff]
  %v235 = vld [vmem:[%s1 + $0x5b8] sm:$0xff]
  %v236 = vld [vmem:[%s1 + $0x5c0] sm:$0xff]
  %v237 = vld [vmem:[%s1 + $0x5c8] sm:$0xff]
  %v238 = vld [vmem:[%s1 + $0x5d0] sm:$0xff]
  %v239 = vld [vmem:[%s1 + $0x5d8] sm:$0xff]
  %v240 = vld [vmem:[%s1 + $0x5e0] sm:$0xff]
  %v241 = vld [vmem:[%s1 + $0x5e8] sm:$0xff]
  %v242 = vld [vmem:[%s1 + $0x5f0] sm:$0xff]
  %v243 = vld [vmem:[%s1 + $0x5f8] sm:$0xff]
  %v244 = vld [vmem:[%s1 + $0x600] sm:$0xff]
  %v245 = vld [vmem:[%s1 + $0x608] sm:$0xff]
  %v246 = vld [vmem:[%s1 + $0x610] sm:$0xff]
  %v247 = vld [vmem:[%s1 + $0x618] sm:$0xff]
  %v248 = vld [vmem:[%s1 + $0x620] sm:$0xff]
  %v249 = vld [vmem:[%s1 + $0x628] sm:$0xff]
  %v250 = vld [vmem:[%s1 + $0x630] sm:$0xff]
  %v251 = vld [vmem:[%s1 + $0x638] sm:$0xff]
  %v252 = vld [vmem:[%s1 + $0x640] sm:$0xff]
  %v253 = vld [vmem:[%s1 + $0x648] sm:$0xff]
  %v254 = vld [vmem:[%s1 + $0x650] sm:$0xff]
  %v255 = vld [vmem:[%s1 + $0x658] sm:$0xff]
  %v256 = vld [vmem:[%s1 + $0x660] sm:$0xff]
  %v257 = vld [vmem:[%s1 + $0x668] sm:$0xff]
  %v258 = vld [vmem:[%s1 + $0x670] sm:$0xff]
  %v259 = vld [vmem:[%s1 + $0x678] sm:$0xff]
  %v260 = vld [vmem:[%s1 + $0x680] sm:$0xff]
  %v261 = vld [vmem:[%s1 + $0x688] sm:$0xff]
  %v262 = vld [vmem:[%s1 + $0x690] sm:$0xff]
  %v263 = vld [vmem:[%s1 + $0x698] sm:$0xff]
  %v264 = vld [vmem:[%s1 + $0x6a0] sm:$0xff]
  %v265 = vld [vmem:[%s1 + $0x6a8] sm:$0xff]
  %v266 = vld [vmem:[%s1 + $0x6b0] sm:$0xff]
  %v267 = vld [vmem:[%s1 + $0x6b8] sm:$0xff]
  %v268 = vld [vmem:[%s1 + $0x6c0] sm:$0xff]
  %v269 = vld [vmem:[%s1 + $0x6c8] sm:$0xff]
  %v270 = vld [vmem:[%s1 + $0x6d0] sm:$0xff]
  %v271 = vld [vmem:[%s1 + $0x6d8] sm:$0xff]
  %v272 = vld [vmem:[%s1 + $0x6e0] sm:$0xff]
  %v273 = vld [vmem:[%s1 + $0x6e8] sm:$0xff]
  %v274 = vld [vmem:[%s1 + $0x6f0] sm:$0xff]
  %v275 = vld [vmem:[%s1 + $0x6f8] sm:$0xff]
  %v276 = vld [vmem:[%s1 + $0x700] sm:$0xff]
  %v277 = vld [vmem:[%s1 + $0x708] sm:$0xff]
  %v278 = vld [vmem:[%s1 + $0x710] sm:$0xff]
  %v279 = vld [vmem:[%s1 + $0x718] sm:$0xff]
  %v280 = vld [vmem:[%s1 + $0x720] sm:$0xff]
  %v281 = vld [vmem:[%s1 + $0x728] sm:$0xff]
  %v282 = vld [vmem:[%s1 + $0x730] sm:$0xff]
  %v283 = vld [vmem:[%s1 + $0x738] sm:$0xff]
  %v284 = vld [vmem:[%s1 + $0x740] sm:$0xff]
  %v285 = vld [vmem:[%s1 + $0x748] sm:$0xff]
  %v286 = vld [vmem:[%s1 + $0x750] sm:$0xff]
  %v287 = vld [vmem:[%s1 + $0x758] sm:$0xff]
  %v288 = vld [vmem:[%s1 + $0x760] sm:$0xff]
  %v289 = vld [vmem:[%s1 + $0x768] sm:$0xff]
  %v290 = vld [vmem:[%s1 + $0x770] sm:$0xff]
  %v291 = vld [vmem:[%s1 + $0x778] sm:$0xff]
  %v292 = vld [vmem:[%s1 + $0x780] sm:$0xff]
  %v293 = vld [vmem:[%s1 + $0x788] sm:$0xff]
  %v294 = vld [vmem:[%s1 + $0x790] sm:$0xff]
  %v295 = vld [vmem:[%s1 + $0x798] sm:$0xff]
  %v296 = vld [vmem:[%s1 + $0x7a0] sm:$0xff]
  %v297 = vld [vmem:[%s1 + $0x7a8] sm:$0xff]
  %v298 = vld [vmem:[%s1 + $0x7b0] sm:$0xff]
  %v299 = vld [vmem:[%s1 + $0x7b8] sm:$0xff]
  %v300 = vld [vmem:[%s1 + $0x7c0] sm:$0xff]
  %v301 = vld [vmem:[%s1 + $0x7c8] sm:$0xff]
  %v302 = vld [vmem:[%s1 + $0x7d0] sm:$0xff]
  %v303 = vld [vmem:[%s1 + $0x7d8] sm:$0xff]
  %v304 = vld [vmem:[%s1 + $0x7e0] sm:$0xff]
  %v305 = vld [vmem:[%s1 + $0x7e8] sm:$0xff]
  %v306 = vld [vmem:[%s1 + $0x7f0] sm:$0xff]
  %v307 = vld [vmem:[%s1 + $0x7f8] sm:$0xff]
  %v308 = vld [vmem:[%s1 + $0x800] sm:$0xff]
  %v309 = vld [vmem:[%s1 + $0x808] sm:$0xff]
  %v310 = vld [vmem:[%s1 + $0x810] sm:$0xff]
  %v311 = vld [vmem:[%s1 + $0x818] sm:$0xff]
  %v312 = vld [vmem:[%s1 + $0x820] sm:$0xff]
  %v313 = vld [vmem:[%s1 + $0x828] sm:$0xff]
  %v314 = vld [vmem:[%s1 + $0x830] sm:$0xff]
  %v315 = vld [vmem:[%s1 + $0x838] sm:$0xff]
  %v316 = vld [vmem:[%s1 + $0x840] sm:$0xff]
  %v317 = vld [vmem:[%s1 + $0x848] sm:$0xff]
  %v318 = vld [vmem:[%s1 + $0x850] sm:$0xff]
  %v319 = vld [vmem:[%s1 + $0x858] sm:$0xff]
  %v320 = vld [vmem:[%s1 + $0x860] sm:$0xff]
  %v321 = vld [vmem:[%s1 + $0x868] sm:$0xff]
  %v322 = vld [vmem:[%s1 + $0x870] sm:$0xff]
  %v323 = vld [vmem:[%s1 + $0x878] sm:$0xff]
  %v324 = vld [vmem:[%s1 + $0x880] sm:$0xff]
  %v325 = vld [vmem:[%s1 + $0x888] sm:$0xff]
  %v326 = vld [vmem:[%s1 + $0x890] sm:$0xff]
  %v327 = vld [vmem:[%s1 + $0x898] sm:$0xff]
  %v328 = vld [vmem:[%s1 + $0x8a0] sm:$0xff]
  %v329 = vld [vmem:[%s1 + $0x8a8] sm:$0xff]
  %v330 = vld [vmem:[%s1 + $0x8b0] sm:$0xff]
  %v331 = vld [vmem:[%s1 + $0x8b8] sm:$0xff]
  %v332 = vld [vmem:[%s1 + $0x8c0] sm:$0xff]
  %v333 = vld [vmem:[%s1 + $0x8c8] sm:$0xff]
  %v334 = vld [vmem:[%s1 + $0x8d0] sm:$0xff]
  %v335 = vld [vmem:[%s1 + $0x8d8] sm:$0xff]
  %v336 = vld [vmem:[%s1 + $0x8e0] sm:$0xff]
  %v337 = vld [vmem:[%s1 + $0x8e8] sm:$0xff]
  %v338 = vld [vmem:[%s1 + $0x8f0] sm:$0xff]
  %v339 = vld [vmem:[%s1 + $0x8f8] sm:$0xff]
  %v340 = vld [vmem:[%s1 + $0x900] sm:$0xff]
  %v341 = vld [vmem:[%s1 + $0x908] sm:$0xff]
  %v342 = vld [vmem:[%s1 + $0x910] sm:$0xff]
  %v343 = vld [vmem:[%s1 + $0x918] sm:$0xff]
  %v344 = vld [vmem:[%s1 + $0x920] sm:$0xff]
  %v345 = vld [vmem:[%s1 + $0x928] sm:$0xff]
  %v346 = vld [vmem:[%s1 + $0x930] sm:$0xff]
  %v347 = vld [vmem:[%s1 + $0x938] sm:$0xff]
  %v348 = vld [vmem:[%s1 + $0x940] sm:$0xff]
  %v349 = vld [vmem:[%s1 + $0x948] sm:$0xff]
  %v350 = vld [vmem:[%s1 + $0x950] sm:$0xff]
  %v351 = vld [vmem:[%s1 + $0x958] sm:$0xff]
  %v352 = vld [vmem:[%s1 + $0x960] sm:$0xff]
  %v353 = vld [vmem:[%s1 + $0x968] sm:$0xff]
  %v354 = vld [vmem:[%s1 + $0x970] sm:$0xff]
  %v355 = vld [vmem:[%s1 + $0x978] sm:$0xff]
  %v356 = vld [vmem:[%s1 + $0x980] sm:$0xff]
  %v357 = vld [vmem:[%s1 + $0x988] sm:$0xff]
  %v358 = vld [vmem:[%s1 + $0x990] sm:$0xff]
  %v359 = vld [vmem:[%s1 + $0x998] sm:$0xff]
  %v360 = vld [vmem:[%s1 + $0x9a0] sm:$0xff]
  %v361 = vld [vmem:[%s1 + $0x9a8] sm:$0xff]
  %v362 = vld [vmem:[%s1 + $0x9b0] sm:$0xff]
  %v363 = vld [vmem:[%s1 + $0x9b8] sm:$0xff]
  %v364 = vld [vmem:[%s1 + $0x9c0] sm:$0xff]
  %v365 = vld [vmem:[%s1 + $0x9c8] sm:$0xff]
  %v366 = vld [vmem:[%s1 + $0x9d0] sm:$0xff]
  %v367 = vld [vmem:[%s1 + $0x9d8] sm:$0xff]
  %v368 = vld [vmem:[%s1 + $0x9e0] sm:$0xff]
  %v369 = vld [vmem:[%s1 + $0x9e8] sm:$0xff]
  %v370 = vld [vmem:[%s1 + $0x9f0] sm:$0xff]
  %v371 = vld [vmem:[%s1 + $0x9f8] sm:$0xff]
  %v372 = vld [vmem:[%s1 + $0xa00] sm:$0xff]
  %v373 = vld [vmem:[%s1 + $0xa08] sm:$0xff]
  %v374 = vld [vmem:[%s1 + $0xa10] sm:$0xff]
  %v375 = vld [vmem:[%s1 + $0xa18] sm:$0xff]
  %v376 = vld [vmem:[%s1 + $0xa20] sm:$0xff]
  %v377 = vld [vmem:[%s1 + $0xa28] sm:$0xff]
  %v378 = vld [vmem:[%s1 + $0xa30] sm:$0xff]
  %v379 = vld [vmem:[%s1 + $0xa38] sm:$0xff]
  %v380 = vld [vmem:[%s1 + $0xa40] sm:$0xff]
  %v381 = vld [vmem:[%s1 + $0xa48] sm:$0xff]
  %v382 = vld [vmem:[%s1 + $0xa50] sm:$0xff]
  %v383 = vld [vmem:[%s1 + $0xa58] sm:$0xff]
  %v384 = vld [vmem:[%s1 + $0xa60] sm:$0xff]
  %v385 = vld [vmem:[%s1 + $0xa68] sm:$0xff]
  %v386 = vld [vmem:[%s1 + $0xa70] sm:$0xff]
  %v387 = vld [vmem:[%s1 + $0xa78] sm:$0xff]
  %v388 = vld [vmem:[%s1 + $0xa80] sm:$0xff]
  %v389 = vld [vmem:[%s1 + $0xa88] sm:$0xff]
  %v390 = vld [vmem:[%s1 + $0xa90] sm:$0xff]
  %v391 = vld [vmem:[%s1 + $0xa98] sm:$0xff]
  %v392 = vld [vmem:[%s1 + $0xaa0] sm:$0xff]
  %v393 = vld [vmem:[%s1 + $0xaa8] sm:$0xff]
  %v394 = vld [vmem:[%s1 + $0xab0] sm:$0xff]
  %v395 = vld [vmem:[%s1 + $0xab8] sm:$0xff]
  %v396 = vld [vmem:[%s1 + $0xac0] sm:$0xff]
  %v397 = vld [vmem:[%s1 + $0xac8] sm:$0xff]
  %v398 = vld [vmem:[%s1 + $0xad0] sm:$0xff]
  %v399 = vld [vmem:[%s1 + $0xad8] sm:$0xff]
  %v400 = vld [vmem:[%s1 + $0xae0] sm:$0xff]
  %v401 = vld [vmem:[%s1 + $0xae8] sm:$0xff]
  %v402 = vld [vmem:[%s1 + $0xaf0] sm:$0xff]
  %v403 = vld [vmem:[%s1 + $0xaf8] sm:$0xff]
  %v404 = vld [vmem:[%s1 + $0xb00] sm:$0xff]
  %v405 = vld [vmem:[%s1 + $0xb08] sm:$0xff]
  %v406 = vld [vmem:[%s1 + $0xb10] sm:$0xff]
  %v407 = vld [vmem:[%s1 + $0xb18] sm:$0xff]
  %v408 = vld [vmem:[%s1 + $0xb20] sm:$0xff]
  %v409 = vld [vmem:[%s1 + $0xb28] sm:$0xff]
  %v410 = vld [vmem:[%s1 + $0xb30] sm:$0xff]
  %v411 = vld [vmem:[%s1 + $0xb38] sm:$0xff]
  %v412 = vld [vmem:[%s1 + $0xb40] sm:$0xff]
  %v413 = vld [vmem:[%s1 + $0xb48] sm:$0xff]
  %v414 = vld [vmem:[%s1 + $0xb50] sm:$0xff]
  %v415 = vld [vmem:[%s1 + $0xb58] sm:$0xff]
  %v416 = vld [vmem:[%s1 + $0xb60] sm:$0xff]
  %v417 = vld [vmem:[%s1 + $0xb68] sm:$0xff]
  %v418 = vld [vmem:[%s1 + $0xb70] sm:$0xff]
  %v419 = vld [vmem:[%s1 + $0xb78] sm:$0xff]
  %v420 = vld [vmem:[%s1 + $0xb80] sm:$0xff]
  %v421 = vld [vmem:[%s1 + $0xb88] sm:$0xff]
  %v422 = vld [vmem:[%s1 + $0xb90] sm:$0xff]
  %v423 = vld [vmem:[%s1 + $0xb98] sm:$0xff]
  %v424 = vld [vmem:[%s1 + $0xba0] sm:$0xff]
  %v425 = vld [vmem:[%s1 + $0xba8] sm:$0xff]
  %v426 = vld [vmem:[%s1 + $0xbb0] sm:$0xff]
  %v427 = vld [vmem:[%s1 + $0xbb8] sm:$0xff]
  %v428 = vld [vmem:[%s1 + $0xbc0] sm:$0xff]
  %v429 = vld [vmem:[%s1 + $0xbc8] sm:$0xff]
  %v430 = vld [vmem:[%s1 + $0xbd0] sm:$0xff]
  %v431 = vld [vmem:[%s1 + $0xbd8] sm:$0xff]
  %v432 = vld [vmem:[%s1 + $0xbe0] sm:$0xff]
  %v433 = vld [vmem:[%s1 + $0xbe8] sm:$0xff]
  %v434 = vld [vmem:[%s1 + $0xbf0] sm:$0xff]
  %v435 = vld [vmem:[%s1 + $0xbf8] sm:$0xff]
  %v436 = vld [vmem:[%s1 + $0xc00] sm:$0xff]
  %v437 = vld [vmem:[%s1 + $0xc08] sm:$0xff]
  %v438 = vld [vmem:[%s1 + $0xc10] sm:$0xff]
  %v439 = vld [vmem:[%s1 + $0xc18] sm:$0xff]
  %v440 = vld [vmem:[%s1 + $0xc20] sm:$0xff]
  %v441 = vld [vmem:[%s1 + $0xc28] sm:$0xff]
  %v442 = vld [vmem:[%s1 + $0xc30] sm:$0xff]
  %v443 = vld [vmem:[%s1 + $0xc38] sm:$0xff]
  %v444 = vld [vmem:[%s1 + $0xc40] sm:$0xff]
  %v445 = vld [vmem:[%s1 + $0xc48] sm:$0xff]
  %v446 = vld [vmem:[%s1 + $0xc50] sm:$0xff]
  %v447 = vld [vmem:[%s1 + $0xc58] sm:$0xff]
  %v448 = vld [vmem:[%s1 + $0xc60] sm:$0xff]
  %v449 = vld [vmem:[%s1 + $0xc68] sm:$0xff]
  %v450 = vld [vmem:[%s1 + $0xc70] sm:$0xff]
  %v451 = vld [vmem:[%s1 + $0xc78] sm:$0xff]
  %v452 = vld [vmem:[%s1 + $0xc80] sm:$0xff]
  %v453 = vld [vmem:[%s1 + $0xc88] sm:$0xff]
  %v454 = vld [vmem:[%s1 + $0xc90] sm:$0xff]
  %v455 = vld [vmem:[%s1 + $0xc98] sm:$0xff]
  %v456 = vld [vmem:[%s1 + $0xca0] sm:$0xff]
  %v457 = vld [vmem:[%s1 + $0xca8] sm:$0xff]
  %v458 = vld [vmem:[%s1 + $0xcb0] sm:$0xff]
  %v459 = vld [vmem:[%s1 + $0xcb8] sm:$0xff]
  %v460 = vld [vmem:[%s1 + $0xcc0] sm:$0xff]
  %v461 = vld [vmem:[%s1 + $0xcc8] sm:$0xff]
  %v462 = vld [vmem:[%s1 + $0xcd0] sm:$0xff]
  %v463 = vld [vmem:[%s1 + $0xcd8] sm:$0xff]
  %v464 = vld [vmem:[%s1 + $0xce0] sm:$0xff]
  %v465 = vld [vmem:[%s1 + $0xce8] sm:$0xff]
  %v466 = vld [vmem:[%s1 + $0xcf0] sm:$0xff]
  %v467 = vld [vmem:[%s1 + $0xcf8] sm:$0xff]
  %v468 = vld [vmem:[%s2] sm:$0xf]
  %v470 = vlaneseq
  %v471 = vshrl.u32 %v470, 7
  %v472 = vsub.s32 0, %v471
  %v473 = vrot.slane %v468, %v472
  %v474 = vlaneseq
  %v475 = vshrl.u32 %v474, 7
  %v476 = vsub.s32 1, %v475
  %v477 = vrot.slane %v468, %v476
  %v478 = vlaneseq
  %v479 = vshrl.u32 %v478, 7
  %v480 = vsub.s32 2, %v479
  %v481 = vrot.slane %v468, %v480
  %v482 = vlaneseq
  %v483 = vshrl.u32 %v482, 7
  %v484 = vsub.s32 3, %v483
  %v485 = vrot.slane %v468, %v484
  %v497 = vunpack.c.l.b16 %v45
  %v498 = vunpack.c.h.b16 %v45
  %v499 = vunpack.c.l.b16 %v46
  %v500 = vunpack.c.h.b16 %v46
  %v501 = vunpack.c.l.b16 %v47
  %v502 = vunpack.c.h.b16 %v47
  %v503 = vunpack.c.l.b16 %v48
  %v504 = vunpack.c.h.b16 %v48
  %v505 = vunpack.c.l.b16 %v49
  %v506 = vunpack.c.h.b16 %v49
  %v507 = vunpack.c.l.b16 %v50
  %v508 = vunpack.c.h.b16 %v50
  %v509 = vunpack.c.l.b16 %v51
  %v510 = vpack.c.b16 %v497, %v497
  %v511 = vpack.c.b16 %v498, %v498
  %v512 = vpack.c.b16 %v499, %v499
  %v513 = vpack.c.b16 %v500, %v500
  %v514 = vpack.c.b16 %v501, %v501
  %v515 = vpack.c.b16 %v502, %v502
  %v516 = vpack.c.b16 %v503, %v503
  %v517 = vpack.c.b16 %v504, %v504
  %v518 = vpack.c.b16 %v505, %v505
  %v519 = vpack.c.b16 %v506, %v506
  %v520 = vpack.c.b16 %v507, %v507
  %v521 = vpack.c.b16 %v508, %v508
  %v522 = vpack.c.b16 %v509, %v509
  %v952 = vunpack.c.l.b16 %v52
  %v953 = vunpack.c.h.b16 %v52
  %v954 = vunpack.c.l.b16 %v53
  %v955 = vunpack.c.h.b16 %v53
  %v956 = vunpack.c.l.b16 %v54
  %v957 = vunpack.c.h.b16 %v54
  %v958 = vunpack.c.l.b16 %v55
  %v959 = vunpack.c.h.b16 %v55
  %v960 = vunpack.c.l.b16 %v56
  %v961 = vunpack.c.h.b16 %v56
  %v962 = vunpack.c.l.b16 %v57
  %v963 = vunpack.c.h.b16 %v57
  %v964 = vunpack.c.l.b16 %v58
  %v965 = vunpack.c.h.b16 %v58
  %v966 = vunpack.c.l.b16 %v59
  %v967 = vunpack.c.h.b16 %v59
  %v968 = vunpack.c.l.b16 %v60
  %v969 = vunpack.c.h.b16 %v60
  %v970 = vunpack.c.l.b16 %v61
  %v971 = vunpack.c.h.b16 %v61
  %v972 = vunpack.c.l.b16 %v62
  %v973 = vunpack.c.h.b16 %v62
  %v974 = vunpack.c.l.b16 %v63
  %v975 = vunpack.c.h.b16 %v63
  %v976 = vunpack.c.l.b16 %v64
  %v977 = vunpack.c.h.b16 %v64
  %v978 = vunpack.c.l.b16 %v65
  %v979 = vunpack.c.h.b16 %v65
  %v980 = vunpack.c.l.b16 %v66
  %v981 = vunpack.c.h.b16 %v66
  %v982 = vunpack.c.l.b16 %v67
  %v983 = vunpack.c.h.b16 %v67
  %v984 = vunpack.c.l.b16 %v68
  %v985 = vunpack.c.h.b16 %v68
  %v986 = vunpack.c.l.b16 %v69
  %v987 = vunpack.c.h.b16 %v69
  %v988 = vunpack.c.l.b16 %v70
  %v989 = vunpack.c.h.b16 %v70
  %v990 = vunpack.c.l.b16 %v71
  %v991 = vunpack.c.h.b16 %v71
  %v992 = vunpack.c.l.b16 %v72
  %v993 = vunpack.c.h.b16 %v72
  %v994 = vunpack.c.l.b16 %v73
  %v995 = vunpack.c.h.b16 %v73
  %v996 = vunpack.c.l.b16 %v74
  %v997 = vunpack.c.h.b16 %v74
  %v998 = vunpack.c.l.b16 %v75
  %v999 = vunpack.c.h.b16 %v75
  %v1000 = vunpack.c.l.b16 %v76
  %v1001 = vunpack.c.h.b16 %v76
  %v1002 = vunpack.c.l.b16 %v77
  %v1003 = vunpack.c.h.b16 %v77
  %v1004 = vunpack.c.l.b16 %v78
  %v1005 = vunpack.c.h.b16 %v78
  %v1006 = vunpack.c.l.b16 %v79
  %v1007 = vunpack.c.h.b16 %v79
  %v1008 = vunpack.c.l.b16 %v80
  %v1009 = vunpack.c.h.b16 %v80
  %v1010 = vunpack.c.l.b16 %v81
  %v1011 = vunpack.c.h.b16 %v81
  %v1012 = vunpack.c.l.b16 %v82
  %v1013 = vunpack.c.h.b16 %v82
  %v1014 = vunpack.c.l.b16 %v83
  %v1015 = vunpack.c.h.b16 %v83
  %v1016 = vunpack.c.l.b16 %v84
  %v1017 = vunpack.c.h.b16 %v84
  %v1018 = vunpack.c.l.b16 %v85
  %v1019 = vunpack.c.h.b16 %v85
  %v1020 = vunpack.c.l.b16 %v86
  %v1021 = vunpack.c.h.b16 %v86
  %v1022 = vunpack.c.l.b16 %v87
  %v1023 = vunpack.c.h.b16 %v87
  %v1024 = vunpack.c.l.b16 %v88
  %v1025 = vunpack.c.h.b16 %v88
  %v1026 = vunpack.c.l.b16 %v89
  %v1027 = vunpack.c.h.b16 %v89
  %v1028 = vunpack.c.l.b16 %v90
  %v1029 = vunpack.c.h.b16 %v90
  %v1030 = vunpack.c.l.b16 %v91
  %v1031 = vunpack.c.h.b16 %v91
  %v1032 = vunpack.c.l.b16 %v92
  %v1033 = vunpack.c.h.b16 %v92
  %v1034 = vunpack.c.l.b16 %v93
  %v1035 = vunpack.c.h.b16 %v93
  %v1036 = vunpack.c.l.b16 %v94
  %v1037 = vunpack.c.h.b16 %v94
  %v1038 = vunpack.c.l.b16 %v95
  %v1039 = vunpack.c.h.b16 %v95
  %v1040 = vunpack.c.l.b16 %v96
  %v1041 = vunpack.c.h.b16 %v96
  %v1042 = vunpack.c.l.b16 %v97
  %v1043 = vunpack.c.h.b16 %v97
  %v1044 = vunpack.c.l.b16 %v98
  %v1045 = vunpack.c.h.b16 %v98
  %v1046 = vunpack.c.l.b16 %v99
  %v1047 = vunpack.c.h.b16 %v99
  %v1048 = vunpack.c.l.b16 %v100
  %v1049 = vunpack.c.h.b16 %v100
  %v1050 = vunpack.c.l.b16 %v101
  %v1051 = vunpack.c.h.b16 %v101
  %v1052 = vunpack.c.l.b16 %v102
  %v1053 = vunpack.c.h.b16 %v102
  %v1054 = vunpack.c.l.b16 %v103
  %v1055 = vunpack.c.h.b16 %v103
  %v1056 = vunpack.c.l.b16 %v104
  %v1057 = vunpack.c.h.b16 %v104
  %v1058 = vunpack.c.l.b16 %v105
  %v1059 = vunpack.c.h.b16 %v105
  %v1060 = vunpack.c.l.b16 %v106
  %v1061 = vunpack.c.h.b16 %v106
  %v1062 = vunpack.c.l.b16 %v107
  %v1063 = vunpack.c.h.b16 %v107
  %v1064 = vunpack.c.l.b16 %v108
  %v1065 = vunpack.c.h.b16 %v108
  %v1066 = vunpack.c.l.b16 %v109
  %v1067 = vunpack.c.h.b16 %v109
  %v1068 = vunpack.c.l.b16 %v110
  %v1069 = vunpack.c.h.b16 %v110
  %v1070 = vunpack.c.l.b16 %v111
  %v1071 = vunpack.c.h.b16 %v111
  %v1072 = vunpack.c.l.b16 %v112
  %v1073 = vunpack.c.h.b16 %v112
  %v1074 = vunpack.c.l.b16 %v113
  %v1075 = vunpack.c.h.b16 %v113
  %v1076 = vunpack.c.l.b16 %v114
  %v1077 = vunpack.c.h.b16 %v114
  %v1078 = vunpack.c.l.b16 %v115
  %v1079 = vunpack.c.h.b16 %v115
  %v1080 = vunpack.c.l.b16 %v116
  %v1081 = vunpack.c.h.b16 %v116
  %v1082 = vunpack.c.l.b16 %v117
  %v1083 = vunpack.c.h.b16 %v117
  %v1084 = vunpack.c.l.b16 %v118
  %v1085 = vunpack.c.h.b16 %v118
  %v1086 = vunpack.c.l.b16 %v119
  %v1087 = vunpack.c.h.b16 %v119
  %v1088 = vunpack.c.l.b16 %v120
  %v1089 = vunpack.c.h.b16 %v120
  %v1090 = vunpack.c.l.b16 %v121
  %v1091 = vunpack.c.h.b16 %v121
  %v1092 = vunpack.c.l.b16 %v122
  %v1093 = vunpack.c.h.b16 %v122
  %v1094 = vunpack.c.l.b16 %v123
  %v1095 = vunpack.c.h.b16 %v123
  %v1096 = vunpack.c.l.b16 %v124
  %v1097 = vunpack.c.h.b16 %v124
  %v1098 = vunpack.c.l.b16 %v125
  %v1099 = vunpack.c.h.b16 %v125
  %v1100 = vunpack.c.l.b16 %v126
  %v1101 = vunpack.c.h.b16 %v126
  %v1102 = vunpack.c.l.b16 %v127
  %v1103 = vunpack.c.h.b16 %v127
  %v1104 = vunpack.c.l.b16 %v128
  %v1105 = vunpack.c.h.b16 %v128
  %v1106 = vunpack.c.l.b16 %v129
  %v1107 = vunpack.c.h.b16 %v129
  %v1108 = vunpack.c.l.b16 %v130
  %v1109 = vunpack.c.h.b16 %v130
  %v1110 = vunpack.c.l.b16 %v131
  %v1111 = vunpack.c.h.b16 %v131
  %v1112 = vunpack.c.l.b16 %v132
  %v1113 = vunpack.c.h.b16 %v132
  %v1114 = vunpack.c.l.b16 %v133
  %v1115 = vunpack.c.h.b16 %v133
  %v1116 = vunpack.c.l.b16 %v134
  %v1117 = vunpack.c.h.b16 %v134
  %v1118 = vunpack.c.l.b16 %v135
  %v1119 = vunpack.c.h.b16 %v135
  %v1120 = vunpack.c.l.b16 %v136
  %v1121 = vunpack.c.h.b16 %v136
  %v1122 = vunpack.c.l.b16 %v137
  %v1123 = vunpack.c.h.b16 %v137
  %v1124 = vunpack.c.l.b16 %v138
  %v1125 = vunpack.c.h.b16 %v138
  %v1126 = vunpack.c.l.b16 %v139
  %v1127 = vunpack.c.h.b16 %v139
  %v1128 = vunpack.c.l.b16 %v140
  %v1129 = vunpack.c.h.b16 %v140
  %v1130 = vunpack.c.l.b16 %v141
  %v1131 = vunpack.c.h.b16 %v141
  %v1132 = vunpack.c.l.b16 %v142
  %v1133 = vunpack.c.h.b16 %v142
  %v1134 = vunpack.c.l.b16 %v143
  %v1135 = vunpack.c.h.b16 %v143
  %v1136 = vunpack.c.l.b16 %v144
  %v1137 = vunpack.c.h.b16 %v144
  %v1138 = vunpack.c.l.b16 %v145
  %v1139 = vunpack.c.h.b16 %v145
  %v1140 = vunpack.c.l.b16 %v146
  %v1141 = vunpack.c.h.b16 %v146
  %v1142 = vunpack.c.l.b16 %v147
  %v1143 = vunpack.c.h.b16 %v147
  %v1144 = vunpack.c.l.b16 %v148
  %v1145 = vunpack.c.h.b16 %v148
  %v1146 = vunpack.c.l.b16 %v149
  %v1147 = vunpack.c.h.b16 %v149
  %v1148 = vunpack.c.l.b16 %v150
  %v1149 = vunpack.c.h.b16 %v150
  %v1150 = vunpack.c.l.b16 %v151
  %v1151 = vunpack.c.h.b16 %v151
  %v1152 = vunpack.c.l.b16 %v152
  %v1153 = vunpack.c.h.b16 %v152
  %v1154 = vunpack.c.l.b16 %v153
  %v1155 = vunpack.c.h.b16 %v153
  %v1156 = vunpack.c.l.b16 %v154
  %v1157 = vunpack.c.h.b16 %v154
  %v1158 = vunpack.c.l.b16 %v155
  %v1159 = vunpack.c.h.b16 %v155
  %v1160 = vunpack.c.l.b16 %v156
  %v1161 = vunpack.c.h.b16 %v156
  %v1162 = vunpack.c.l.b16 %v157
  %v1163 = vunpack.c.h.b16 %v157
  %v1164 = vunpack.c.l.b16 %v158
  %v1165 = vunpack.c.h.b16 %v158
  %v1166 = vunpack.c.l.b16 %v159
  %v1167 = vunpack.c.h.b16 %v159
  %v1168 = vunpack.c.l.b16 %v160
  %v1169 = vunpack.c.h.b16 %v160
  %v1170 = vunpack.c.l.b16 %v161
  %v1171 = vunpack.c.h.b16 %v161
  %v1172 = vunpack.c.l.b16 %v162
  %v1173 = vunpack.c.h.b16 %v162
  %v1174 = vunpack.c.l.b16 %v163
  %v1175 = vunpack.c.h.b16 %v163
  %v1176 = vunpack.c.l.b16 %v164
  %v1177 = vunpack.c.h.b16 %v164
  %v1178 = vunpack.c.l.b16 %v165
  %v1179 = vunpack.c.h.b16 %v165
  %v1180 = vunpack.c.l.b16 %v166
  %v1181 = vunpack.c.h.b16 %v166
  %v1182 = vunpack.c.l.b16 %v167
  %v1183 = vunpack.c.h.b16 %v167
  %v1184 = vunpack.c.l.b16 %v168
  %v1185 = vunpack.c.h.b16 %v168
  %v1186 = vunpack.c.l.b16 %v169
  %v1187 = vunpack.c.h.b16 %v169
  %v1188 = vunpack.c.l.b16 %v170
  %v1189 = vunpack.c.h.b16 %v170
  %v1190 = vunpack.c.l.b16 %v171
  %v1191 = vunpack.c.h.b16 %v171
  %v1192 = vunpack.c.l.b16 %v172
  %v1193 = vunpack.c.h.b16 %v172
  %v1194 = vunpack.c.l.b16 %v173
  %v1195 = vunpack.c.h.b16 %v173
  %v1196 = vunpack.c.l.b16 %v174
  %v1197 = vunpack.c.h.b16 %v174
  %v1198 = vunpack.c.l.b16 %v175
  %v1199 = vunpack.c.h.b16 %v175
  %v1200 = vunpack.c.l.b16 %v176
  %v1201 = vunpack.c.h.b16 %v176
  %v1202 = vunpack.c.l.b16 %v177
  %v1203 = vunpack.c.h.b16 %v177
  %v1204 = vunpack.c.l.b16 %v178
  %v1205 = vunpack.c.h.b16 %v178
  %v1206 = vunpack.c.l.b16 %v179
  %v1207 = vunpack.c.h.b16 %v179
  %v1208 = vunpack.c.l.b16 %v180
  %v1209 = vunpack.c.h.b16 %v180
  %v1210 = vunpack.c.l.b16 %v181
  %v1211 = vunpack.c.h.b16 %v181
  %v1212 = vunpack.c.l.b16 %v182
  %v1213 = vunpack.c.h.b16 %v182
  %v1214 = vunpack.c.l.b16 %v183
  %v1215 = vunpack.c.h.b16 %v183
  %v1216 = vunpack.c.l.b16 %v184
  %v1217 = vunpack.c.h.b16 %v184
  %v1218 = vunpack.c.l.b16 %v185
  %v1219 = vunpack.c.h.b16 %v185
  %v1220 = vunpack.c.l.b16 %v186
  %v1221 = vunpack.c.h.b16 %v186
  %v1222 = vunpack.c.l.b16 %v187
  %v1223 = vunpack.c.h.b16 %v187
  %v1224 = vunpack.c.l.b16 %v188
  %v1225 = vunpack.c.h.b16 %v188
  %v1226 = vunpack.c.l.b16 %v189
  %v1227 = vunpack.c.h.b16 %v189
  %v1228 = vunpack.c.l.b16 %v190
  %v1229 = vunpack.c.h.b16 %v190
  %v1230 = vunpack.c.l.b16 %v191
  %v1231 = vunpack.c.h.b16 %v191
  %v1232 = vunpack.c.l.b16 %v192
  %v1233 = vunpack.c.h.b16 %v192
  %v1234 = vunpack.c.l.b16 %v193
  %v1235 = vunpack.c.h.b16 %v193
  %v1236 = vunpack.c.l.b16 %v194
  %v1237 = vunpack.c.h.b16 %v194
  %v1238 = vunpack.c.l.b16 %v195
  %v1239 = vunpack.c.h.b16 %v195
  %v1240 = vunpack.c.l.b16 %v196
  %v1241 = vunpack.c.h.b16 %v196
  %v1242 = vunpack.c.l.b16 %v197
  %v1243 = vunpack.c.h.b16 %v197
  %v1244 = vunpack.c.l.b16 %v198
  %v1245 = vunpack.c.h.b16 %v198
  %v1246 = vunpack.c.l.b16 %v199
  %v1247 = vunpack.c.h.b16 %v199
  %v1248 = vunpack.c.l.b16 %v200
  %v1249 = vunpack.c.h.b16 %v200
  %v1250 = vunpack.c.l.b16 %v201
  %v1251 = vunpack.c.h.b16 %v201
  %v1252 = vunpack.c.l.b16 %v202
  %v1253 = vunpack.c.h.b16 %v202
  %v1254 = vunpack.c.l.b16 %v203
  %v1255 = vunpack.c.h.b16 %v203
  %v1256 = vunpack.c.l.b16 %v204
  %v1257 = vunpack.c.h.b16 %v204
  %v1258 = vunpack.c.l.b16 %v205
  %v1259 = vunpack.c.h.b16 %v205
  %v1260 = vunpack.c.l.b16 %v206
  %v1261 = vunpack.c.h.b16 %v206
  %v1262 = vunpack.c.l.b16 %v207
  %v1263 = vunpack.c.h.b16 %v207
  %v1264 = vunpack.c.l.b16 %v208
  %v1265 = vunpack.c.h.b16 %v208
  %v1266 = vunpack.c.l.b16 %v209
  %v1267 = vunpack.c.h.b16 %v209
  %v1268 = vunpack.c.l.b16 %v210
  %v1269 = vunpack.c.h.b16 %v210
  %v1270 = vunpack.c.l.b16 %v211
  %v1271 = vunpack.c.h.b16 %v211
  %v1272 = vunpack.c.l.b16 %v212
  %v1273 = vunpack.c.h.b16 %v212
  %v1274 = vunpack.c.l.b16 %v213
  %v1275 = vunpack.c.h.b16 %v213
  %v1276 = vunpack.c.l.b16 %v214
  %v1277 = vunpack.c.h.b16 %v214
  %v1278 = vunpack.c.l.b16 %v215
  %v1279 = vunpack.c.h.b16 %v215
  %v1280 = vunpack.c.l.b16 %v216
  %v1281 = vunpack.c.h.b16 %v216
  %v1282 = vunpack.c.l.b16 %v217
  %v1283 = vunpack.c.h.b16 %v217
  %v1284 = vunpack.c.l.b16 %v218
  %v1285 = vunpack.c.h.b16 %v218
  %v1286 = vunpack.c.l.b16 %v219
  %v1287 = vunpack.c.h.b16 %v219
  %v1288 = vunpack.c.l.b16 %v220
  %v1289 = vunpack.c.h.b16 %v220
  %v1290 = vunpack.c.l.b16 %v221
  %v1291 = vunpack.c.h.b16 %v221
  %v1292 = vunpack.c.l.b16 %v222
  %v1293 = vunpack.c.h.b16 %v222
  %v1294 = vunpack.c.l.b16 %v223
  %v1295 = vunpack.c.h.b16 %v223
  %v1296 = vunpack.c.l.b16 %v224
  %v1297 = vunpack.c.h.b16 %v224
  %v1298 = vunpack.c.l.b16 %v225
  %v1299 = vunpack.c.h.b16 %v225
  %v1300 = vunpack.c.l.b16 %v226
  %v1301 = vunpack.c.h.b16 %v226
  %v1302 = vunpack.c.l.b16 %v227
  %v1303 = vunpack.c.h.b16 %v227
  %v1304 = vunpack.c.l.b16 %v228
  %v1305 = vunpack.c.h.b16 %v228
  %v1306 = vunpack.c.l.b16 %v229
  %v1307 = vunpack.c.h.b16 %v229
  %v1308 = vunpack.c.l.b16 %v230
  %v1309 = vunpack.c.h.b16 %v230
  %v1310 = vunpack.c.l.b16 %v231
  %v1311 = vunpack.c.h.b16 %v231
  %v1312 = vunpack.c.l.b16 %v232
  %v1313 = vunpack.c.h.b16 %v232
  %v1314 = vunpack.c.l.b16 %v233
  %v1315 = vunpack.c.h.b16 %v233
  %v1316 = vunpack.c.l.b16 %v234
  %v1317 = vunpack.c.h.b16 %v234
  %v1318 = vunpack.c.l.b16 %v235
  %v1319 = vunpack.c.h.b16 %v235
  %v1320 = vunpack.c.l.b16 %v236
  %v1321 = vunpack.c.h.b16 %v236
  %v1322 = vunpack.c.l.b16 %v237
  %v1323 = vunpack.c.h.b16 %v237
  %v1324 = vunpack.c.l.b16 %v238
  %v1325 = vunpack.c.h.b16 %v238
  %v1326 = vunpack.c.l.b16 %v239
  %v1327 = vunpack.c.h.b16 %v239
  %v1328 = vunpack.c.l.b16 %v240
  %v1329 = vunpack.c.h.b16 %v240
  %v1330 = vunpack.c.l.b16 %v241
  %v1331 = vunpack.c.h.b16 %v241
  %v1332 = vunpack.c.l.b16 %v242
  %v1333 = vunpack.c.h.b16 %v242
  %v1334 = vunpack.c.l.b16 %v243
  %v1335 = vunpack.c.h.b16 %v243
  %v1336 = vunpack.c.l.b16 %v244
  %v1337 = vunpack.c.h.b16 %v244
  %v1338 = vunpack.c.l.b16 %v245
  %v1339 = vunpack.c.h.b16 %v245
  %v1340 = vunpack.c.l.b16 %v246
  %v1341 = vunpack.c.h.b16 %v246
  %v1342 = vunpack.c.l.b16 %v247
  %v1343 = vunpack.c.h.b16 %v247
  %v1344 = vunpack.c.l.b16 %v248
  %v1345 = vunpack.c.h.b16 %v248
  %v1346 = vunpack.c.l.b16 %v249
  %v1347 = vunpack.c.h.b16 %v249
  %v1348 = vunpack.c.l.b16 %v250
  %v1349 = vunpack.c.h.b16 %v250
  %v1350 = vunpack.c.l.b16 %v251
  %v1351 = vunpack.c.h.b16 %v251
  %v1352 = vunpack.c.l.b16 %v252
  %v1353 = vunpack.c.h.b16 %v252
  %v1354 = vunpack.c.l.b16 %v253
  %v1355 = vunpack.c.h.b16 %v253
  %v1356 = vunpack.c.l.b16 %v254
  %v1357 = vunpack.c.h.b16 %v254
  %v1358 = vunpack.c.l.b16 %v255
  %v1359 = vunpack.c.h.b16 %v255
  %v1360 = vunpack.c.l.b16 %v256
  %v1361 = vunpack.c.h.b16 %v256
  %v1362 = vunpack.c.l.b16 %v257
  %v1363 = vunpack.c.h.b16 %v257
  %v1364 = vunpack.c.l.b16 %v258
  %v1365 = vunpack.c.h.b16 %v258
  %v1366 = vunpack.c.l.b16 %v259
  %v1367 = vunpack.c.h.b16 %v259
  %v1368 = vunpack.c.l.b16 %v260
  %v1369 = vunpack.c.h.b16 %v260
  %v1370 = vunpack.c.l.b16 %v261
  %v1371 = vunpack.c.h.b16 %v261
  %v1372 = vunpack.c.l.b16 %v262
  %v1373 = vunpack.c.h.b16 %v262
  %v1374 = vunpack.c.l.b16 %v263
  %v1375 = vunpack.c.h.b16 %v263
  %v1376 = vunpack.c.l.b16 %v264
  %v1377 = vunpack.c.h.b16 %v264
  %v1378 = vunpack.c.l.b16 %v265
  %v1379 = vunpack.c.h.b16 %v265
  %v1380 = vunpack.c.l.b16 %v266
  %v1381 = vunpack.c.h.b16 %v266
  %v1382 = vunpack.c.l.b16 %v267
  %v1383 = vunpack.c.h.b16 %v267
  %v1384 = vunpack.c.l.b16 %v268
  %v1385 = vunpack.c.h.b16 %v268
  %v1386 = vunpack.c.l.b16 %v269
  %v1387 = vunpack.c.h.b16 %v269
  %v1388 = vunpack.c.l.b16 %v270
  %v1389 = vunpack.c.h.b16 %v270
  %v1390 = vunpack.c.l.b16 %v271
  %v1391 = vunpack.c.h.b16 %v271
  %v1392 = vunpack.c.l.b16 %v272
  %v1393 = vunpack.c.h.b16 %v272
  %v1394 = vunpack.c.l.b16 %v273
  %v1395 = vunpack.c.h.b16 %v273
  %v1396 = vunpack.c.l.b16 %v274
  %v1397 = vunpack.c.h.b16 %v274
  %v1398 = vunpack.c.l.b16 %v275
  %v1399 = vunpack.c.h.b16 %v275
  %v1400 = vunpack.c.l.b16 %v276
  %v1401 = vunpack.c.h.b16 %v276
  %v1402 = vunpack.c.l.b16 %v277
  %v1403 = vunpack.c.h.b16 %v277
  %v1404 = vunpack.c.l.b16 %v278
  %v1405 = vunpack.c.h.b16 %v278
  %v1406 = vunpack.c.l.b16 %v279
  %v1407 = vunpack.c.h.b16 %v279
  %v1408 = vunpack.c.l.b16 %v280
  %v1409 = vunpack.c.h.b16 %v280
  %v1410 = vunpack.c.l.b16 %v281
  %v1411 = vunpack.c.h.b16 %v281
  %v1412 = vunpack.c.l.b16 %v282
  %v1413 = vunpack.c.h.b16 %v282
  %v1414 = vunpack.c.l.b16 %v283
  %v1415 = vunpack.c.h.b16 %v283
  %v1416 = vunpack.c.l.b16 %v284
  %v1417 = vunpack.c.h.b16 %v284
  %v1418 = vunpack.c.l.b16 %v285
  %v1419 = vunpack.c.h.b16 %v285
  %v1420 = vunpack.c.l.b16 %v286
  %v1421 = vunpack.c.h.b16 %v286
  %v1422 = vunpack.c.l.b16 %v287
  %v1423 = vunpack.c.h.b16 %v287
  %v1424 = vunpack.c.l.b16 %v288
  %v1425 = vunpack.c.h.b16 %v288
  %v1426 = vunpack.c.l.b16 %v289
  %v1427 = vunpack.c.h.b16 %v289
  %v1428 = vunpack.c.l.b16 %v290
  %v1429 = vunpack.c.h.b16 %v290
  %v1430 = vunpack.c.l.b16 %v291
  %v1431 = vunpack.c.h.b16 %v291
  %v1432 = vunpack.c.l.b16 %v292
  %v1433 = vunpack.c.h.b16 %v292
  %v1434 = vunpack.c.l.b16 %v293
  %v1435 = vunpack.c.h.b16 %v293
  %v1436 = vunpack.c.l.b16 %v294
  %v1437 = vunpack.c.h.b16 %v294
  %v1438 = vunpack.c.l.b16 %v295
  %v1439 = vunpack.c.h.b16 %v295
  %v1440 = vunpack.c.l.b16 %v296
  %v1441 = vunpack.c.h.b16 %v296
  %v1442 = vunpack.c.l.b16 %v297
  %v1443 = vunpack.c.h.b16 %v297
  %v1444 = vunpack.c.l.b16 %v298
  %v1445 = vunpack.c.h.b16 %v298
  %v1446 = vunpack.c.l.b16 %v299
  %v1447 = vunpack.c.h.b16 %v299
  %v1448 = vunpack.c.l.b16 %v300
  %v1449 = vunpack.c.h.b16 %v300
  %v1450 = vunpack.c.l.b16 %v301
  %v1451 = vunpack.c.h.b16 %v301
  %v1452 = vunpack.c.l.b16 %v302
  %v1453 = vunpack.c.h.b16 %v302
  %v1454 = vunpack.c.l.b16 %v303
  %v1455 = vunpack.c.h.b16 %v303
  %v1456 = vunpack.c.l.b16 %v304
  %v1457 = vunpack.c.h.b16 %v304
  %v1458 = vunpack.c.l.b16 %v305
  %v1459 = vunpack.c.h.b16 %v305
  %v1460 = vunpack.c.l.b16 %v306
  %v1461 = vunpack.c.h.b16 %v306
  %v1462 = vunpack.c.l.b16 %v307
  %v1463 = vunpack.c.h.b16 %v307
  %v1464 = vunpack.c.l.b16 %v308
  %v1465 = vunpack.c.h.b16 %v308
  %v1466 = vunpack.c.l.b16 %v309
  %v1467 = vunpack.c.h.b16 %v309
  %v1468 = vunpack.c.l.b16 %v310
  %v1469 = vunpack.c.h.b16 %v310
  %v1470 = vunpack.c.l.b16 %v311
  %v1471 = vunpack.c.h.b16 %v311
  %v1472 = vunpack.c.l.b16 %v312
  %v1473 = vunpack.c.h.b16 %v312
  %v1474 = vunpack.c.l.b16 %v313
  %v1475 = vunpack.c.h.b16 %v313
  %v1476 = vunpack.c.l.b16 %v314
  %v1477 = vunpack.c.h.b16 %v314
  %v1478 = vunpack.c.l.b16 %v315
  %v1479 = vunpack.c.h.b16 %v315
  %v1480 = vunpack.c.l.b16 %v316
  %v1481 = vunpack.c.h.b16 %v316
  %v1482 = vunpack.c.l.b16 %v317
  %v1483 = vunpack.c.h.b16 %v317
  %v1484 = vunpack.c.l.b16 %v318
  %v1485 = vunpack.c.h.b16 %v318
  %v1486 = vunpack.c.l.b16 %v319
  %v1487 = vunpack.c.h.b16 %v319
  %v1488 = vunpack.c.l.b16 %v320
  %v1489 = vunpack.c.h.b16 %v320
  %v1490 = vunpack.c.l.b16 %v321
  %v1491 = vunpack.c.h.b16 %v321
  %v1492 = vunpack.c.l.b16 %v322
  %v1493 = vunpack.c.h.b16 %v322
  %v1494 = vunpack.c.l.b16 %v323
  %v1495 = vunpack.c.h.b16 %v323
  %v1496 = vunpack.c.l.b16 %v324
  %v1497 = vunpack.c.h.b16 %v324
  %v1498 = vunpack.c.l.b16 %v325
  %v1499 = vunpack.c.h.b16 %v325
  %v1500 = vunpack.c.l.b16 %v326
  %v1501 = vunpack.c.h.b16 %v326
  %v1502 = vunpack.c.l.b16 %v327
  %v1503 = vunpack.c.h.b16 %v327
  %v1504 = vunpack.c.l.b16 %v328
  %v1505 = vunpack.c.h.b16 %v328
  %v1506 = vunpack.c.l.b16 %v329
  %v1507 = vunpack.c.h.b16 %v329
  %v1508 = vunpack.c.l.b16 %v330
  %v1509 = vunpack.c.h.b16 %v330
  %v1510 = vunpack.c.l.b16 %v331
  %v1511 = vunpack.c.h.b16 %v331
  %v1512 = vunpack.c.l.b16 %v332
  %v1513 = vunpack.c.h.b16 %v332
  %v1514 = vunpack.c.l.b16 %v333
  %v1515 = vunpack.c.h.b16 %v333
  %v1516 = vunpack.c.l.b16 %v334
  %v1517 = vunpack.c.h.b16 %v334
  %v1518 = vunpack.c.l.b16 %v335
  %v1519 = vunpack.c.h.b16 %v335
  %v1520 = vunpack.c.l.b16 %v336
  %v1521 = vunpack.c.h.b16 %v336
  %v1522 = vunpack.c.l.b16 %v337
  %v1523 = vunpack.c.h.b16 %v337
  %v1524 = vunpack.c.l.b16 %v338
  %v1525 = vunpack.c.h.b16 %v338
  %v1526 = vunpack.c.l.b16 %v339
  %v1527 = vunpack.c.h.b16 %v339
  %v1528 = vunpack.c.l.b16 %v340
  %v1529 = vunpack.c.h.b16 %v340
  %v1530 = vunpack.c.l.b16 %v341
  %v1531 = vunpack.c.h.b16 %v341
  %v1532 = vunpack.c.l.b16 %v342
  %v1533 = vunpack.c.h.b16 %v342
  %v1534 = vunpack.c.l.b16 %v343
  %v1535 = vunpack.c.h.b16 %v343
  %v1536 = vunpack.c.l.b16 %v344
  %v1537 = vunpack.c.h.b16 %v344
  %v1538 = vunpack.c.l.b16 %v345
  %v1539 = vunpack.c.h.b16 %v345
  %v1540 = vunpack.c.l.b16 %v346
  %v1541 = vunpack.c.h.b16 %v346
  %v1542 = vunpack.c.l.b16 %v347
  %v1543 = vunpack.c.h.b16 %v347
  %v1544 = vunpack.c.l.b16 %v348
  %v1545 = vunpack.c.h.b16 %v348
  %v1546 = vunpack.c.l.b16 %v349
  %v1547 = vunpack.c.h.b16 %v349
  %v1548 = vunpack.c.l.b16 %v350
  %v1549 = vunpack.c.h.b16 %v350
  %v1550 = vunpack.c.l.b16 %v351
  %v1551 = vunpack.c.h.b16 %v351
  %v1552 = vunpack.c.l.b16 %v352
  %v1553 = vunpack.c.h.b16 %v352
  %v1554 = vunpack.c.l.b16 %v353
  %v1555 = vunpack.c.h.b16 %v353
  %v1556 = vunpack.c.l.b16 %v354
  %v1557 = vunpack.c.h.b16 %v354
  %v1558 = vunpack.c.l.b16 %v355
  %v1559 = vunpack.c.h.b16 %v355
  %v1560 = vunpack.c.l.b16 %v356
  %v1561 = vunpack.c.h.b16 %v356
  %v1562 = vunpack.c.l.b16 %v357
  %v1563 = vunpack.c.h.b16 %v357
  %v1564 = vunpack.c.l.b16 %v358
  %v1565 = vunpack.c.h.b16 %v358
  %v1566 = vunpack.c.l.b16 %v359
  %v1567 = vunpack.c.h.b16 %v359
  %v1568 = vunpack.c.l.b16 %v360
  %v1569 = vunpack.c.h.b16 %v360
  %v1570 = vunpack.c.l.b16 %v361
  %v1571 = vunpack.c.h.b16 %v361
  %v1572 = vunpack.c.l.b16 %v362
  %v1573 = vunpack.c.h.b16 %v362
  %v1574 = vunpack.c.l.b16 %v363
  %v1575 = vunpack.c.h.b16 %v363
  %v1576 = vunpack.c.l.b16 %v364
  %v1577 = vunpack.c.h.b16 %v364
  %v1578 = vunpack.c.l.b16 %v365
  %v1579 = vunpack.c.h.b16 %v365
  %v1580 = vunpack.c.l.b16 %v366
  %v1581 = vunpack.c.h.b16 %v366
  %v1582 = vunpack.c.l.b16 %v367
  %v1583 = vunpack.c.h.b16 %v367
  %v1584 = vunpack.c.l.b16 %v368
  %v1585 = vunpack.c.h.b16 %v368
  %v1586 = vunpack.c.l.b16 %v369
  %v1587 = vunpack.c.h.b16 %v369
  %v1588 = vunpack.c.l.b16 %v370
  %v1589 = vunpack.c.h.b16 %v370
  %v1590 = vunpack.c.l.b16 %v371
  %v1591 = vunpack.c.h.b16 %v371
  %v1592 = vunpack.c.l.b16 %v372
  %v1593 = vunpack.c.h.b16 %v372
  %v1594 = vunpack.c.l.b16 %v373
  %v1595 = vunpack.c.h.b16 %v373
  %v1596 = vunpack.c.l.b16 %v374
  %v1597 = vunpack.c.h.b16 %v374
  %v1598 = vunpack.c.l.b16 %v375
  %v1599 = vunpack.c.h.b16 %v375
  %v1600 = vunpack.c.l.b16 %v376
  %v1601 = vunpack.c.h.b16 %v376
  %v1602 = vunpack.c.l.b16 %v377
  %v1603 = vunpack.c.h.b16 %v377
  %v1604 = vunpack.c.l.b16 %v378
  %v1605 = vunpack.c.h.b16 %v378
  %v1606 = vunpack.c.l.b16 %v379
  %v1607 = vunpack.c.h.b16 %v379
  %v1608 = vunpack.c.l.b16 %v380
  %v1609 = vunpack.c.h.b16 %v380
  %v1610 = vunpack.c.l.b16 %v381
  %v1611 = vunpack.c.h.b16 %v381
  %v1612 = vunpack.c.l.b16 %v382
  %v1613 = vunpack.c.h.b16 %v382
  %v1614 = vunpack.c.l.b16 %v383
  %v1615 = vunpack.c.h.b16 %v383
  %v1616 = vunpack.c.l.b16 %v384
  %v1617 = vunpack.c.h.b16 %v384
  %v1618 = vunpack.c.l.b16 %v385
  %v1619 = vunpack.c.h.b16 %v385
  %v1620 = vunpack.c.l.b16 %v386
  %v1621 = vunpack.c.h.b16 %v386
  %v1622 = vunpack.c.l.b16 %v387
  %v1623 = vunpack.c.h.b16 %v387
  %v1624 = vunpack.c.l.b16 %v388
  %v1625 = vunpack.c.h.b16 %v388
  %v1626 = vunpack.c.l.b16 %v389
  %v1627 = vunpack.c.h.b16 %v389
  %v1628 = vunpack.c.l.b16 %v390
  %v1629 = vunpack.c.h.b16 %v390
  %v1630 = vunpack.c.l.b16 %v391
  %v1631 = vunpack.c.h.b16 %v391
  %v1632 = vunpack.c.l.b16 %v392
  %v1633 = vunpack.c.h.b16 %v392
  %v1634 = vunpack.c.l.b16 %v393
  %v1635 = vunpack.c.h.b16 %v393
  %v1636 = vunpack.c.l.b16 %v394
  %v1637 = vunpack.c.h.b16 %v394
  %v1638 = vunpack.c.l.b16 %v395
  %v1639 = vunpack.c.h.b16 %v395
  %v1640 = vunpack.c.l.b16 %v396
  %v1641 = vunpack.c.h.b16 %v396
  %v1642 = vunpack.c.l.b16 %v397
  %v1643 = vunpack.c.h.b16 %v397
  %v1644 = vunpack.c.l.b16 %v398
  %v1645 = vunpack.c.h.b16 %v398
  %v1646 = vunpack.c.l.b16 %v399
  %v1647 = vunpack.c.h.b16 %v399
  %v1648 = vunpack.c.l.b16 %v400
  %v1649 = vunpack.c.h.b16 %v400
  %v1650 = vunpack.c.l.b16 %v401
  %v1651 = vunpack.c.h.b16 %v401
  %v1652 = vunpack.c.l.b16 %v402
  %v1653 = vunpack.c.h.b16 %v402
  %v1654 = vunpack.c.l.b16 %v403
  %v1655 = vunpack.c.h.b16 %v403
  %v1656 = vunpack.c.l.b16 %v404
  %v1657 = vunpack.c.h.b16 %v404
  %v1658 = vunpack.c.l.b16 %v405
  %v1659 = vunpack.c.h.b16 %v405
  %v1660 = vunpack.c.l.b16 %v406
  %v1661 = vunpack.c.h.b16 %v406
  %v1662 = vunpack.c.l.b16 %v407
  %v1663 = vunpack.c.h.b16 %v407
  %v1664 = vunpack.c.l.b16 %v408
  %v1665 = vunpack.c.h.b16 %v408
  %v1666 = vunpack.c.l.b16 %v409
  %v1667 = vunpack.c.h.b16 %v409
  %v1668 = vunpack.c.l.b16 %v410
  %v1669 = vunpack.c.h.b16 %v410
  %v1670 = vunpack.c.l.b16 %v411
  %v1671 = vunpack.c.h.b16 %v411
  %v1672 = vunpack.c.l.b16 %v412
  %v1673 = vunpack.c.h.b16 %v412
  %v1674 = vunpack.c.l.b16 %v413
  %v1675 = vunpack.c.h.b16 %v413
  %v1676 = vunpack.c.l.b16 %v414
  %v1677 = vunpack.c.h.b16 %v414
  %v1678 = vunpack.c.l.b16 %v415
  %v1679 = vunpack.c.h.b16 %v415
  %v1680 = vunpack.c.l.b16 %v416
  %v1681 = vunpack.c.h.b16 %v416
  %v1682 = vunpack.c.l.b16 %v417
  %v1683 = vunpack.c.h.b16 %v417
  %v1684 = vunpack.c.l.b16 %v418
  %v1685 = vunpack.c.h.b16 %v418
  %v1686 = vunpack.c.l.b16 %v419
  %v1687 = vunpack.c.h.b16 %v419
  %v1688 = vunpack.c.l.b16 %v420
  %v1689 = vunpack.c.h.b16 %v420
  %v1690 = vunpack.c.l.b16 %v421
  %v1691 = vunpack.c.h.b16 %v421
  %v1692 = vunpack.c.l.b16 %v422
  %v1693 = vunpack.c.h.b16 %v422
  %v1694 = vunpack.c.l.b16 %v423
  %v1695 = vunpack.c.h.b16 %v423
  %v1696 = vunpack.c.l.b16 %v424
  %v1697 = vunpack.c.h.b16 %v424
  %v1698 = vunpack.c.l.b16 %v425
  %v1699 = vunpack.c.h.b16 %v425
  %v1700 = vunpack.c.l.b16 %v426
  %v1701 = vunpack.c.h.b16 %v426
  %v1702 = vunpack.c.l.b16 %v427
  %v1703 = vunpack.c.h.b16 %v427
  %v1704 = vunpack.c.l.b16 %v428
  %v1705 = vunpack.c.h.b16 %v428
  %v1706 = vunpack.c.l.b16 %v429
  %v1707 = vunpack.c.h.b16 %v429
  %v1708 = vunpack.c.l.b16 %v430
  %v1709 = vunpack.c.h.b16 %v430
  %v1710 = vunpack.c.l.b16 %v431
  %v1711 = vunpack.c.h.b16 %v431
  %v1712 = vunpack.c.l.b16 %v432
  %v1713 = vunpack.c.h.b16 %v432
  %v1714 = vunpack.c.l.b16 %v433
  %v1715 = vunpack.c.h.b16 %v433
  %v1716 = vunpack.c.l.b16 %v434
  %v1717 = vunpack.c.h.b16 %v434
  %v1718 = vunpack.c.l.b16 %v435
  %v1719 = vunpack.c.h.b16 %v435
  %v1720 = vunpack.c.l.b16 %v436
  %v1721 = vunpack.c.h.b16 %v436
  %v1722 = vunpack.c.l.b16 %v437
  %v1723 = vunpack.c.h.b16 %v437
  %v1724 = vunpack.c.l.b16 %v438
  %v1725 = vunpack.c.h.b16 %v438
  %v1726 = vunpack.c.l.b16 %v439
  %v1727 = vunpack.c.h.b16 %v439
  %v1728 = vunpack.c.l.b16 %v440
  %v1729 = vunpack.c.h.b16 %v440
  %v1730 = vunpack.c.l.b16 %v441
  %v1731 = vunpack.c.h.b16 %v441
  %v1732 = vunpack.c.l.b16 %v442
  %v1733 = vunpack.c.h.b16 %v442
  %v1734 = vunpack.c.l.b16 %v443
  %v1735 = vunpack.c.h.b16 %v443
  %v1736 = vunpack.c.l.b16 %v444
  %v1737 = vunpack.c.h.b16 %v444
  %v1738 = vunpack.c.l.b16 %v445
  %v1739 = vunpack.c.h.b16 %v445
  %v1740 = vunpack.c.l.b16 %v446
  %v1741 = vunpack.c.h.b16 %v446
  %v1742 = vunpack.c.l.b16 %v447
  %v1743 = vunpack.c.h.b16 %v447
  %v1744 = vunpack.c.l.b16 %v448
  %v1745 = vunpack.c.h.b16 %v448
  %v1746 = vunpack.c.l.b16 %v449
  %v1747 = vunpack.c.h.b16 %v449
  %v1748 = vunpack.c.l.b16 %v450
  %v1749 = vunpack.c.h.b16 %v450
  %v1750 = vunpack.c.l.b16 %v451
  %v1751 = vunpack.c.h.b16 %v451
  %v1752 = vunpack.c.l.b16 %v452
  %v1753 = vunpack.c.h.b16 %v452
  %v1754 = vunpack.c.l.b16 %v453
  %v1755 = vunpack.c.h.b16 %v453
  %v1756 = vunpack.c.l.b16 %v454
  %v1757 = vunpack.c.h.b16 %v454
  %v1758 = vunpack.c.l.b16 %v455
  %v1759 = vunpack.c.h.b16 %v455
  %v1760 = vunpack.c.l.b16 %v456
  %v1761 = vunpack.c.h.b16 %v456
  %v1762 = vunpack.c.l.b16 %v457
  %v1763 = vunpack.c.h.b16 %v457
  %v1764 = vunpack.c.l.b16 %v458
  %v1765 = vunpack.c.h.b16 %v458
  %v1766 = vunpack.c.l.b16 %v459
  %v1767 = vunpack.c.h.b16 %v459
  %v1768 = vunpack.c.l.b16 %v460
  %v1769 = vunpack.c.h.b16 %v460
  %v1770 = vunpack.c.l.b16 %v461
  %v1771 = vunpack.c.h.b16 %v461
  %v1772 = vunpack.c.l.b16 %v462
  %v1773 = vunpack.c.h.b16 %v462
  %v1774 = vunpack.c.l.b16 %v463
  %v1775 = vunpack.c.h.b16 %v463
  %v1776 = vunpack.c.l.b16 %v464
  %v1777 = vunpack.c.h.b16 %v464
  %v1778 = vunpack.c.l.b16 %v465
  %v1779 = vunpack.c.h.b16 %v465
  %v1780 = vunpack.c.l.b16 %v466
  %v1781 = vunpack.c.h.b16 %v466
  %v1782 = vunpack.c.l.b16 %v467
  %v1783 = vunpack.c.h.b16 %v467
  %v1784 = vpack.c.b16 %v956, %v952
  %v1785 = vpack.c.b16 %v957, %v953
  %v1786 = vpack.c.b16 %v958, %v954
  %v1787 = vpack.c.b16 %v959, %v955
  %v1788 = vpack.c.b16 %v964, %v960
  %v1789 = vpack.c.b16 %v965, %v961
  %v1790 = vpack.c.b16 %v966, %v962
  %v1791 = vpack.c.b16 %v967, %v963
  %v1792 = vpack.c.b16 %v972, %v968
  %v1793 = vpack.c.b16 %v973, %v969
  %v1794 = vpack.c.b16 %v974, %v970
  %v1795 = vpack.c.b16 %v975, %v971
  %v1796 = vpack.c.b16 %v980, %v976
  %v1797 = vpack.c.b16 %v981, %v977
  %v1798 = vpack.c.b16 %v982, %v978
  %v1799 = vpack.c.b16 %v983, %v979
  %v1800 = vpack.c.b16 %v988, %v984
  %v1801 = vpack.c.b16 %v989, %v985
  %v1802 = vpack.c.b16 %v990, %v986
  %v1803 = vpack.c.b16 %v991, %v987
  %v1804 = vpack.c.b16 %v996, %v992
  %v1805 = vpack.c.b16 %v997, %v993
  %v1806 = vpack.c.b16 %v998, %v994
  %v1807 = vpack.c.b16 %v999, %v995
  %v1808 = vpack.c.b16 %v1004, %v1000
  %v1809 = vpack.c.b16 %v1005, %v1001
  %v1810 = vpack.c.b16 %v1006, %v1002
  %v1811 = vpack.c.b16 %v1007, %v1003
  %v1812 = vpack.c.b16 %v1012, %v1008
  %v1813 = vpack.c.b16 %v1013, %v1009
  %v1814 = vpack.c.b16 %v1014, %v1010
  %v1815 = vpack.c.b16 %v1015, %v1011
  %v1816 = vpack.c.b16 %v1020, %v1016
  %v1817 = vpack.c.b16 %v1021, %v1017
  %v1818 = vpack.c.b16 %v1022, %v1018
  %v1819 = vpack.c.b16 %v1023, %v1019
  %v1820 = vpack.c.b16 %v1028, %v1024
  %v1821 = vpack.c.b16 %v1029, %v1025
  %v1822 = vpack.c.b16 %v1030, %v1026
  %v1823 = vpack.c.b16 %v1031, %v1027
  %v1824 = vpack.c.b16 %v1036, %v1032
  %v1825 = vpack.c.b16 %v1037, %v1033
  %v1826 = vpack.c.b16 %v1038, %v1034
  %v1827 = vpack.c.b16 %v1039, %v1035
  %v1828 = vpack.c.b16 %v1044, %v1040
  %v1829 = vpack.c.b16 %v1045, %v1041
  %v1830 = vpack.c.b16 %v1046, %v1042
  %v1831 = vpack.c.b16 %v1047, %v1043
  %v1832 = vpack.c.b16 %v1052, %v1048
  %v1833 = vpack.c.b16 %v1053, %v1049
  %v1834 = vpack.c.b16 %v1054, %v1050
  %v1835 = vpack.c.b16 %v1055, %v1051
  %v1836 = vpack.c.b16 %v1060, %v1056
  %v1837 = vpack.c.b16 %v1061, %v1057
  %v1838 = vpack.c.b16 %v1062, %v1058
  %v1839 = vpack.c.b16 %v1063, %v1059
  %v1840 = vpack.c.b16 %v1068, %v1064
  %v1841 = vpack.c.b16 %v1069, %v1065
  %v1842 = vpack.c.b16 %v1070, %v1066
  %v1843 = vpack.c.b16 %v1071, %v1067
  %v1844 = vpack.c.b16 %v1076, %v1072
  %v1845 = vpack.c.b16 %v1077, %v1073
  %v1846 = vpack.c.b16 %v1078, %v1074
  %v1847 = vpack.c.b16 %v1079, %v1075
  %v1848 = vpack.c.b16 %v1084, %v1080
  %v1849 = vpack.c.b16 %v1085, %v1081
  %v1850 = vpack.c.b16 %v1086, %v1082
  %v1851 = vpack.c.b16 %v1087, %v1083
  %v1852 = vpack.c.b16 %v1092, %v1088
  %v1853 = vpack.c.b16 %v1093, %v1089
  %v1854 = vpack.c.b16 %v1094, %v1090
  %v1855 = vpack.c.b16 %v1095, %v1091
  %v1856 = vpack.c.b16 %v1100, %v1096
  %v1857 = vpack.c.b16 %v1101, %v1097
  %v1858 = vpack.c.b16 %v1102, %v1098
  %v1859 = vpack.c.b16 %v1103, %v1099
  %v1860 = vpack.c.b16 %v1108, %v1104
  %v1861 = vpack.c.b16 %v1109, %v1105
  %v1862 = vpack.c.b16 %v1110, %v1106
  %v1863 = vpack.c.b16 %v1111, %v1107
  %v1864 = vpack.c.b16 %v1116, %v1112
  %v1865 = vpack.c.b16 %v1117, %v1113
  %v1866 = vpack.c.b16 %v1118, %v1114
  %v1867 = vpack.c.b16 %v1119, %v1115
  %v1868 = vpack.c.b16 %v1124, %v1120
  %v1869 = vpack.c.b16 %v1125, %v1121
  %v1870 = vpack.c.b16 %v1126, %v1122
  %v1871 = vpack.c.b16 %v1127, %v1123
  %v1872 = vpack.c.b16 %v1132, %v1128
  %v1873 = vpack.c.b16 %v1133, %v1129
  %v1874 = vpack.c.b16 %v1134, %v1130
  %v1875 = vpack.c.b16 %v1135, %v1131
  %v1876 = vpack.c.b16 %v1140, %v1136
  %v1877 = vpack.c.b16 %v1141, %v1137
  %v1878 = vpack.c.b16 %v1142, %v1138
  %v1879 = vpack.c.b16 %v1143, %v1139
  %v1880 = vpack.c.b16 %v1148, %v1144
  %v1881 = vpack.c.b16 %v1149, %v1145
  %v1882 = vpack.c.b16 %v1150, %v1146
  %v1883 = vpack.c.b16 %v1151, %v1147
  %v1884 = vpack.c.b16 %v1156, %v1152
  %v1885 = vpack.c.b16 %v1157, %v1153
  %v1886 = vpack.c.b16 %v1158, %v1154
  %v1887 = vpack.c.b16 %v1159, %v1155
  %v1888 = vpack.c.b16 %v1164, %v1160
  %v1889 = vpack.c.b16 %v1165, %v1161
  %v1890 = vpack.c.b16 %v1166, %v1162
  %v1891 = vpack.c.b16 %v1167, %v1163
  %v1892 = vpack.c.b16 %v1172, %v1168
  %v1893 = vpack.c.b16 %v1173, %v1169
  %v1894 = vpack.c.b16 %v1174, %v1170
  %v1895 = vpack.c.b16 %v1175, %v1171
  %v1896 = vpack.c.b16 %v1180, %v1176
  %v1897 = vpack.c.b16 %v1181, %v1177
  %v1898 = vpack.c.b16 %v1182, %v1178
  %v1899 = vpack.c.b16 %v1183, %v1179
  %v1900 = vpack.c.b16 %v1188, %v1184
  %v1901 = vpack.c.b16 %v1189, %v1185
  %v1902 = vpack.c.b16 %v1190, %v1186
  %v1903 = vpack.c.b16 %v1191, %v1187
  %v1904 = vpack.c.b16 %v1196, %v1192
  %v1905 = vpack.c.b16 %v1197, %v1193
  %v1906 = vpack.c.b16 %v1198, %v1194
  %v1907 = vpack.c.b16 %v1199, %v1195
  %v1908 = vpack.c.b16 %v1204, %v1200
  %v1909 = vpack.c.b16 %v1205, %v1201
  %v1910 = vpack.c.b16 %v1206, %v1202
  %v1911 = vpack.c.b16 %v1207, %v1203
  %v1912 = vpack.c.b16 %v1212, %v1208
  %v1913 = vpack.c.b16 %v1213, %v1209
  %v1914 = vpack.c.b16 %v1214, %v1210
  %v1915 = vpack.c.b16 %v1215, %v1211
  %v1916 = vpack.c.b16 %v1220, %v1216
  %v1917 = vpack.c.b16 %v1221, %v1217
  %v1918 = vpack.c.b16 %v1222, %v1218
  %v1919 = vpack.c.b16 %v1223, %v1219
  %v1920 = vpack.c.b16 %v1228, %v1224
  %v1921 = vpack.c.b16 %v1229, %v1225
  %v1922 = vpack.c.b16 %v1230, %v1226
  %v1923 = vpack.c.b16 %v1231, %v1227
  %v1924 = vpack.c.b16 %v1236, %v1232
  %v1925 = vpack.c.b16 %v1237, %v1233
  %v1926 = vpack.c.b16 %v1238, %v1234
  %v1927 = vpack.c.b16 %v1239, %v1235
  %v1928 = vpack.c.b16 %v1244, %v1240
  %v1929 = vpack.c.b16 %v1245, %v1241
  %v1930 = vpack.c.b16 %v1246, %v1242
  %v1931 = vpack.c.b16 %v1247, %v1243
  %v1932 = vpack.c.b16 %v1252, %v1248
  %v1933 = vpack.c.b16 %v1253, %v1249
  %v1934 = vpack.c.b16 %v1254, %v1250
  %v1935 = vpack.c.b16 %v1255, %v1251
  %v1936 = vpack.c.b16 %v1260, %v1256
  %v1937 = vpack.c.b16 %v1261, %v1257
  %v1938 = vpack.c.b16 %v1262, %v1258
  %v1939 = vpack.c.b16 %v1263, %v1259
  %v1940 = vpack.c.b16 %v1268, %v1264
  %v1941 = vpack.c.b16 %v1269, %v1265
  %v1942 = vpack.c.b16 %v1270, %v1266
  %v1943 = vpack.c.b16 %v1271, %v1267
  %v1944 = vpack.c.b16 %v1276, %v1272
  %v1945 = vpack.c.b16 %v1277, %v1273
  %v1946 = vpack.c.b16 %v1278, %v1274
  %v1947 = vpack.c.b16 %v1279, %v1275
  %v1948 = vpack.c.b16 %v1284, %v1280
  %v1949 = vpack.c.b16 %v1285, %v1281
  %v1950 = vpack.c.b16 %v1286, %v1282
  %v1951 = vpack.c.b16 %v1287, %v1283
  %v1952 = vpack.c.b16 %v1292, %v1288
  %v1953 = vpack.c.b16 %v1293, %v1289
  %v1954 = vpack.c.b16 %v1294, %v1290
  %v1955 = vpack.c.b16 %v1295, %v1291
  %v1956 = vpack.c.b16 %v1300, %v1296
  %v1957 = vpack.c.b16 %v1301, %v1297
  %v1958 = vpack.c.b16 %v1302, %v1298
  %v1959 = vpack.c.b16 %v1303, %v1299
  %v1960 = vpack.c.b16 %v1308, %v1304
  %v1961 = vpack.c.b16 %v1309, %v1305
  %v1962 = vpack.c.b16 %v1310, %v1306
  %v1963 = vpack.c.b16 %v1311, %v1307
  %v1964 = vpack.c.b16 %v1316, %v1312
  %v1965 = vpack.c.b16 %v1317, %v1313
  %v1966 = vpack.c.b16 %v1318, %v1314
  %v1967 = vpack.c.b16 %v1319, %v1315
  %v1968 = vpack.c.b16 %v1324, %v1320
  %v1969 = vpack.c.b16 %v1325, %v1321
  %v1970 = vpack.c.b16 %v1326, %v1322
  %v1971 = vpack.c.b16 %v1327, %v1323
  %v1972 = vpack.c.b16 %v1332, %v1328
  %v1973 = vpack.c.b16 %v1333, %v1329
  %v1974 = vpack.c.b16 %v1334, %v1330
  %v1975 = vpack.c.b16 %v1335, %v1331
  %v1976 = vpack.c.b16 %v1340, %v1336
  %v1977 = vpack.c.b16 %v1341, %v1337
  %v1978 = vpack.c.b16 %v1342, %v1338
  %v1979 = vpack.c.b16 %v1343, %v1339
  %v1980 = vpack.c.b16 %v1348, %v1344
  %v1981 = vpack.c.b16 %v1349, %v1345
  %v1982 = vpack.c.b16 %v1350, %v1346
  %v1983 = vpack.c.b16 %v1351, %v1347
  %v1984 = vpack.c.b16 %v1356, %v1352
  %v1985 = vpack.c.b16 %v1357, %v1353
  %v1986 = vpack.c.b16 %v1358, %v1354
  %v1987 = vpack.c.b16 %v1359, %v1355
  %v1988 = vpack.c.b16 %v1364, %v1360
  %v1989 = vpack.c.b16 %v1365, %v1361
  %v1990 = vpack.c.b16 %v1366, %v1362
  %v1991 = vpack.c.b16 %v1367, %v1363
  %v1992 = vpack.c.b16 %v1372, %v1368
  %v1993 = vpack.c.b16 %v1373, %v1369
  %v1994 = vpack.c.b16 %v1374, %v1370
  %v1995 = vpack.c.b16 %v1375, %v1371
  %v1996 = vpack.c.b16 %v1380, %v1376
  %v1997 = vpack.c.b16 %v1381, %v1377
  %v1998 = vpack.c.b16 %v1382, %v1378
  %v1999 = vpack.c.b16 %v1383, %v1379
  %v2000 = vpack.c.b16 %v1388, %v1384
  %v2001 = vpack.c.b16 %v1389, %v1385
  %v2002 = vpack.c.b16 %v1390, %v1386
  %v2003 = vpack.c.b16 %v1391, %v1387
  %v2004 = vpack.c.b16 %v1396, %v1392
  %v2005 = vpack.c.b16 %v1397, %v1393
  %v2006 = vpack.c.b16 %v1398, %v1394
  %v2007 = vpack.c.b16 %v1399, %v1395
  %v2008 = vpack.c.b16 %v1404, %v1400
  %v2009 = vpack.c.b16 %v1405, %v1401
  %v2010 = vpack.c.b16 %v1406, %v1402
  %v2011 = vpack.c.b16 %v1407, %v1403
  %v2012 = vpack.c.b16 %v1412, %v1408
  %v2013 = vpack.c.b16 %v1413, %v1409
  %v2014 = vpack.c.b16 %v1414, %v1410
  %v2015 = vpack.c.b16 %v1415, %v1411
  %v2016 = vpack.c.b16 %v1420, %v1416
  %v2017 = vpack.c.b16 %v1421, %v1417
  %v2018 = vpack.c.b16 %v1422, %v1418
  %v2019 = vpack.c.b16 %v1423, %v1419
  %v2020 = vpack.c.b16 %v1428, %v1424
  %v2021 = vpack.c.b16 %v1429, %v1425
  %v2022 = vpack.c.b16 %v1430, %v1426
  %v2023 = vpack.c.b16 %v1431, %v1427
  %v2024 = vpack.c.b16 %v1436, %v1432
  %v2025 = vpack.c.b16 %v1437, %v1433
  %v2026 = vpack.c.b16 %v1438, %v1434
  %v2027 = vpack.c.b16 %v1439, %v1435
  %v2028 = vpack.c.b16 %v1444, %v1440
  %v2029 = vpack.c.b16 %v1445, %v1441
  %v2030 = vpack.c.b16 %v1446, %v1442
  %v2031 = vpack.c.b16 %v1447, %v1443
  %v2032 = vpack.c.b16 %v1452, %v1448
  %v2033 = vpack.c.b16 %v1453, %v1449
  %v2034 = vpack.c.b16 %v1454, %v1450
  %v2035 = vpack.c.b16 %v1455, %v1451
  %v2036 = vpack.c.b16 %v1460, %v1456
  %v2037 = vpack.c.b16 %v1461, %v1457
  %v2038 = vpack.c.b16 %v1462, %v1458
  %v2039 = vpack.c.b16 %v1463, %v1459
  %v2040 = vpack.c.b16 %v1468, %v1464
  %v2041 = vpack.c.b16 %v1469, %v1465
  %v2042 = vpack.c.b16 %v1470, %v1466
  %v2043 = vpack.c.b16 %v1471, %v1467
  %v2044 = vpack.c.b16 %v1476, %v1472
  %v2045 = vpack.c.b16 %v1477, %v1473
  %v2046 = vpack.c.b16 %v1478, %v1474
  %v2047 = vpack.c.b16 %v1479, %v1475
  %v2048 = vpack.c.b16 %v1484, %v1480
  %v2049 = vpack.c.b16 %v1485, %v1481
  %v2050 = vpack.c.b16 %v1486, %v1482
  %v2051 = vpack.c.b16 %v1487, %v1483
  %v2052 = vpack.c.b16 %v1492, %v1488
  %v2053 = vpack.c.b16 %v1493, %v1489
  %v2054 = vpack.c.b16 %v1494, %v1490
  %v2055 = vpack.c.b16 %v1495, %v1491
  %v2056 = vpack.c.b16 %v1500, %v1496
  %v2057 = vpack.c.b16 %v1501, %v1497
  %v2058 = vpack.c.b16 %v1502, %v1498
  %v2059 = vpack.c.b16 %v1503, %v1499
  %v2060 = vpack.c.b16 %v1508, %v1504
  %v2061 = vpack.c.b16 %v1509, %v1505
  %v2062 = vpack.c.b16 %v1510, %v1506
  %v2063 = vpack.c.b16 %v1511, %v1507
  %v2064 = vpack.c.b16 %v1516, %v1512
  %v2065 = vpack.c.b16 %v1517, %v1513
  %v2066 = vpack.c.b16 %v1518, %v1514
  %v2067 = vpack.c.b16 %v1519, %v1515
  %v2068 = vpack.c.b16 %v1524, %v1520
  %v2069 = vpack.c.b16 %v1525, %v1521
  %v2070 = vpack.c.b16 %v1526, %v1522
  %v2071 = vpack.c.b16 %v1527, %v1523
  %v2072 = vpack.c.b16 %v1532, %v1528
  %v2073 = vpack.c.b16 %v1533, %v1529
  %v2074 = vpack.c.b16 %v1534, %v1530
  %v2075 = vpack.c.b16 %v1535, %v1531
  %v2076 = vpack.c.b16 %v1540, %v1536
  %v2077 = vpack.c.b16 %v1541, %v1537
  %v2078 = vpack.c.b16 %v1542, %v1538
  %v2079 = vpack.c.b16 %v1543, %v1539
  %v2080 = vpack.c.b16 %v1548, %v1544
  %v2081 = vpack.c.b16 %v1549, %v1545
  %v2082 = vpack.c.b16 %v1550, %v1546
  %v2083 = vpack.c.b16 %v1551, %v1547
  %v2084 = vpack.c.b16 %v1556, %v1552
  %v2085 = vpack.c.b16 %v1557, %v1553
  %v2086 = vpack.c.b16 %v1558, %v1554
  %v2087 = vpack.c.b16 %v1559, %v1555
  %v2088 = vpack.c.b16 %v1564, %v1560
  %v2089 = vpack.c.b16 %v1565, %v1561
  %v2090 = vpack.c.b16 %v1566, %v1562
  %v2091 = vpack.c.b16 %v1567, %v1563
  %v2092 = vpack.c.b16 %v1572, %v1568
  %v2093 = vpack.c.b16 %v1573, %v1569
  %v2094 = vpack.c.b16 %v1574, %v1570
  %v2095 = vpack.c.b16 %v1575, %v1571
  %v2096 = vpack.c.b16 %v1580, %v1576
  %v2097 = vpack.c.b16 %v1581, %v1577
  %v2098 = vpack.c.b16 %v1582, %v1578
  %v2099 = vpack.c.b16 %v1583, %v1579
  %v2100 = vpack.c.b16 %v1588, %v1584
  %v2101 = vpack.c.b16 %v1589, %v1585
  %v2102 = vpack.c.b16 %v1590, %v1586
  %v2103 = vpack.c.b16 %v1591, %v1587
  %v2104 = vpack.c.b16 %v1596, %v1592
  %v2105 = vpack.c.b16 %v1597, %v1593
  %v2106 = vpack.c.b16 %v1598, %v1594
  %v2107 = vpack.c.b16 %v1599, %v1595
  %v2108 = vpack.c.b16 %v1604, %v1600
  %v2109 = vpack.c.b16 %v1605, %v1601
  %v2110 = vpack.c.b16 %v1606, %v1602
  %v2111 = vpack.c.b16 %v1607, %v1603
  %v2112 = vpack.c.b16 %v1612, %v1608
  %v2113 = vpack.c.b16 %v1613, %v1609
  %v2114 = vpack.c.b16 %v1614, %v1610
  %v2115 = vpack.c.b16 %v1615, %v1611
  %v2116 = vpack.c.b16 %v1620, %v1616
  %v2117 = vpack.c.b16 %v1621, %v1617
  %v2118 = vpack.c.b16 %v1622, %v1618
  %v2119 = vpack.c.b16 %v1623, %v1619
  %v2120 = vpack.c.b16 %v1628, %v1624
  %v2121 = vpack.c.b16 %v1629, %v1625
  %v2122 = vpack.c.b16 %v1630, %v1626
  %v2123 = vpack.c.b16 %v1631, %v1627
  %v2124 = vpack.c.b16 %v1636, %v1632
  %v2125 = vpack.c.b16 %v1637, %v1633
  %v2126 = vpack.c.b16 %v1638, %v1634
  %v2127 = vpack.c.b16 %v1639, %v1635
  %v2128 = vpack.c.b16 %v1644, %v1640
  %v2129 = vpack.c.b16 %v1645, %v1641
  %v2130 = vpack.c.b16 %v1646, %v1642
  %v2131 = vpack.c.b16 %v1647, %v1643
  %v2132 = vpack.c.b16 %v1652, %v1648
  %v2133 = vpack.c.b16 %v1653, %v1649
  %v2134 = vpack.c.b16 %v1654, %v1650
  %v2135 = vpack.c.b16 %v1655, %v1651
  %v2136 = vpack.c.b16 %v1660, %v1656
  %v2137 = vpack.c.b16 %v1661, %v1657
  %v2138 = vpack.c.b16 %v1662, %v1658
  %v2139 = vpack.c.b16 %v1663, %v1659
  %v2140 = vpack.c.b16 %v1668, %v1664
  %v2141 = vpack.c.b16 %v1669, %v1665
  %v2142 = vpack.c.b16 %v1670, %v1666
  %v2143 = vpack.c.b16 %v1671, %v1667
  %v2144 = vpack.c.b16 %v1676, %v1672
  %v2145 = vpack.c.b16 %v1677, %v1673
  %v2146 = vpack.c.b16 %v1678, %v1674
  %v2147 = vpack.c.b16 %v1679, %v1675
  %v2148 = vpack.c.b16 %v1684, %v1680
  %v2149 = vpack.c.b16 %v1685, %v1681
  %v2150 = vpack.c.b16 %v1686, %v1682
  %v2151 = vpack.c.b16 %v1687, %v1683
  %v2152 = vpack.c.b16 %v1692, %v1688
  %v2153 = vpack.c.b16 %v1693, %v1689
  %v2154 = vpack.c.b16 %v1694, %v1690
  %v2155 = vpack.c.b16 %v1695, %v1691
  %v2156 = vpack.c.b16 %v1700, %v1696
  %v2157 = vpack.c.b16 %v1701, %v1697
  %v2158 = vpack.c.b16 %v1702, %v1698
  %v2159 = vpack.c.b16 %v1703, %v1699
  %v2160 = vpack.c.b16 %v1708, %v1704
  %v2161 = vpack.c.b16 %v1709, %v1705
  %v2162 = vpack.c.b16 %v1710, %v1706
  %v2163 = vpack.c.b16 %v1711, %v1707
  %v2164 = vpack.c.b16 %v1716, %v1712
  %v2165 = vpack.c.b16 %v1717, %v1713
  %v2166 = vpack.c.b16 %v1718, %v1714
  %v2167 = vpack.c.b16 %v1719, %v1715
  %v2168 = vpack.c.b16 %v1724, %v1720
  %v2169 = vpack.c.b16 %v1725, %v1721
  %v2170 = vpack.c.b16 %v1726, %v1722
  %v2171 = vpack.c.b16 %v1727, %v1723
  %v2172 = vpack.c.b16 %v1732, %v1728
  %v2173 = vpack.c.b16 %v1733, %v1729
  %v2174 = vpack.c.b16 %v1734, %v1730
  %v2175 = vpack.c.b16 %v1735, %v1731
  %v2176 = vpack.c.b16 %v1740, %v1736
  %v2177 = vpack.c.b16 %v1741, %v1737
  %v2178 = vpack.c.b16 %v1742, %v1738
  %v2179 = vpack.c.b16 %v1743, %v1739
  %v2180 = vpack.c.b16 %v1748, %v1744
  %v2181 = vpack.c.b16 %v1749, %v1745
  %v2182 = vpack.c.b16 %v1750, %v1746
  %v2183 = vpack.c.b16 %v1751, %v1747
  %v2184 = vpack.c.b16 %v1756, %v1752
  %v2185 = vpack.c.b16 %v1757, %v1753
  %v2186 = vpack.c.b16 %v1758, %v1754
  %v2187 = vpack.c.b16 %v1759, %v1755
  %v2188 = vpack.c.b16 %v1764, %v1760
  %v2189 = vpack.c.b16 %v1765, %v1761
  %v2190 = vpack.c.b16 %v1766, %v1762
  %v2191 = vpack.c.b16 %v1767, %v1763
  %v2192 = vpack.c.b16 %v1772, %v1768
  %v2193 = vpack.c.b16 %v1773, %v1769
  %v2194 = vpack.c.b16 %v1774, %v1770
  %v2195 = vpack.c.b16 %v1775, %v1771
  %v2196 = vpack.c.b16 %v1780, %v1776
  %v2197 = vpack.c.b16 %v1781, %v1777
  %v2198 = vpack.c.b16 %v1782, %v1778
  %v2199 = vpack.c.b16 %v1783, %v1779
  %2616 = vmatprep.subr.bf16.mxu0 %v1785
  %2617 = vmatpush1.bf16.msra.mxu0 %v1784
  %2618 = vmatprep.subr.bf16.mxu0 %v1789
  %2619 = vmatpush1.bf16.msra.mxu0 %v1788
  %2620 = vmatprep.subr.bf16.mxu0 %v1793
  %2621 = vmatpush1.bf16.msra.mxu0 %v1792
  %2622 = vmatprep.subr.bf16.mxu0 %v1797
  %2623 = vmatpush1.bf16.msra.mxu0 %v1796
  %2624 = vmatprep.subr.bf16.mxu0 %v1801
  %2625 = vmatpush1.bf16.msra.mxu0 %v1800
  %2626 = vmatprep.subr.bf16.mxu0 %v1805
  %2627 = vmatpush1.bf16.msra.mxu0 %v1804
  %2628 = vmatprep.subr.bf16.mxu0 %v1809
  %2629 = vmatpush1.bf16.msra.mxu0 %v1808
  %2630 = vmatprep.subr.bf16.mxu0 %v1813
  %2631 = vmatpush1.bf16.msra.mxu0 %v1812
  %2632 = vmatprep.subr.bf16.mxu0 %v1817
  %2633 = vmatpush1.bf16.msra.mxu0 %v1816
  %2634 = vmatprep.subr.bf16.mxu0 %v1821
  %2635 = vmatpush1.bf16.msra.mxu0 %v1820
  %2636 = vmatprep.subr.bf16.mxu0 %v1825
  %2637 = vmatpush1.bf16.msra.mxu0 %v1824
  %2638 = vmatprep.subr.bf16.mxu0 %v1829
  %2639 = vmatpush1.bf16.msra.mxu0 %v1828
  %2640 = vmatprep.subr.bf16.mxu0 %v1833
  %2641 = vmatpush1.bf16.msra.mxu0 %v1832
  %2642 = vmatprep.subr.bf16.mxu0 %v1837
  %2643 = vmatpush1.bf16.msra.mxu0 %v1836
  %2644 = vmatprep.subr.bf16.mxu0 %v1841
  %2645 = vmatpush1.bf16.msra.mxu0 %v1840
  %2646 = vmatprep.subr.bf16.mxu0 %v1845
  %2647 = vmatpush1.bf16.msra.mxu0 %v1844
  %2648 = vmatprep.mubr.bf16.mxu0 %v511
  %2649 = vmatmul.mubr.bf16.gmra.mrb[0].mxu0 %v510
  %v2650 = vpop.f32.mrb[0].mxu0
  %v2651 = vadd.f32 %v473, %v2650
  %v2652 = vpop.f32.mrb[0].mxu0
  %v2653 = vadd.f32 %v477, %v2652
  %v2654 = vpop.f32.mrb[0].mxu0
  %v2655 = vpop.f32.mrb[0].mxu0
  %2656 = vdwg.mxu0
  %2657 = vmatprep.subr.bf16.mxu0 %v1849
  %2658 = vmatpush1.bf16.msra.mxu0 %v1848
  %2659 = vmatprep.subr.bf16.mxu0 %v1853
  %2660 = vmatpush1.bf16.msra.mxu0 %v1852
  %2661 = vmatprep.subr.bf16.mxu0 %v1857
  %2662 = vmatpush1.bf16.msra.mxu0 %v1856
  %2663 = vmatprep.subr.bf16.mxu0 %v1861
  %2664 = vmatpush1.bf16.msra.mxu0 %v1860
  %2665 = vmatprep.subr.bf16.mxu0 %v1865
  %2666 = vmatpush1.bf16.msra.mxu0 %v1864
  %2667 = vmatprep.subr.bf16.mxu0 %v1869
  %2668 = vmatpush1.bf16.msra.mxu0 %v1868
  %2669 = vmatprep.subr.bf16.mxu0 %v1873
  %2670 = vmatpush1.bf16.msra.mxu0 %v1872
  %2671 = vmatprep.subr.bf16.mxu0 %v1877
  %2672 = vmatpush1.bf16.msra.mxu0 %v1876
  %2673 = vmatprep.subr.bf16.mxu0 %v1881
  %2674 = vmatpush1.bf16.msra.mxu0 %v1880
  %2675 = vmatprep.subr.bf16.mxu0 %v1885
  %2676 = vmatpush1.bf16.msra.mxu0 %v1884
  %2677 = vmatprep.subr.bf16.mxu0 %v1889
  %2678 = vmatpush1.bf16.msra.mxu0 %v1888
  %2679 = vmatprep.subr.bf16.mxu0 %v1893
  %2680 = vmatpush1.bf16.msra.mxu0 %v1892
  %2681 = vmatprep.subr.bf16.mxu0 %v1897
  %2682 = vmatpush1.bf16.msra.mxu0 %v1896
  %2683 = vmatprep.subr.bf16.mxu0 %v1901
  %2684 = vmatpush1.bf16.msra.mxu0 %v1900
  %2685 = vmatprep.subr.bf16.mxu0 %v1905
  %2686 = vmatpush1.bf16.msra.mxu0 %v1904
  %2687 = vmatprep.subr.bf16.mxu0 %v1909
  %2688 = vmatpush1.bf16.msra.mxu0 %v1908
  %2689 = vmatprep.mubr.bf16.mxu0 %v513
  %2690 = vmatmul.mubr.bf16.gmra.mrb[0].mxu0 %v512
  %v2691 = vpop.f32.mrb[0].mxu0
  %v2692 = vadd.f32 %v2651, %v2691
  %v2693 = vpop.f32.mrb[0].mxu0
  %v2694 = vadd.f32 %v2653, %v2693
  %v2695 = vpop.f32.mrb[0].mxu0
  %v2696 = vpop.f32.mrb[0].mxu0
  %2697 = vdwg.mxu0
  %2698 = vmatprep.subr.bf16.mxu0 %v1913
  %2699 = vmatpush1.bf16.msra.mxu0 %v1912
  %2700 = vmatprep.subr.bf16.mxu0 %v1917
  %2701 = vmatpush1.bf16.msra.mxu0 %v1916
  %2702 = vmatprep.subr.bf16.mxu0 %v1921
  %2703 = vmatpush1.bf16.msra.mxu0 %v1920
  %2704 = vmatprep.subr.bf16.mxu0 %v1925
  %2705 = vmatpush1.bf16.msra.mxu0 %v1924
  %2706 = vmatprep.subr.bf16.mxu0 %v1929
  %2707 = vmatpush1.bf16.msra.mxu0 %v1928
  %2708 = vmatprep.subr.bf16.mxu0 %v1933
  %2709 = vmatpush1.bf16.msra.mxu0 %v1932
  %2710 = vmatprep.subr.bf16.mxu0 %v1937
  %2711 = vmatpush1.bf16.msra.mxu0 %v1936
  %2712 = vmatprep.subr.bf16.mxu0 %v1941
  %2713 = vmatpush1.bf16.msra.mxu0 %v1940
  %2714 = vmatprep.subr.bf16.mxu0 %v1945
  %2715 = vmatpush1.bf16.msra.mxu0 %v1944
  %2716 = vmatprep.subr.bf16.mxu0 %v1949
  %2717 = vmatpush1.bf16.msra.mxu0 %v1948
  %2718 = vmatprep.subr.bf16.mxu0 %v1953
  %2719 = vmatpush1.bf16.msra.mxu0 %v1952
  %2720 = vmatprep.subr.bf16.mxu0 %v1957
  %2721 = vmatpush1.bf16.msra.mxu0 %v1956
  %2722 = vmatprep.subr.bf16.mxu0 %v1961
  %2723 = vmatpush1.bf16.msra.mxu0 %v1960
  %2724 = vmatprep.subr.bf16.mxu0 %v1965
  %2725 = vmatpush1.bf16.msra.mxu0 %v1964
  %2726 = vmatprep.subr.bf16.mxu0 %v1969
  %2727 = vmatpush1.bf16.msra.mxu0 %v1968
  %2728 = vmatprep.subr.bf16.mxu0 %v1973
  %2729 = vmatpush1.bf16.msra.mxu0 %v1972
  %2730 = vmatprep.mubr.bf16.mxu0 %v515
  %2731 = vmatmul.mubr.bf16.gmra.mrb[0].mxu0 %v514
  %v2732 = vpop.f32.mrb[0].mxu0
  %v2733 = vadd.f32 %v2692, %v2732
  %v2734 = vpop.f32.mrb[0].mxu0
  %v2735 = vadd.f32 %v2694, %v2734
  %v2736 = vpop.f32.mrb[0].mxu0
  %v2737 = vpop.f32.mrb[0].mxu0
  %2738 = vdwg.mxu0
  %2739 = vmatprep.subr.bf16.mxu0 %v1977
  %2740 = vmatpush1.bf16.msra.mxu0 %v1976
  %2741 = vmatprep.subr.bf16.mxu0 %v1981
  %2742 = vmatpush1.bf16.msra.mxu0 %v1980
  %2743 = vmatprep.subr.bf16.mxu0 %v1985
  %2744 = vmatpush1.bf16.msra.mxu0 %v1984
  %2745 = vmatprep.subr.bf16.mxu0 %v1989
  %2746 = vmatpush1.bf16.msra.mxu0 %v1988
  %2747 = vmatprep.subr.bf16.mxu0 %v1993
  %2748 = vmatpush1.bf16.msra.mxu0 %v1992
  %2749 = vmatprep.subr.bf16.mxu0 %v1997
  %2750 = vmatpush1.bf16.msra.mxu0 %v1996
  %2751 = vmatprep.subr.bf16.mxu0 %v2001
  %2752 = vmatpush1.bf16.msra.mxu0 %v2000
  %2753 = vmatprep.subr.bf16.mxu0 %v2005
  %2754 = vmatpush1.bf16.msra.mxu0 %v2004
  %2755 = vmatprep.subr.bf16.mxu0 %v2009
  %2756 = vmatpush1.bf16.msra.mxu0 %v2008
  %2757 = vmatprep.subr.bf16.mxu0 %v2013
  %2758 = vmatpush1.bf16.msra.mxu0 %v2012
  %2759 = vmatprep.subr.bf16.mxu0 %v2017
  %2760 = vmatpush1.bf16.msra.mxu0 %v2016
  %2761 = vmatprep.subr.bf16.mxu0 %v2021
  %2762 = vmatpush1.bf16.msra.mxu0 %v2020
  %2763 = vmatprep.subr.bf16.mxu0 %v2025
  %2764 = vmatpush1.bf16.msra.mxu0 %v2024
  %2765 = vmatprep.subr.bf16.mxu0 %v2029
  %2766 = vmatpush1.bf16.msra.mxu0 %v2028
  %2767 = vmatprep.subr.bf16.mxu0 %v2033
  %2768 = vmatpush1.bf16.msra.mxu0 %v2032
  %2769 = vmatprep.subr.bf16.mxu0 %v2037
  %2770 = vmatpush1.bf16.msra.mxu0 %v2036
  %2771 = vmatprep.mubr.bf16.mxu0 %v517
  %2772 = vmatmul.mubr.bf16.gmra.mrb[0].mxu0 %v516
  %v2773 = vpop.f32.mrb[0].mxu0
  %v2774 = vadd.f32 %v2733, %v2773
  %v2775 = vpop.f32.mrb[0].mxu0
  %v2776 = vadd.f32 %v2735, %v2775
  %v2777 = vpop.f32.mrb[0].mxu0
  %v2778 = vpop.f32.mrb[0].mxu0
  %2779 = vdwg.mxu0
  %2780 = vmatprep.subr.bf16.mxu0 %v2041
  %2781 = vmatpush1.bf16.msra.mxu0 %v2040
  %2782 = vmatprep.subr.bf16.mxu0 %v2045
  %2783 = vmatpush1.bf16.msra.mxu0 %v2044
  %2784 = vmatprep.subr.bf16.mxu0 %v2049
  %2785 = vmatpush1.bf16.msra.mxu0 %v2048
  %2786 = vmatprep.subr.bf16.mxu0 %v2053
  %2787 = vmatpush1.bf16.msra.mxu0 %v2052
  %2788 = vmatprep.subr.bf16.mxu0 %v2057
  %2789 = vmatpush1.bf16.msra.mxu0 %v2056
  %2790 = vmatprep.subr.bf16.mxu0 %v2061
  %2791 = vmatpush1.bf16.msra.mxu0 %v2060
  %2792 = vmatprep.subr.bf16.mxu0 %v2065
  %2793 = vmatpush1.bf16.msra.mxu0 %v2064
  %2794 = vmatprep.subr.bf16.mxu0 %v2069
  %2795 = vmatpush1.bf16.msra.mxu0 %v2068
  %2796 = vmatprep.subr.bf16.mxu0 %v2073
  %2797 = vmatpush1.bf16.msra.mxu0 %v2072
  %2798 = vmatprep.subr.bf16.mxu0 %v2077
  %2799 = vmatpush1.bf16.msra.mxu0 %v2076
  %2800 = vmatprep.subr.bf16.mxu0 %v2081
  %2801 = vmatpush1.bf16.msra.mxu0 %v2080
  %2802 = vmatprep.subr.bf16.mxu0 %v2085
  %2803 = vmatpush1.bf16.msra.mxu0 %v2084
  %2804 = vmatprep.subr.bf16.mxu0 %v2089
  %2805 = vmatpush1.bf16.msra.mxu0 %v2088
  %2806 = vmatprep.subr.bf16.mxu0 %v2093
  %2807 = vmatpush1.bf16.msra.mxu0 %v2092
  %2808 = vmatprep.subr.bf16.mxu0 %v2097
  %2809 = vmatpush1.bf16.msra.mxu0 %v2096
  %2810 = vmatprep.subr.bf16.mxu0 %v2101
  %2811 = vmatpush1.bf16.msra.mxu0 %v2100
  %2812 = vmatprep.mubr.bf16.mxu0 %v519
  %2813 = vmatmul.mubr.bf16.gmra.mrb[0].mxu0 %v518
  %v2814 = vpop.f32.mrb[0].mxu0
  %v2815 = vadd.f32 %v2774, %v2814
  %v2816 = vpop.f32.mrb[0].mxu0
  %v2817 = vadd.f32 %v2776, %v2816
  %v2818 = vpop.f32.mrb[0].mxu0
  %v2819 = vpop.f32.mrb[0].mxu0
  %2820 = vdwg.mxu0
  %2821 = vmatprep.subr.bf16.mxu0 %v2105
  %2822 = vmatpush1.bf16.msra.mxu0 %v2104
  %2823 = vmatprep.subr.bf16.mxu0 %v2109
  %2824 = vmatpush1.bf16.msra.mxu0 %v2108
  %2825 = vmatprep.subr.bf16.mxu0 %v2113
  %2826 = vmatpush1.bf16.msra.mxu0 %v2112
  %2827 = vmatprep.subr.bf16.mxu0 %v2117
  %2828 = vmatpush1.bf16.msra.mxu0 %v2116
  %2829 = vmatprep.subr.bf16.mxu0 %v2121
  %2830 = vmatpush1.bf16.msra.mxu0 %v2120
  %2831 = vmatprep.subr.bf16.mxu0 %v2125
  %2832 = vmatpush1.bf16.msra.mxu0 %v2124
  %2833 = vmatprep.subr.bf16.mxu0 %v2129
  %2834 = vmatpush1.bf16.msra.mxu0 %v2128
  %2835 = vmatprep.subr.bf16.mxu0 %v2133
  %2836 = vmatpush1.bf16.msra.mxu0 %v2132
  %2837 = vmatprep.subr.bf16.mxu0 %v2137
  %2838 = vmatpush1.bf16.msra.mxu0 %v2136
  %2839 = vmatprep.subr.bf16.mxu0 %v2141
  %2840 = vmatpush1.bf16.msra.mxu0 %v2140
  %2841 = vmatprep.subr.bf16.mxu0 %v2145
  %2842 = vmatpush1.bf16.msra.mxu0 %v2144
  %2843 = vmatprep.subr.bf16.mxu0 %v2149
  %2844 = vmatpush1.bf16.msra.mxu0 %v2148
  %2845 = vmatprep.subr.bf16.mxu0 %v2153
  %2846 = vmatpush1.bf16.msra.mxu0 %v2152
  %2847 = vmatprep.subr.bf16.mxu0 %v2157
  %2848 = vmatpush1.bf16.msra.mxu0 %v2156
  %2849 = vmatprep.subr.bf16.mxu0 %v2161
  %2850 = vmatpush1.bf16.msra.mxu0 %v2160
  %2851 = vmatprep.subr.bf16.mxu0 %v2165
  %2852 = vmatpush1.bf16.msra.mxu0 %v2164
  %2853 = vmatprep.mubr.bf16.mxu0 %v521
  %2854 = vmatmul.mubr.bf16.gmra.mrb[0].mxu0 %v520
  %v2855 = vpop.f32.mrb[0].mxu0
  %v2856 = vadd.f32 %v2815, %v2855
  %v2857 = vpop.f32.mrb[0].mxu0
  %v2858 = vadd.f32 %v2817, %v2857
  %v2859 = vpop.f32.mrb[0].mxu0
  %v2860 = vpop.f32.mrb[0].mxu0
  %2861 = vdwg.mxu0
  %2862 = vmatprep.subr.bf16.mxu0 %v2169
  %2863 = vmatpush1.bf16.msra.mxu0 %v2168
  %2864 = vmatprep.subr.bf16.mxu0 %v2173
  %2865 = vmatpush1.bf16.msra.mxu0 %v2172
  %2866 = vmatprep.subr.bf16.mxu0 %v2177
  %2867 = vmatpush1.bf16.msra.mxu0 %v2176
  %2868 = vmatprep.subr.bf16.mxu0 %v2181
  %2869 = vmatpush1.bf16.msra.mxu0 %v2180
  %2870 = vmatprep.subr.bf16.mxu0 %v2185
  %2871 = vmatpush1.bf16.msra.mxu0 %v2184
  %2872 = vmatprep.subr.bf16.mxu0 %v2189
  %2873 = vmatpush1.bf16.msra.mxu0 %v2188
  %2874 = vmatprep.subr.bf16.mxu0 %v2193
  %2875 = vmatpush1.bf16.msra.mxu0 %v2192
  %2876 = vmatprep.subr.bf16.mxu0 %v2197
  %2877 = vmatpush1.bf16.msra.mxu0 %v2196
  %2878 = vmatprep.subr.bf16.mxu0 0
  %2879 = vmatpush1.bf16.msra.mxu0 0
  %2880 = vmatprep.subr.bf16.mxu0 0
  %2881 = vmatpush1.bf16.msra.mxu0 0
  %2882 = vmatprep.subr.bf16.mxu0 0
  %2883 = vmatpush1.bf16.msra.mxu0 0
  %2884 = vmatprep.subr.bf16.mxu0 0
  %2885 = vmatpush1.bf16.msra.mxu0 0
  %2886 = vmatprep.subr.bf16.mxu0 0
  %2887 = vmatpush1.bf16.msra.mxu0 0
  %2888 = vmatprep.subr.bf16.mxu0 0
  %2889 = vmatpush1.bf16.msra.mxu0 0
  %2890 = vmatprep.subr.bf16.mxu0 0
  %2891 = vmatpush1.bf16.msra.mxu0 0
  %2892 = vmatprep.subr.bf16.mxu0 0
  %2893 = vmatpush1.bf16.msra.mxu0 0
  %2894 = vmatprep.mubr.bf16.mxu0 0
  %2895 = vmatmul.mubr.bf16.gmra.mrb[0].mxu0 %v522
  %v2896 = vpop.f32.mrb[0].mxu0
  %v2897 = vadd.f32 %v2856, %v2896
  %v2898 = vpop.f32.mrb[0].mxu0
  %v2899 = vadd.f32 %v2858, %v2898
  %v2900 = vpop.f32.mrb[0].mxu0
  %v2901 = vpop.f32.mrb[0].mxu0
  %2902 = vdwg.mxu0
  %2903 = vmatprep.subr.bf16.mxu0 %v1787
  %2904 = vmatpush1.bf16.msra.mxu0 %v1786
  %2905 = vmatprep.subr.bf16.mxu0 %v1791
  %2906 = vmatpush1.bf16.msra.mxu0 %v1790
  %2907 = vmatprep.subr.bf16.mxu0 %v1795
  %2908 = vmatpush1.bf16.msra.mxu0 %v1794
  %2909 = vmatprep.subr.bf16.mxu0 %v1799
  %2910 = vmatpush1.bf16.msra.mxu0 %v1798
  %2911 = vmatprep.subr.bf16.mxu0 %v1803
  %2912 = vmatpush1.bf16.msra.mxu0 %v1802
  %2913 = vmatprep.subr.bf16.mxu0 %v1807
  %2914 = vmatpush1.bf16.msra.mxu0 %v1806
  %2915 = vmatprep.subr.bf16.mxu0 %v1811
  %2916 = vmatpush1.bf16.msra.mxu0 %v1810
  %2917 = vmatprep.subr.bf16.mxu0 %v1815
  %2918 = vmatpush1.bf16.msra.mxu0 %v1814
  %2919 = vmatprep.subr.bf16.mxu0 %v1819
  %2920 = vmatpush1.bf16.msra.mxu0 %v1818
  %2921 = vmatprep.subr.bf16.mxu0 %v1823
  %2922 = vmatpush1.bf16.msra.mxu0 %v1822
  %2923 = vmatprep.subr.bf16.mxu0 %v1827
  %2924 = vmatpush1.bf16.msra.mxu0 %v1826
  %2925 = vmatprep.subr.bf16.mxu0 %v1831
  %2926 = vmatpush1.bf16.msra.mxu0 %v1830
  %2927 = vmatprep.subr.bf16.mxu0 %v1835
  %2928 = vmatpush1.bf16.msra.mxu0 %v1834
  %2929 = vmatprep.subr.bf16.mxu0 %v1839
  %2930 = vmatpush1.bf16.msra.mxu0 %v1838
  %2931 = vmatprep.subr.bf16.mxu0 %v1843
  %2932 = vmatpush1.bf16.msra.mxu0 %v1842
  %2933 = vmatprep.subr.bf16.mxu0 %v1847
  %2934 = vmatpush1.bf16.msra.mxu0 %v1846
  %2935 = vmatprep.mubr.bf16.mxu0 %v511
  %2936 = vmatmul.mubr.bf16.gmra.mrb[0].mxu0 %v510
  %v2937 = vpop.f32.mrb[0].mxu0
  %v2938 = vadd.f32 %v481, %v2937
  %v2939 = vpop.f32.mrb[0].mxu0
  %v2940 = vadd.f32 %v485, %v2939
  %v2941 = vpop.f32.mrb[0].mxu0
  %v2942 = vpop.f32.mrb[0].mxu0
  %2943 = vdwg.mxu0
  %2944 = vmatprep.subr.bf16.mxu0 %v1851
  %2945 = vmatpush1.bf16.msra.mxu0 %v1850
  %2946 = vmatprep.subr.bf16.mxu0 %v1855
  %2947 = vmatpush1.bf16.msra.mxu0 %v1854
  %2948 = vmatprep.subr.bf16.mxu0 %v1859
  %2949 = vmatpush1.bf16.msra.mxu0 %v1858
  %2950 = vmatprep.subr.bf16.mxu0 %v1863
  %2951 = vmatpush1.bf16.msra.mxu0 %v1862
  %2952 = vmatprep.subr.bf16.mxu0 %v1867
  %2953 = vmatpush1.bf16.msra.mxu0 %v1866
  %2954 = vmatprep.subr.bf16.mxu0 %v1871
  %2955 = vmatpush1.bf16.msra.mxu0 %v1870
  %2956 = vmatprep.subr.bf16.mxu0 %v1875
  %2957 = vmatpush1.bf16.msra.mxu0 %v1874
  %2958 = vmatprep.subr.bf16.mxu0 %v1879
  %2959 = vmatpush1.bf16.msra.mxu0 %v1878
  %2960 = vmatprep.subr.bf16.mxu0 %v1883
  %2961 = vmatpush1.bf16.msra.mxu0 %v1882
  %2962 = vmatprep.subr.bf16.mxu0 %v1887
  %2963 = vmatpush1.bf16.msra.mxu0 %v1886
  %2964 = vmatprep.subr.bf16.mxu0 %v1891
  %2965 = vmatpush1.bf16.msra.mxu0 %v1890
  %2966 = vmatprep.subr.bf16.mxu0 %v1895
  %2967 = vmatpush1.bf16.msra.mxu0 %v1894
  %2968 = vmatprep.subr.bf16.mxu0 %v1899
  %2969 = vmatpush1.bf16.msra.mxu0 %v1898
  %2970 = vmatprep.subr.bf16.mxu0 %v1903
  %2971 = vmatpush1.bf16.msra.mxu0 %v1902
  %2972 = vmatprep.subr.bf16.mxu0 %v1907
  %2973 = vmatpush1.bf16.msra.mxu0 %v1906
  %2974 = vmatprep.subr.bf16.mxu0 %v1911
  %2975 = vmatpush1.bf16.msra.mxu0 %v1910
  %2976 = vmatprep.mubr.bf16.mxu0 %v513
  %2977 = vmatmul.mubr.bf16.gmra.mrb[0].mxu0 %v512
  %v2978 = vpop.f32.mrb[0].mxu0
  %v2979 = vadd.f32 %v2938, %v2978
  %v2980 = vpop.f32.mrb[0].mxu0
  %v2981 = vadd.f32 %v2940, %v2980
  %v2982 = vpop.f32.mrb[0].mxu0
  %v2983 = vpop.f32.mrb[0].mxu0
  %2984 = vdwg.mxu0
  %2985 = vmatprep.subr.bf16.mxu0 %v1915
  %2986 = vmatpush1.bf16.msra.mxu0 %v1914
  %2987 = vmatprep.subr.bf16.mxu0 %v1919
  %2988 = vmatpush1.bf16.msra.mxu0 %v1918
  %2989 = vmatprep.subr.bf16.mxu0 %v1923
  %2990 = vmatpush1.bf16.msra.mxu0 %v1922
  %2991 = vmatprep.subr.bf16.mxu0 %v1927
  %2992 = vmatpush1.bf16.msra.mxu0 %v1926
  %2993 = vmatprep.subr.bf16.mxu0 %v1931
  %2994 = vmatpush1.bf16.msra.mxu0 %v1930
  %2995 = vmatprep.subr.bf16.mxu0 %v1935
  %2996 = vmatpush1.bf16.msra.mxu0 %v1934
  %2997 = vmatprep.subr.bf16.mxu0 %v1939
  %2998 = vmatpush1.bf16.msra.mxu0 %v1938
  %2999 = vmatprep.subr.bf16.mxu0 %v1943
  %3000 = vmatpush1.bf16.msra.mxu0 %v1942
  %3001 = vmatprep.subr.bf16.mxu0 %v1947
  %3002 = vmatpush1.bf16.msra.mxu0 %v1946
  %3003 = vmatprep.subr.bf16.mxu0 %v1951
  %3004 = vmatpush1.bf16.msra.mxu0 %v1950
  %3005 = vmatprep.subr.bf16.mxu0 %v1955
  %3006 = vmatpush1.bf16.msra.mxu0 %v1954
  %3007 = vmatprep.subr.bf16.mxu0 %v1959
  %3008 = vmatpush1.bf16.msra.mxu0 %v1958
  %3009 = vmatprep.subr.bf16.mxu0 %v1963
  %3010 = vmatpush1.bf16.msra.mxu0 %v1962
  %3011 = vmatprep.subr.bf16.mxu0 %v1967
  %3012 = vmatpush1.bf16.msra.mxu0 %v1966
  %3013 = vmatprep.subr.bf16.mxu0 %v1971
  %3014 = vmatpush1.bf16.msra.mxu0 %v1970
  %3015 = vmatprep.subr.bf16.mxu0 %v1975
  %3016 = vmatpush1.bf16.msra.mxu0 %v1974
  %3017 = vmatprep.mubr.bf16.mxu0 %v515
  %3018 = vmatmul.mubr.bf16.gmra.mrb[0].mxu0 %v514
  %v3019 = vpop.f32.mrb[0].mxu0
  %v3020 = vadd.f32 %v2979, %v3019
  %v3021 = vpop.f32.mrb[0].mxu0
  %v3022 = vadd.f32 %v2981, %v3021
  %v3023 = vpop.f32.mrb[0].mxu0
  %v3024 = vpop.f32.mrb[0].mxu0
  %3025 = vdwg.mxu0
  %3026 = vmatprep.subr.bf16.mxu0 %v1979
  %3027 = vmatpush1.bf16.msra.mxu0 %v1978
  %3028 = vmatprep.subr.bf16.mxu0 %v1983
  %3029 = vmatpush1.bf16.msra.mxu0 %v1982
  %3030 = vmatprep.subr.bf16.mxu0 %v1987
  %3031 = vmatpush1.bf16.msra.mxu0 %v1986
  %3032 = vmatprep.subr.bf16.mxu0 %v1991
  %3033 = vmatpush1.bf16.msra.mxu0 %v1990
  %3034 = vmatprep.subr.bf16.mxu0 %v1995
  %3035 = vmatpush1.bf16.msra.mxu0 %v1994
  %3036 = vmatprep.subr.bf16.mxu0 %v1999
  %3037 = vmatpush1.bf16.msra.mxu0 %v1998
  %3038 = vmatprep.subr.bf16.mxu0 %v2003
  %3039 = vmatpush1.bf16.msra.mxu0 %v2002
  %3040 = vmatprep.subr.bf16.mxu0 %v2007
  %3041 = vmatpush1.bf16.msra.mxu0 %v2006
  %3042 = vmatprep.subr.bf16.mxu0 %v2011
  %3043 = vmatpush1.bf16.msra.mxu0 %v2010
  %3044 = vmatprep.subr.bf16.mxu0 %v2015
  %3045 = vmatpush1.bf16.msra.mxu0 %v2014
  %3046 = vmatprep.subr.bf16.mxu0 %v2019
  %3047 = vmatpush1.bf16.msra.mxu0 %v2018
  %3048 = vmatprep.subr.bf16.mxu0 %v2023
  %3049 = vmatpush1.bf16.msra.mxu0 %v2022
  %3050 = vmatprep.subr.bf16.mxu0 %v2027
  %3051 = vmatpush1.bf16.msra.mxu0 %v2026
  %3052 = vmatprep.subr.bf16.mxu0 %v2031
  %3053 = vmatpush1.bf16.msra.mxu0 %v2030
  %3054 = vmatprep.subr.bf16.mxu0 %v2035
  %3055 = vmatpush1.bf16.msra.mxu0 %v2034
  %3056 = vmatprep.subr.bf16.mxu0 %v2039
  %3057 = vmatpush1.bf16.msra.mxu0 %v2038
  %3058 = vmatprep.mubr.bf16.mxu0 %v517
  %3059 = vmatmul.mubr.bf16.gmra.mrb[0].mxu0 %v516
  %v3060 = vpop.f32.mrb[0].mxu0
  %v3061 = vadd.f32 %v3020, %v3060
  %v3062 = vpop.f32.mrb[0].mxu0
  %v3063 = vadd.f32 %v3022, %v3062
  %v3064 = vpop.f32.mrb[0].mxu0
  %v3065 = vpop.f32.mrb[0].mxu0
  %3066 = vdwg.mxu0
  %3067 = vmatprep.subr.bf16.mxu0 %v2043
  %3068 = vmatpush1.bf16.msra.mxu0 %v2042
  %3069 = vmatprep.subr.bf16.mxu0 %v2047
  %3070 = vmatpush1.bf16.msra.mxu0 %v2046
  %3071 = vmatprep.subr.bf16.mxu0 %v2051
  %3072 = vmatpush1.bf16.msra.mxu0 %v2050
  %3073 = vmatprep.subr.bf16.mxu0 %v2055
  %3074 = vmatpush1.bf16.msra.mxu0 %v2054
  %3075 = vmatprep.subr.bf16.mxu0 %v2059
  %3076 = vmatpush1.bf16.msra.mxu0 %v2058
  %3077 = vmatprep.subr.bf16.mxu0 %v2063
  %3078 = vmatpush1.bf16.msra.mxu0 %v2062
  %3079 = vmatprep.subr.bf16.mxu0 %v2067
  %3080 = vmatpush1.bf16.msra.mxu0 %v2066
  %3081 = vmatprep.subr.bf16.mxu0 %v2071
  %3082 = vmatpush1.bf16.msra.mxu0 %v2070
  %3083 = vmatprep.subr.bf16.mxu0 %v2075
  %3084 = vmatpush1.bf16.msra.mxu0 %v2074
  %3085 = vmatprep.subr.bf16.mxu0 %v2079
  %3086 = vmatpush1.bf16.msra.mxu0 %v2078
  %3087 = vmatprep.subr.bf16.mxu0 %v2083
  %3088 = vmatpush1.bf16.msra.mxu0 %v2082
  %3089 = vmatprep.subr.bf16.mxu0 %v2087
  %3090 = vmatpush1.bf16.msra.mxu0 %v2086
  %3091 = vmatprep.subr.bf16.mxu0 %v2091
  %3092 = vmatpush1.bf16.msra.mxu0 %v2090
  %3093 = vmatprep.subr.bf16.mxu0 %v2095
  %3094 = vmatpush1.bf16.msra.mxu0 %v2094
  %3095 = vmatprep.subr.bf16.mxu0 %v2099
  %3096 = vmatpush1.bf16.msra.mxu0 %v2098
  %3097 = vmatprep.subr.bf16.mxu0 %v2103
  %3098 = vmatpush1.bf16.msra.mxu0 %v2102
  %3099 = vmatprep.mubr.bf16.mxu0 %v519
  %3100 = vmatmul.mubr.bf16.gmra.mrb[0].mxu0 %v518
  %v3101 = vpop.f32.mrb[0].mxu0
  %v3102 = vadd.f32 %v3061, %v3101
  %v3103 = vpop.f32.mrb[0].mxu0
  %v3104 = vadd.f32 %v3063, %v3103
  %v3105 = vpop.f32.mrb[0].mxu0
  %v3106 = vpop.f32.mrb[0].mxu0
  %3107 = vdwg.mxu0
  %3108 = vmatprep.subr.bf16.mxu0 %v2107
  %3109 = vmatpush1.bf16.msra.mxu0 %v2106
  %3110 = vmatprep.subr.bf16.mxu0 %v2111
  %3111 = vmatpush1.bf16.msra.mxu0 %v2110
  %3112 = vmatprep.subr.bf16.mxu0 %v2115
  %3113 = vmatpush1.bf16.msra.mxu0 %v2114
  %3114 = vmatprep.subr.bf16.mxu0 %v2119
  %3115 = vmatpush1.bf16.msra.mxu0 %v2118
  %3116 = vmatprep.subr.bf16.mxu0 %v2123
  %3117 = vmatpush1.bf16.msra.mxu0 %v2122
  %3118 = vmatprep.subr.bf16.mxu0 %v2127
  %3119 = vmatpush1.bf16.msra.mxu0 %v2126
  %3120 = vmatprep.subr.bf16.mxu0 %v2131
  %3121 = vmatpush1.bf16.msra.mxu0 %v2130
  %3122 = vmatprep.subr.bf16.mxu0 %v2135
  %3123 = vmatpush1.bf16.msra.mxu0 %v2134
  %3124 = vmatprep.subr.bf16.mxu0 %v2139
  %3125 = vmatpush1.bf16.msra.mxu0 %v2138
  %3126 = vmatprep.subr.bf16.mxu0 %v2143
  %3127 = vmatpush1.bf16.msra.mxu0 %v2142
  %3128 = vmatprep.subr.bf16.mxu0 %v2147
  %3129 = vmatpush1.bf16.msra.mxu0 %v2146
  %3130 = vmatprep.subr.bf16.mxu0 %v2151
  %3131 = vmatpush1.bf16.msra.mxu0 %v2150
  %3132 = vmatprep.subr.bf16.mxu0 %v2155
  %3133 = vmatpush1.bf16.msra.mxu0 %v2154
  %3134 = vmatprep.subr.bf16.mxu0 %v2159
  %3135 = vmatpush1.bf16.msra.mxu0 %v2158
  %3136 = vmatprep.subr.bf16.mxu0 %v2163
  %3137 = vmatpush1.bf16.msra.mxu0 %v2162
  %3138 = vmatprep.subr.bf16.mxu0 %v2167
  %3139 = vmatpush1.bf16.msra.mxu0 %v2166
  %3140 = vmatprep.mubr.bf16.mxu0 %v521
  %3141 = vmatmul.mubr.bf16.gmra.mrb[0].mxu0 %v520
  %v3142 = vpop.f32.mrb[0].mxu0
  %v3143 = vadd.f32 %v3102, %v3142
  %v3144 = vpop.f32.mrb[0].mxu0
  %v3145 = vadd.f32 %v3104, %v3144
  %v3146 = vpop.f32.mrb[0].mxu0
  %v3147 = vpop.f32.mrb[0].mxu0
  %3148 = vdwg.mxu0
  %3149 = vmatprep.subr.bf16.mxu0 %v2171
  %3150 = vmatpush1.bf16.msra.mxu0 %v2170
  %3151 = vmatprep.subr.bf16.mxu0 %v2175
  %3152 = vmatpush1.bf16.msra.mxu0 %v2174
  %3153 = vmatprep.subr.bf16.mxu0 %v2179
  %3154 = vmatpush1.bf16.msra.mxu0 %v2178
  %3155 = vmatprep.subr.bf16.mxu0 %v2183
  %3156 = vmatpush1.bf16.msra.mxu0 %v2182
  %3157 = vmatprep.subr.bf16.mxu0 %v2187
  %3158 = vmatpush1.bf16.msra.mxu0 %v2186
  %3159 = vmatprep.subr.bf16.mxu0 %v2191
  %3160 = vmatpush1.bf16.msra.mxu0 %v2190
  %3161 = vmatprep.subr.bf16.mxu0 %v2195
  %3162 = vmatpush1.bf16.msra.mxu0 %v2194
  %3163 = vmatprep.subr.bf16.mxu0 %v2199
  %3164 = vmatpush1.bf16.msra.mxu0 %v2198
  %3165 = vmatprep.subr.bf16.mxu0 0
  %3166 = vmatpush1.bf16.msra.mxu0 0
  %3167 = vmatprep.subr.bf16.mxu0 0
  %3168 = vmatpush1.bf16.msra.mxu0 0
  %3169 = vmatprep.subr.bf16.mxu0 0
  %3170 = vmatpush1.bf16.msra.mxu0 0
  %3171 = vmatprep.subr.bf16.mxu0 0
  %3172 = vmatpush1.bf16.msra.mxu0 0
  %3173 = vmatprep.subr.bf16.mxu0 0
  %3174 = vmatpush1.bf16.msra.mxu0 0
  %3175 = vmatprep.subr.bf16.mxu0 0
  %3176 = vmatpush1.bf16.msra.mxu0 0
  %3177 = vmatprep.subr.bf16.mxu0 0
  %3178 = vmatpush1.bf16.msra.mxu0 0
  %3179 = vmatprep.subr.bf16.mxu0 0
  %3180 = vmatpush1.bf16.msra.mxu0 0
  %3181 = vmatprep.mubr.bf16.mxu0 0
  %3182 = vmatmul.mubr.bf16.gmra.mrb[0].mxu0 %v522
  %v3183 = vpop.f32.mrb[0].mxu0
  %v3184 = vadd.f32 %v3143, %v3183
  %v3185 = vpop.f32.mrb[0].mxu0
  %v3186 = vadd.f32 %v3145, %v3185
  %v3187 = vpop.f32.mrb[0].mxu0
  %v3188 = vpop.f32.mrb[0].mxu0
  %3189 = vdwg.mxu0
  %v3190 = vmax.f32 %v2897, 0.0
  %v3191 = vmax.f32 %v2899, 0.0
  %v3192 = vmax.f32 %v3184, 0.0
  %v3193 = vmax.f32 %v3186, 0.0
  %v3194 = vpack.c.bf16 %v3190, %v3190
  %v3195 = vpack.c.bf16 %v3191, %v3191
  %v3196 = vpack.c.bf16 %v3192, %v3192
  %v3197 = vpack.c.bf16 %v3193, %v3193
  %v3198 = vld [vmem:[%s3] sm:$0xff]
  %v3199 = vld [vmem:[%s3 + $0x8] sm:$0xff]
  %v3200 = vld [vmem:[%s3 + $0x10] sm:$0xff]
  %v3201 = vld [vmem:[%s3 + $0x18] sm:$0xff]
  %v3202 = vld [vmem:[%s3 + $0x20] sm:$0xff]
  %v3203 = vld [vmem:[%s3 + $0x28] sm:$0xff]
  %v3204 = vld [vmem:[%s3 + $0x30] sm:$0xff]
  %v3205 = vld [vmem:[%s3 + $0x38] sm:$0xff]
  %v3206 = vld [vmem:[%s3 + $0x40] sm:$0xff]
  %v3207 = vld [vmem:[%s3 + $0x48] sm:$0xff]
  %v3208 = vld [vmem:[%s3 + $0x50] sm:$0xff]
  %v3209 = vld [vmem:[%s3 + $0x58] sm:$0xff]
  %v3210 = vld [vmem:[%s3 + $0x60] sm:$0xff]
  %v3211 = vld [vmem:[%s3 + $0x68] sm:$0xff]
  %v3212 = vld [vmem:[%s3 + $0x70] sm:$0xff]
  %v3213 = vld [vmem:[%s3 + $0x78] sm:$0xff]
  %v3214 = vld [vmem:[%s3 + $0x80] sm:$0xff]
  %v3215 = vld [vmem:[%s3 + $0x88] sm:$0xff]
  %v3216 = vld [vmem:[%s3 + $0x90] sm:$0xff]
  %v3217 = vld [vmem:[%s3 + $0x98] sm:$0xff]
  %v3218 = vld [vmem:[%s3 + $0xa0] sm:$0xff]
  %v3219 = vld [vmem:[%s3 + $0xa8] sm:$0xff]
  %v3220 = vld [vmem:[%s3 + $0xb0] sm:$0xff]
  %v3221 = vld [vmem:[%s3 + $0xb8] sm:$0xff]
  %v3222 = vld [vmem:[%s3 + $0xc0] sm:$0xff]
  %v3223 = vld [vmem:[%s3 + $0xc8] sm:$0xff]
  %v3224 = vld [vmem:[%s3 + $0xd0] sm:$0xff]
  %v3225 = vld [vmem:[%s3 + $0xd8] sm:$0xff]
  %v3226 = vld [vmem:[%s3 + $0xe0] sm:$0xff]
  %v3227 = vld [vmem:[%s3 + $0xe8] sm:$0xff]
  %v3228 = vld [vmem:[%s3 + $0xf0] sm:$0xff]
  %v3229 = vld [vmem:[%s3 + $0xf8] sm:$0xff]
  %v3230 = vld [vmem:[%s3 + $0x100] sm:$0xff]
  %v3231 = vld [vmem:[%s3 + $0x108] sm:$0xff]
  %v3232 = vld [vmem:[%s3 + $0x110] sm:$0xff]
  %v3233 = vld [vmem:[%s3 + $0x118] sm:$0xff]
  %v3234 = vld [vmem:[%s3 + $0x120] sm:$0xff]
  %v3235 = vld [vmem:[%s3 + $0x128] sm:$0xff]
  %v3236 = vld [vmem:[%s3 + $0x130] sm:$0xff]
  %v3237 = vld [vmem:[%s3 + $0x138] sm:$0xff]
  %v3238 = vld [vmem:[%s3 + $0x140] sm:$0xff]
  %v3239 = vld [vmem:[%s3 + $0x148] sm:$0xff]
  %v3240 = vld [vmem:[%s3 + $0x150] sm:$0xff]
  %v3241 = vld [vmem:[%s3 + $0x158] sm:$0xff]
  %v3242 = vld [vmem:[%s3 + $0x160] sm:$0xff]
  %v3243 = vld [vmem:[%s3 + $0x168] sm:$0xff]
  %v3244 = vld [vmem:[%s3 + $0x170] sm:$0xff]
  %v3245 = vld [vmem:[%s3 + $0x178] sm:$0xff]
  %v3246 = vld [vmem:[%s3 + $0x180] sm:$0xff]
  %v3247 = vld [vmem:[%s3 + $0x188] sm:$0xff]
  %v3248 = vld [vmem:[%s3 + $0x190] sm:$0xff]
  %v3249 = vld [vmem:[%s3 + $0x198] sm:$0xff]
  %v3250 = vld [vmem:[%s3 + $0x1a0] sm:$0xff]
  %v3251 = vld [vmem:[%s3 + $0x1a8] sm:$0xff]
  %v3252 = vld [vmem:[%s3 + $0x1b0] sm:$0xff]
  %v3253 = vld [vmem:[%s3 + $0x1b8] sm:$0xff]
  %v3254 = vld [vmem:[%s3 + $0x1c0] sm:$0xff]
  %v3255 = vld [vmem:[%s3 + $0x1c8] sm:$0xff]
  %v3256 = vld [vmem:[%s3 + $0x1d0] sm:$0xff]
  %v3257 = vld [vmem:[%s3 + $0x1d8] sm:$0xff]
  %v3258 = vld [vmem:[%s3 + $0x1e0] sm:$0xff]
  %v3259 = vld [vmem:[%s3 + $0x1e8] sm:$0xff]
  %v3260 = vld [vmem:[%s3 + $0x1f0] sm:$0xff]
  %v3261 = vld [vmem:[%s3 + $0x1f8] sm:$0xff]
  %v3262 = vld [vmem:[%s3 + $0x200] sm:$0xff]
  %v3263 = vld [vmem:[%s3 + $0x208] sm:$0xff]
  %v3264 = vld [vmem:[%s3 + $0x210] sm:$0xff]
  %v3265 = vld [vmem:[%s3 + $0x218] sm:$0xff]
  %v3266 = vld [vmem:[%s3 + $0x220] sm:$0xff]
  %v3267 = vld [vmem:[%s3 + $0x228] sm:$0xff]
  %v3268 = vld [vmem:[%s3 + $0x230] sm:$0xff]
  %v3269 = vld [vmem:[%s3 + $0x238] sm:$0xff]
  %v3270 = vld [vmem:[%s3 + $0x240] sm:$0xff]
  %v3271 = vld [vmem:[%s3 + $0x248] sm:$0xff]
  %v3272 = vld [vmem:[%s3 + $0x250] sm:$0xff]
  %v3273 = vld [vmem:[%s3 + $0x258] sm:$0xff]
  %v3274 = vld [vmem:[%s3 + $0x260] sm:$0xff]
  %v3275 = vld [vmem:[%s3 + $0x268] sm:$0xff]
  %v3276 = vld [vmem:[%s3 + $0x270] sm:$0xff]
  %v3277 = vld [vmem:[%s3 + $0x278] sm:$0xff]
  %v3278 = vld [vmem:[%s3 + $0x280] sm:$0xff]
  %v3279 = vld [vmem:[%s3 + $0x288] sm:$0xff]
  %v3280 = vld [vmem:[%s3 + $0x290] sm:$0xff]
  %v3281 = vld [vmem:[%s3 + $0x298] sm:$0xff]
  %v3282 = vld [vmem:[%s3 + $0x2a0] sm:$0xff]
  %v3283 = vld [vmem:[%s3 + $0x2a8] sm:$0xff]
  %v3284 = vld [vmem:[%s3 + $0x2b0] sm:$0xff]
  %v3285 = vld [vmem:[%s3 + $0x2b8] sm:$0xff]
  %v3286 = vld [vmem:[%s3 + $0x2c0] sm:$0xff]
  %v3287 = vld [vmem:[%s3 + $0x2c8] sm:$0xff]
  %v3288 = vld [vmem:[%s3 + $0x2d0] sm:$0xff]
  %v3289 = vld [vmem:[%s3 + $0x2d8] sm:$0xff]
  %v3290 = vld [vmem:[%s3 + $0x2e0] sm:$0xff]
  %v3291 = vld [vmem:[%s3 + $0x2e8] sm:$0xff]
  %v3292 = vld [vmem:[%s3 + $0x2f0] sm:$0xff]
  %v3293 = vld [vmem:[%s3 + $0x2f8] sm:$0xff]
  %v3294 = vld [vmem:[%s3 + $0x300] sm:$0xff]
  %v3295 = vld [vmem:[%s3 + $0x308] sm:$0xff]
  %v3296 = vld [vmem:[%s3 + $0x310] sm:$0xff]
  %v3297 = vld [vmem:[%s3 + $0x318] sm:$0xff]
  %v3298 = vld [vmem:[%s3 + $0x320] sm:$0xff]
  %v3299 = vld [vmem:[%s3 + $0x328] sm:$0xff]
  %v3300 = vld [vmem:[%s3 + $0x330] sm:$0xff]
  %v3301 = vld [vmem:[%s3 + $0x338] sm:$0xff]
  %v3302 = vld [vmem:[%s3 + $0x340] sm:$0xff]
  %v3303 = vld [vmem:[%s3 + $0x348] sm:$0xff]
  %v3304 = vld [vmem:[%s3 + $0x350] sm:$0xff]
  %v3305 = vld [vmem:[%s3 + $0x358] sm:$0xff]
  %v3306 = vld [vmem:[%s3 + $0x360] sm:$0xff]
  %v3307 = vld [vmem:[%s3 + $0x368] sm:$0xff]
  %v3308 = vld [vmem:[%s3 + $0x370] sm:$0xff]
  %v3309 = vld [vmem:[%s3 + $0x378] sm:$0xff]
  %v3310 = vld [vmem:[%s3 + $0x380] sm:$0xff]
  %v3311 = vld [vmem:[%s3 + $0x388] sm:$0xff]
  %v3312 = vld [vmem:[%s3 + $0x390] sm:$0xff]
  %v3313 = vld [vmem:[%s3 + $0x398] sm:$0xff]
  %v3314 = vld [vmem:[%s3 + $0x3a0] sm:$0xff]
  %v3315 = vld [vmem:[%s3 + $0x3a8] sm:$0xff]
  %v3316 = vld [vmem:[%s3 + $0x3b0] sm:$0xff]
  %v3317 = vld [vmem:[%s3 + $0x3b8] sm:$0xff]
  %v3318 = vld [vmem:[%s3 + $0x3c0] sm:$0xff]
  %v3319 = vld [vmem:[%s3 + $0x3c8] sm:$0xff]
  %v3320 = vld [vmem:[%s3 + $0x3d0] sm:$0xff]
  %v3321 = vld [vmem:[%s3 + $0x3d8] sm:$0xff]
  %v3322 = vld [vmem:[%s3 + $0x3e0] sm:$0xff]
  %v3323 = vld [vmem:[%s3 + $0x3e8] sm:$0xff]
  %v3324 = vld [vmem:[%s3 + $0x3f0] sm:$0xff]
  %v3325 = vld [vmem:[%s3 + $0x3f8] sm:$0xff]
  %v3326 = vld [vmem:[%s4] sm:$0xf]
  %v3328 = vlaneseq
  %v3329 = vshrl.u32 %v3328, 7
  %v3330 = vsub.s32 0, %v3329
  %v3331 = vrot.slane %v3326, %v3330
  %v3332 = vlaneseq
  %v3333 = vshrl.u32 %v3332, 7
  %v3334 = vsub.s32 1, %v3333
  %v3335 = vrot.slane %v3326, %v3334
  %v3336 = vlaneseq
  %v3337 = vshrl.u32 %v3336, 7
  %v3338 = vsub.s32 2, %v3337
  %v3339 = vrot.slane %v3326, %v3338
  %v3340 = vlaneseq
  %v3341 = vshrl.u32 %v3340, 7
  %v3342 = vsub.s32 3, %v3341
  %v3343 = vrot.slane %v3326, %v3342
  %v3476 = vunpack.c.l.b16 %v3198
  %v3477 = vunpack.c.h.b16 %v3198
  %v3478 = vunpack.c.l.b16 %v3199
  %v3479 = vunpack.c.h.b16 %v3199
  %v3480 = vunpack.c.l.b16 %v3200
  %v3481 = vunpack.c.h.b16 %v3200
  %v3482 = vunpack.c.l.b16 %v3201
  %v3483 = vunpack.c.h.b16 %v3201
  %v3484 = vunpack.c.l.b16 %v3202
  %v3485 = vunpack.c.h.b16 %v3202
  %v3486 = vunpack.c.l.b16 %v3203
  %v3487 = vunpack.c.h.b16 %v3203
  %v3488 = vunpack.c.l.b16 %v3204
  %v3489 = vunpack.c.h.b16 %v3204
  %v3490 = vunpack.c.l.b16 %v3205
  %v3491 = vunpack.c.h.b16 %v3205
  %v3492 = vunpack.c.l.b16 %v3206
  %v3493 = vunpack.c.h.b16 %v3206
  %v3494 = vunpack.c.l.b16 %v3207
  %v3495 = vunpack.c.h.b16 %v3207
  %v3496 = vunpack.c.l.b16 %v3208
  %v3497 = vunpack.c.h.b16 %v3208
  %v3498 = vunpack.c.l.b16 %v3209
  %v3499 = vunpack.c.h.b16 %v3209
  %v3500 = vunpack.c.l.b16 %v3210
  %v3501 = vunpack.c.h.b16 %v3210
  %v3502 = vunpack.c.l.b16 %v3211
  %v3503 = vunpack.c.h.b16 %v3211
  %v3504 = vunpack.c.l.b16 %v3212
  %v3505 = vunpack.c.h.b16 %v3212
  %v3506 = vunpack.c.l.b16 %v3213
  %v3507 = vunpack.c.h.b16 %v3213
  %v3508 = vunpack.c.l.b16 %v3214
  %v3509 = vunpack.c.h.b16 %v3214
  %v3510 = vunpack.c.l.b16 %v3215
  %v3511 = vunpack.c.h.b16 %v3215
  %v3512 = vunpack.c.l.b16 %v3216
  %v3513 = vunpack.c.h.b16 %v3216
  %v3514 = vunpack.c.l.b16 %v3217
  %v3515 = vunpack.c.h.b16 %v3217
  %v3516 = vunpack.c.l.b16 %v3218
  %v3517 = vunpack.c.h.b16 %v3218
  %v3518 = vunpack.c.l.b16 %v3219
  %v3519 = vunpack.c.h.b16 %v3219
  %v3520 = vunpack.c.l.b16 %v3220
  %v3521 = vunpack.c.h.b16 %v3220
  %v3522 = vunpack.c.l.b16 %v3221
  %v3523 = vunpack.c.h.b16 %v3221
  %v3524 = vunpack.c.l.b16 %v3222
  %v3525 = vunpack.c.h.b16 %v3222
  %v3526 = vunpack.c.l.b16 %v3223
  %v3527 = vunpack.c.h.b16 %v3223
  %v3528 = vunpack.c.l.b16 %v3224
  %v3529 = vunpack.c.h.b16 %v3224
  %v3530 = vunpack.c.l.b16 %v3225
  %v3531 = vunpack.c.h.b16 %v3225
  %v3532 = vunpack.c.l.b16 %v3226
  %v3533 = vunpack.c.h.b16 %v3226
  %v3534 = vunpack.c.l.b16 %v3227
  %v3535 = vunpack.c.h.b16 %v3227
  %v3536 = vunpack.c.l.b16 %v3228
  %v3537 = vunpack.c.h.b16 %v3228
  %v3538 = vunpack.c.l.b16 %v3229
  %v3539 = vunpack.c.h.b16 %v3229
  %v3540 = vunpack.c.l.b16 %v3230
  %v3541 = vunpack.c.h.b16 %v3230
  %v3542 = vunpack.c.l.b16 %v3231
  %v3543 = vunpack.c.h.b16 %v3231
  %v3544 = vunpack.c.l.b16 %v3232
  %v3545 = vunpack.c.h.b16 %v3232
  %v3546 = vunpack.c.l.b16 %v3233
  %v3547 = vunpack.c.h.b16 %v3233
  %v3548 = vunpack.c.l.b16 %v3234
  %v3549 = vunpack.c.h.b16 %v3234
  %v3550 = vunpack.c.l.b16 %v3235
  %v3551 = vunpack.c.h.b16 %v3235
  %v3552 = vunpack.c.l.b16 %v3236
  %v3553 = vunpack.c.h.b16 %v3236
  %v3554 = vunpack.c.l.b16 %v3237
  %v3555 = vunpack.c.h.b16 %v3237
  %v3556 = vunpack.c.l.b16 %v3238
  %v3557 = vunpack.c.h.b16 %v3238
  %v3558 = vunpack.c.l.b16 %v3239
  %v3559 = vunpack.c.h.b16 %v3239
  %v3560 = vunpack.c.l.b16 %v3240
  %v3561 = vunpack.c.h.b16 %v3240
  %v3562 = vunpack.c.l.b16 %v3241
  %v3563 = vunpack.c.h.b16 %v3241
  %v3564 = vunpack.c.l.b16 %v3242
  %v3565 = vunpack.c.h.b16 %v3242
  %v3566 = vunpack.c.l.b16 %v3243
  %v3567 = vunpack.c.h.b16 %v3243
  %v3568 = vunpack.c.l.b16 %v3244
  %v3569 = vunpack.c.h.b16 %v3244
  %v3570 = vunpack.c.l.b16 %v3245
  %v3571 = vunpack.c.h.b16 %v3245
  %v3572 = vunpack.c.l.b16 %v3246
  %v3573 = vunpack.c.h.b16 %v3246
  %v3574 = vunpack.c.l.b16 %v3247
  %v3575 = vunpack.c.h.b16 %v3247
  %v3576 = vunpack.c.l.b16 %v3248
  %v3577 = vunpack.c.h.b16 %v3248
  %v3578 = vunpack.c.l.b16 %v3249
  %v3579 = vunpack.c.h.b16 %v3249
  %v3580 = vunpack.c.l.b16 %v3250
  %v3581 = vunpack.c.h.b16 %v3250
  %v3582 = vunpack.c.l.b16 %v3251
  %v3583 = vunpack.c.h.b16 %v3251
  %v3584 = vunpack.c.l.b16 %v3252
  %v3585 = vunpack.c.h.b16 %v3252
  %v3586 = vunpack.c.l.b16 %v3253
  %v3587 = vunpack.c.h.b16 %v3253
  %v3588 = vunpack.c.l.b16 %v3254
  %v3589 = vunpack.c.h.b16 %v3254
  %v3590 = vunpack.c.l.b16 %v3255
  %v3591 = vunpack.c.h.b16 %v3255
  %v3592 = vunpack.c.l.b16 %v3256
  %v3593 = vunpack.c.h.b16 %v3256
  %v3594 = vunpack.c.l.b16 %v3257
  %v3595 = vunpack.c.h.b16 %v3257
  %v3596 = vunpack.c.l.b16 %v3258
  %v3597 = vunpack.c.h.b16 %v3258
  %v3598 = vunpack.c.l.b16 %v3259
  %v3599 = vunpack.c.h.b16 %v3259
  %v3600 = vunpack.c.l.b16 %v3260
  %v3601 = vunpack.c.h.b16 %v3260
  %v3602 = vunpack.c.l.b16 %v3261
  %v3603 = vunpack.c.h.b16 %v3261
  %v3604 = vunpack.c.l.b16 %v3262
  %v3605 = vunpack.c.h.b16 %v3262
  %v3606 = vunpack.c.l.b16 %v3263
  %v3607 = vunpack.c.h.b16 %v3263
  %v3608 = vunpack.c.l.b16 %v3264
  %v3609 = vunpack.c.h.b16 %v3264
  %v3610 = vunpack.c.l.b16 %v3265
  %v3611 = vunpack.c.h.b16 %v3265
  %v3612 = vunpack.c.l.b16 %v3266
  %v3613 = vunpack.c.h.b16 %v3266
  %v3614 = vunpack.c.l.b16 %v3267
  %v3615 = vunpack.c.h.b16 %v3267
  %v3616 = vunpack.c.l.b16 %v3268
  %v3617 = vunpack.c.h.b16 %v3268
  %v3618 = vunpack.c.l.b16 %v3269
  %v3619 = vunpack.c.h.b16 %v3269
  %v3620 = vunpack.c.l.b16 %v3270
  %v3621 = vunpack.c.h.b16 %v3270
  %v3622 = vunpack.c.l.b16 %v3271
  %v3623 = vunpack.c.h.b16 %v3271
  %v3624 = vunpack.c.l.b16 %v3272
  %v3625 = vunpack.c.h.b16 %v3272
  %v3626 = vunpack.c.l.b16 %v3273
  %v3627 = vunpack.c.h.b16 %v3273
  %v3628 = vunpack.c.l.b16 %v3274
  %v3629 = vunpack.c.h.b16 %v3274
  %v3630 = vunpack.c.l.b16 %v3275
  %v3631 = vunpack.c.h.b16 %v3275
  %v3632 = vunpack.c.l.b16 %v3276
  %v3633 = vunpack.c.h.b16 %v3276
  %v3634 = vunpack.c.l.b16 %v3277
  %v3635 = vunpack.c.h.b16 %v3277
  %v3636 = vunpack.c.l.b16 %v3278
  %v3637 = vunpack.c.h.b16 %v3278
  %v3638 = vunpack.c.l.b16 %v3279
  %v3639 = vunpack.c.h.b16 %v3279
  %v3640 = vunpack.c.l.b16 %v3280
  %v3641 = vunpack.c.h.b16 %v3280
  %v3642 = vunpack.c.l.b16 %v3281
  %v3643 = vunpack.c.h.b16 %v3281
  %v3644 = vunpack.c.l.b16 %v3282
  %v3645 = vunpack.c.h.b16 %v3282
  %v3646 = vunpack.c.l.b16 %v3283
  %v3647 = vunpack.c.h.b16 %v3283
  %v3648 = vunpack.c.l.b16 %v3284
  %v3649 = vunpack.c.h.b16 %v3284
  %v3650 = vunpack.c.l.b16 %v3285
  %v3651 = vunpack.c.h.b16 %v3285
  %v3652 = vunpack.c.l.b16 %v3286
  %v3653 = vunpack.c.h.b16 %v3286
  %v3654 = vunpack.c.l.b16 %v3287
  %v3655 = vunpack.c.h.b16 %v3287
  %v3656 = vunpack.c.l.b16 %v3288
  %v3657 = vunpack.c.h.b16 %v3288
  %v3658 = vunpack.c.l.b16 %v3289
  %v3659 = vunpack.c.h.b16 %v3289
  %v3660 = vunpack.c.l.b16 %v3290
  %v3661 = vunpack.c.h.b16 %v3290
  %v3662 = vunpack.c.l.b16 %v3291
  %v3663 = vunpack.c.h.b16 %v3291
  %v3664 = vunpack.c.l.b16 %v3292
  %v3665 = vunpack.c.h.b16 %v3292
  %v3666 = vunpack.c.l.b16 %v3293
  %v3667 = vunpack.c.h.b16 %v3293
  %v3668 = vunpack.c.l.b16 %v3294
  %v3669 = vunpack.c.h.b16 %v3294
  %v3670 = vunpack.c.l.b16 %v3295
  %v3671 = vunpack.c.h.b16 %v3295
  %v3672 = vunpack.c.l.b16 %v3296
  %v3673 = vunpack.c.h.b16 %v3296
  %v3674 = vunpack.c.l.b16 %v3297
  %v3675 = vunpack.c.h.b16 %v3297
  %v3676 = vunpack.c.l.b16 %v3298
  %v3677 = vunpack.c.h.b16 %v3298
  %v3678 = vunpack.c.l.b16 %v3299
  %v3679 = vunpack.c.h.b16 %v3299
  %v3680 = vunpack.c.l.b16 %v3300
  %v3681 = vunpack.c.h.b16 %v3300
  %v3682 = vunpack.c.l.b16 %v3301
  %v3683 = vunpack.c.h.b16 %v3301
  %v3684 = vunpack.c.l.b16 %v3302
  %v3685 = vunpack.c.h.b16 %v3302
  %v3686 = vunpack.c.l.b16 %v3303
  %v3687 = vunpack.c.h.b16 %v3303
  %v3688 = vunpack.c.l.b16 %v3304
  %v3689 = vunpack.c.h.b16 %v3304
  %v3690 = vunpack.c.l.b16 %v3305
  %v3691 = vunpack.c.h.b16 %v3305
  %v3692 = vunpack.c.l.b16 %v3306
  %v3693 = vunpack.c.h.b16 %v3306
  %v3694 = vunpack.c.l.b16 %v3307
  %v3695 = vunpack.c.h.b16 %v3307
  %v3696 = vunpack.c.l.b16 %v3308
  %v3697 = vunpack.c.h.b16 %v3308
  %v3698 = vunpack.c.l.b16 %v3309
  %v3699 = vunpack.c.h.b16 %v3309
  %v3700 = vunpack.c.l.b16 %v3310
  %v3701 = vunpack.c.h.b16 %v3310
  %v3702 = vunpack.c.l.b16 %v3311
  %v3703 = vunpack.c.h.b16 %v3311
  %v3704 = vunpack.c.l.b16 %v3312
  %v3705 = vunpack.c.h.b16 %v3312
  %v3706 = vunpack.c.l.b16 %v3313
  %v3707 = vunpack.c.h.b16 %v3313
  %v3708 = vunpack.c.l.b16 %v3314
  %v3709 = vunpack.c.h.b16 %v3314
  %v3710 = vunpack.c.l.b16 %v3315
  %v3711 = vunpack.c.h.b16 %v3315
  %v3712 = vunpack.c.l.b16 %v3316
  %v3713 = vunpack.c.h.b16 %v3316
  %v3714 = vunpack.c.l.b16 %v3317
  %v3715 = vunpack.c.h.b16 %v3317
  %v3716 = vunpack.c.l.b16 %v3318
  %v3717 = vunpack.c.h.b16 %v3318
  %v3718 = vunpack.c.l.b16 %v3319
  %v3719 = vunpack.c.h.b16 %v3319
  %v3720 = vunpack.c.l.b16 %v3320
  %v3721 = vunpack.c.h.b16 %v3320
  %v3722 = vunpack.c.l.b16 %v3321
  %v3723 = vunpack.c.h.b16 %v3321
  %v3724 = vunpack.c.l.b16 %v3322
  %v3725 = vunpack.c.h.b16 %v3322
  %v3726 = vunpack.c.l.b16 %v3323
  %v3727 = vunpack.c.h.b16 %v3323
  %v3728 = vunpack.c.l.b16 %v3324
  %v3729 = vunpack.c.h.b16 %v3324
  %v3730 = vunpack.c.l.b16 %v3325
  %v3731 = vunpack.c.h.b16 %v3325
  %v3732 = vpack.c.b16 %v3480, %v3476
  %v3733 = vpack.c.b16 %v3481, %v3477
  %v3734 = vpack.c.b16 %v3482, %v3478
  %v3735 = vpack.c.b16 %v3483, %v3479
  %v3736 = vpack.c.b16 %v3488, %v3484
  %v3737 = vpack.c.b16 %v3489, %v3485
  %v3738 = vpack.c.b16 %v3490, %v3486
  %v3739 = vpack.c.b16 %v3491, %v3487
  %v3740 = vpack.c.b16 %v3496, %v3492
  %v3741 = vpack.c.b16 %v3497, %v3493
  %v3742 = vpack.c.b16 %v3498, %v3494
  %v3743 = vpack.c.b16 %v3499, %v3495
  %v3744 = vpack.c.b16 %v3504, %v3500
  %v3745 = vpack.c.b16 %v3505, %v3501
  %v3746 = vpack.c.b16 %v3506, %v3502
  %v3747 = vpack.c.b16 %v3507, %v3503
  %v3748 = vpack.c.b16 %v3512, %v3508
  %v3749 = vpack.c.b16 %v3513, %v3509
  %v3750 = vpack.c.b16 %v3514, %v3510
  %v3751 = vpack.c.b16 %v3515, %v3511
  %v3752 = vpack.c.b16 %v3520, %v3516
  %v3753 = vpack.c.b16 %v3521, %v3517
  %v3754 = vpack.c.b16 %v3522, %v3518
  %v3755 = vpack.c.b16 %v3523, %v3519
  %v3756 = vpack.c.b16 %v3528, %v3524
  %v3757 = vpack.c.b16 %v3529, %v3525
  %v3758 = vpack.c.b16 %v3530, %v3526
  %v3759 = vpack.c.b16 %v3531, %v3527
  %v3760 = vpack.c.b16 %v3536, %v3532
  %v3761 = vpack.c.b16 %v3537, %v3533
  %v3762 = vpack.c.b16 %v3538, %v3534
  %v3763 = vpack.c.b16 %v3539, %v3535
  %v3764 = vpack.c.b16 %v3544, %v3540
  %v3765 = vpack.c.b16 %v3545, %v3541
  %v3766 = vpack.c.b16 %v3546, %v3542
  %v3767 = vpack.c.b16 %v3547, %v3543
  %v3768 = vpack.c.b16 %v3552, %v3548
  %v3769 = vpack.c.b16 %v3553, %v3549
  %v3770 = vpack.c.b16 %v3554, %v3550
  %v3771 = vpack.c.b16 %v3555, %v3551
  %v3772 = vpack.c.b16 %v3560, %v3556
  %v3773 = vpack.c.b16 %v3561, %v3557
  %v3774 = vpack.c.b16 %v3562, %v3558
  %v3775 = vpack.c.b16 %v3563, %v3559
  %v3776 = vpack.c.b16 %v3568, %v3564
  %v3777 = vpack.c.b16 %v3569, %v3565
  %v3778 = vpack.c.b16 %v3570, %v3566
  %v3779 = vpack.c.b16 %v3571, %v3567
  %v3780 = vpack.c.b16 %v3576, %v3572
  %v3781 = vpack.c.b16 %v3577, %v3573
  %v3782 = vpack.c.b16 %v3578, %v3574
  %v3783 = vpack.c.b16 %v3579, %v3575
  %v3784 = vpack.c.b16 %v3584, %v3580
  %v3785 = vpack.c.b16 %v3585, %v3581
  %v3786 = vpack.c.b16 %v3586, %v3582
  %v3787 = vpack.c.b16 %v3587, %v3583
  %v3788 = vpack.c.b16 %v3592, %v3588
  %v3789 = vpack.c.b16 %v3593, %v3589
  %v3790 = vpack.c.b16 %v3594, %v3590
  %v3791 = vpack.c.b16 %v3595, %v3591
  %v3792 = vpack.c.b16 %v3600, %v3596
  %v3793 = vpack.c.b16 %v3601, %v3597
  %v3794 = vpack.c.b16 %v3602, %v3598
  %v3795 = vpack.c.b16 %v3603, %v3599
  %v3796 = vpack.c.b16 %v3608, %v3604
  %v3797 = vpack.c.b16 %v3609, %v3605
  %v3798 = vpack.c.b16 %v3610, %v3606
  %v3799 = vpack.c.b16 %v3611, %v3607
  %v3800 = vpack.c.b16 %v3616, %v3612
  %v3801 = vpack.c.b16 %v3617, %v3613
  %v3802 = vpack.c.b16 %v3618, %v3614
  %v3803 = vpack.c.b16 %v3619, %v3615
  %v3804 = vpack.c.b16 %v3624, %v3620
  %v3805 = vpack.c.b16 %v3625, %v3621
  %v3806 = vpack.c.b16 %v3626, %v3622
  %v3807 = vpack.c.b16 %v3627, %v3623
  %v3808 = vpack.c.b16 %v3632, %v3628
  %v3809 = vpack.c.b16 %v3633, %v3629
  %v3810 = vpack.c.b16 %v3634, %v3630
  %v3811 = vpack.c.b16 %v3635, %v3631
  %v3812 = vpack.c.b16 %v3640, %v3636
  %v3813 = vpack.c.b16 %v3641, %v3637
  %v3814 = vpack.c.b16 %v3642, %v3638
  %v3815 = vpack.c.b16 %v3643, %v3639
  %v3816 = vpack.c.b16 %v3648, %v3644
  %v3817 = vpack.c.b16 %v3649, %v3645
  %v3818 = vpack.c.b16 %v3650, %v3646
  %v3819 = vpack.c.b16 %v3651, %v3647
  %v3820 = vpack.c.b16 %v3656, %v3652
  %v3821 = vpack.c.b16 %v3657, %v3653
  %v3822 = vpack.c.b16 %v3658, %v3654
  %v3823 = vpack.c.b16 %v3659, %v3655
  %v3824 = vpack.c.b16 %v3664, %v3660
  %v3825 = vpack.c.b16 %v3665, %v3661
  %v3826 = vpack.c.b16 %v3666, %v3662
  %v3827 = vpack.c.b16 %v3667, %v3663
  %v3828 = vpack.c.b16 %v3672, %v3668
  %v3829 = vpack.c.b16 %v3673, %v3669
  %v3830 = vpack.c.b16 %v3674, %v3670
  %v3831 = vpack.c.b16 %v3675, %v3671
  %v3832 = vpack.c.b16 %v3680, %v3676
  %v3833 = vpack.c.b16 %v3681, %v3677
  %v3834 = vpack.c.b16 %v3682, %v3678
  %v3835 = vpack.c.b16 %v3683, %v3679
  %v3836 = vpack.c.b16 %v3688, %v3684
  %v3837 = vpack.c.b16 %v3689, %v3685
  %v3838 = vpack.c.b16 %v3690, %v3686
  %v3839 = vpack.c.b16 %v3691, %v3687
  %v3840 = vpack.c.b16 %v3696, %v3692
  %v3841 = vpack.c.b16 %v3697, %v3693
  %v3842 = vpack.c.b16 %v3698, %v3694
  %v3843 = vpack.c.b16 %v3699, %v3695
  %v3844 = vpack.c.b16 %v3704, %v3700
  %v3845 = vpack.c.b16 %v3705, %v3701
  %v3846 = vpack.c.b16 %v3706, %v3702
  %v3847 = vpack.c.b16 %v3707, %v3703
  %v3848 = vpack.c.b16 %v3712, %v3708
  %v3849 = vpack.c.b16 %v3713, %v3709
  %v3850 = vpack.c.b16 %v3714, %v3710
  %v3851 = vpack.c.b16 %v3715, %v3711
  %v3852 = vpack.c.b16 %v3720, %v3716
  %v3853 = vpack.c.b16 %v3721, %v3717
  %v3854 = vpack.c.b16 %v3722, %v3718
  %v3855 = vpack.c.b16 %v3723, %v3719
  %v3856 = vpack.c.b16 %v3728, %v3724
  %v3857 = vpack.c.b16 %v3729, %v3725
  %v3858 = vpack.c.b16 %v3730, %v3726
  %v3859 = vpack.c.b16 %v3731, %v3727
  %3988 = vmatprep.subr.bf16.mxu0 %v3733
  %3989 = vmatpush1.bf16.msra.mxu0 %v3732
  %3990 = vmatprep.subr.bf16.mxu0 %v3737
  %3991 = vmatpush1.bf16.msra.mxu0 %v3736
  %3992 = vmatprep.subr.bf16.mxu0 %v3741
  %3993 = vmatpush1.bf16.msra.mxu0 %v3740
  %3994 = vmatprep.subr.bf16.mxu0 %v3745
  %3995 = vmatpush1.bf16.msra.mxu0 %v3744
  %3996 = vmatprep.subr.bf16.mxu0 %v3749
  %3997 = vmatpush1.bf16.msra.mxu0 %v3748
  %3998 = vmatprep.subr.bf16.mxu0 %v3753
  %3999 = vmatpush1.bf16.msra.mxu0 %v3752
  %4000 = vmatprep.subr.bf16.mxu0 %v3757
  %4001 = vmatpush1.bf16.msra.mxu0 %v3756
  %4002 = vmatprep.subr.bf16.mxu0 %v3761
  %4003 = vmatpush1.bf16.msra.mxu0 %v3760
  %4004 = vmatprep.subr.bf16.mxu0 %v3765
  %4005 = vmatpush1.bf16.msra.mxu0 %v3764
  %4006 = vmatprep.subr.bf16.mxu0 %v3769
  %4007 = vmatpush1.bf16.msra.mxu0 %v3768
  %4008 = vmatprep.subr.bf16.mxu0 %v3773
  %4009 = vmatpush1.bf16.msra.mxu0 %v3772
  %4010 = vmatprep.subr.bf16.mxu0 %v3777
  %4011 = vmatpush1.bf16.msra.mxu0 %v3776
  %4012 = vmatprep.subr.bf16.mxu0 %v3781
  %4013 = vmatpush1.bf16.msra.mxu0 %v3780
  %4014 = vmatprep.subr.bf16.mxu0 %v3785
  %4015 = vmatpush1.bf16.msra.mxu0 %v3784
  %4016 = vmatprep.subr.bf16.mxu0 %v3789
  %4017 = vmatpush1.bf16.msra.mxu0 %v3788
  %4018 = vmatprep.subr.bf16.mxu0 %v3793
  %4019 = vmatpush1.bf16.msra.mxu0 %v3792
  %4020 = vmatprep.mubr.bf16.mxu0 %v3195
  %4021 = vmatmul.mubr.bf16.gmra.mrb[0].mxu0 %v3194
  %v4022 = vpop.f32.mrb[0].mxu0
  %v4023 = vadd.f32 %v3331, %v4022
  %v4024 = vpop.f32.mrb[0].mxu0
  %v4025 = vadd.f32 %v3335, %v4024
  %v4026 = vpop.f32.mrb[0].mxu0
  %v4027 = vpop.f32.mrb[0].mxu0
  %4028 = vdwg.mxu0
  %4029 = vmatprep.subr.bf16.mxu0 %v3797
  %4030 = vmatpush1.bf16.msra.mxu0 %v3796
  %4031 = vmatprep.subr.bf16.mxu0 %v3801
  %4032 = vmatpush1.bf16.msra.mxu0 %v3800
  %4033 = vmatprep.subr.bf16.mxu0 %v3805
  %4034 = vmatpush1.bf16.msra.mxu0 %v3804
  %4035 = vmatprep.subr.bf16.mxu0 %v3809
  %4036 = vmatpush1.bf16.msra.mxu0 %v3808
  %4037 = vmatprep.subr.bf16.mxu0 %v3813
  %4038 = vmatpush1.bf16.msra.mxu0 %v3812
  %4039 = vmatprep.subr.bf16.mxu0 %v3817
  %4040 = vmatpush1.bf16.msra.mxu0 %v3816
  %4041 = vmatprep.subr.bf16.mxu0 %v3821
  %4042 = vmatpush1.bf16.msra.mxu0 %v3820
  %4043 = vmatprep.subr.bf16.mxu0 %v3825
  %4044 = vmatpush1.bf16.msra.mxu0 %v3824
  %4045 = vmatprep.subr.bf16.mxu0 %v3829
  %4046 = vmatpush1.bf16.msra.mxu0 %v3828
  %4047 = vmatprep.subr.bf16.mxu0 %v3833
  %4048 = vmatpush1.bf16.msra.mxu0 %v3832
  %4049 = vmatprep.subr.bf16.mxu0 %v3837
  %4050 = vmatpush1.bf16.msra.mxu0 %v3836
  %4051 = vmatprep.subr.bf16.mxu0 %v3841
  %4052 = vmatpush1.bf16.msra.mxu0 %v3840
  %4053 = vmatprep.subr.bf16.mxu0 %v3845
  %4054 = vmatpush1.bf16.msra.mxu0 %v3844
  %4055 = vmatprep.subr.bf16.mxu0 %v3849
  %4056 = vmatpush1.bf16.msra.mxu0 %v3848
  %4057 = vmatprep.subr.bf16.mxu0 %v3853
  %4058 = vmatpush1.bf16.msra.mxu0 %v3852
  %4059 = vmatprep.subr.bf16.mxu0 %v3857
  %4060 = vmatpush1.bf16.msra.mxu0 %v3856
  %4061 = vmatprep.mubr.bf16.mxu0 %v3197
  %4062 = vmatmul.mubr.bf16.gmra.mrb[0].mxu0 %v3196
  %v4063 = vpop.f32.mrb[0].mxu0
  %v4064 = vadd.f32 %v4023, %v4063
  %v4065 = vpop.f32.mrb[0].mxu0
  %v4066 = vadd.f32 %v4025, %v4065
  %v4067 = vpop.f32.mrb[0].mxu0
  %v4068 = vpop.f32.mrb[0].mxu0
  %4069 = vdwg.mxu0
  %4070 = vmatprep.subr.bf16.mxu0 %v3735
  %4071 = vmatpush1.bf16.msra.mxu0 %v3734
  %4072 = vmatprep.subr.bf16.mxu0 %v3739
  %4073 = vmatpush1.bf16.msra.mxu0 %v3738
  %4074 = vmatprep.subr.bf16.mxu0 %v3743
  %4075 = vmatpush1.bf16.msra.mxu0 %v3742
  %4076 = vmatprep.subr.bf16.mxu0 %v3747
  %4077 = vmatpush1.bf16.msra.mxu0 %v3746
  %4078 = vmatprep.subr.bf16.mxu0 %v3751
  %4079 = vmatpush1.bf16.msra.mxu0 %v3750
  %4080 = vmatprep.subr.bf16.mxu0 %v3755
  %4081 = vmatpush1.bf16.msra.mxu0 %v3754
  %4082 = vmatprep.subr.bf16.mxu0 %v3759
  %4083 = vmatpush1.bf16.msra.mxu0 %v3758
  %4084 = vmatprep.subr.bf16.mxu0 %v3763
  %4085 = vmatpush1.bf16.msra.mxu0 %v3762
  %4086 = vmatprep.subr.bf16.mxu0 %v3767
  %4087 = vmatpush1.bf16.msra.mxu0 %v3766
  %4088 = vmatprep.subr.bf16.mxu0 %v3771
  %4089 = vmatpush1.bf16.msra.mxu0 %v3770
  %4090 = vmatprep.subr.bf16.mxu0 %v3775
  %4091 = vmatpush1.bf16.msra.mxu0 %v3774
  %4092 = vmatprep.subr.bf16.mxu0 %v3779
  %4093 = vmatpush1.bf16.msra.mxu0 %v3778
  %4094 = vmatprep.subr.bf16.mxu0 %v3783
  %4095 = vmatpush1.bf16.msra.mxu0 %v3782
  %4096 = vmatprep.subr.bf16.mxu0 %v3787
  %4097 = vmatpush1.bf16.msra.mxu0 %v3786
  %4098 = vmatprep.subr.bf16.mxu0 %v3791
  %4099 = vmatpush1.bf16.msra.mxu0 %v3790
  %4100 = vmatprep.subr.bf16.mxu0 %v3795
  %4101 = vmatpush1.bf16.msra.mxu0 %v3794
  %4102 = vmatprep.mubr.bf16.mxu0 %v3195
  %4103 = vmatmul.mubr.bf16.gmra.mrb[0].mxu0 %v3194
  %v4104 = vpop.f32.mrb[0].mxu0
  %v4105 = vadd.f32 %v3339, %v4104
  %v4106 = vpop.f32.mrb[0].mxu0
  %v4107 = vadd.f32 %v3343, %v4106
  %v4108 = vpop.f32.mrb[0].mxu0
  %v4109 = vpop.f32.mrb[0].mxu0
  %4110 = vdwg.mxu0
  %4111 = vmatprep.subr.bf16.mxu0 %v3799
  %4112 = vmatpush1.bf16.msra.mxu0 %v3798
  %4113 = vmatprep.subr.bf16.mxu0 %v3803
  %4114 = vmatpush1.bf16.msra.mxu0 %v3802
  %4115 = vmatprep.subr.bf16.mxu0 %v3807
  %4116 = vmatpush1.bf16.msra.mxu0 %v3806
  %4117 = vmatprep.subr.bf16.mxu0 %v3811
  %4118 = vmatpush1.bf16.msra.mxu0 %v3810
  %4119 = vmatprep.subr.bf16.mxu0 %v3815
  %4120 = vmatpush1.bf16.msra.mxu0 %v3814
  %4121 = vmatprep.subr.bf16.mxu0 %v3819
  %4122 = vmatpush1.bf16.msra.mxu0 %v3818
  %4123 = vmatprep.subr.bf16.mxu0 %v3823
  %4124 = vmatpush1.bf16.msra.mxu0 %v3822
  %4125 = vmatprep.subr.bf16.mxu0 %v3827
  %4126 = vmatpush1.bf16.msra.mxu0 %v3826
  %4127 = vmatprep.subr.bf16.mxu0 %v3831
  %4128 = vmatpush1.bf16.msra.mxu0 %v3830
  %4129 = vmatprep.subr.bf16.mxu0 %v3835
  %4130 = vmatpush1.bf16.msra.mxu0 %v3834
  %4131 = vmatprep.subr.bf16.mxu0 %v3839
  %4132 = vmatpush1.bf16.msra.mxu0 %v3838
  %4133 = vmatprep.subr.bf16.mxu0 %v3843
  %4134 = vmatpush1.bf16.msra.mxu0 %v3842
  %4135 = vmatprep.subr.bf16.mxu0 %v3847
  %4136 = vmatpush1.bf16.msra.mxu0 %v3846
  %4137 = vmatprep.subr.bf16.mxu0 %v3851
  %4138 = vmatpush1.bf16.msra.mxu0 %v3850
  %4139 = vmatprep.subr.bf16.mxu0 %v3855
  %4140 = vmatpush1.bf16.msra.mxu0 %v3854
  %4141 = vmatprep.subr.bf16.mxu0 %v3859
  %4142 = vmatpush1.bf16.msra.mxu0 %v3858
  %4143 = vmatprep.mubr.bf16.mxu0 %v3197
  %4144 = vmatmul.mubr.bf16.gmra.mrb[0].mxu0 %v3196
  %v4145 = vpop.f32.mrb[0].mxu0
  %v4146 = vadd.f32 %v4105, %v4145
  %v4147 = vpop.f32.mrb[0].mxu0
  %v4148 = vadd.f32 %v4107, %v4147
  %v4149 = vpop.f32.mrb[0].mxu0
  %v4150 = vpop.f32.mrb[0].mxu0
  %4151 = vdwg.mxu0
  %v4152 = vmax.f32 %v4064, 0.0
  %v4153 = vmax.f32 %v4066, 0.0
  %v4154 = vmax.f32 %v4146, 0.0
  %v4155 = vmax.f32 %v4148, 0.0
  %v4156 = vpack.c.bf16 %v4152, %v4152
  %v4157 = vpack.c.bf16 %v4153, %v4153
  %v4158 = vpack.c.bf16 %v4154, %v4154
  %v4159 = vpack.c.bf16 %v4155, %v4155
  %v4160 = vld [vmem:[%s5] sm:$0xff]
  %v4161 = vld [vmem:[%s5 + $0x8] sm:$0xff]
  %v4162 = vld [vmem:[%s5 + $0x10] sm:$0xff]
  %v4163 = vld [vmem:[%s5 + $0x18] sm:$0xff]
  %v4164 = vld [vmem:[%s5 + $0x20] sm:$0xff]
  %v4165 = vld [vmem:[%s5 + $0x28] sm:$0xff]
  %v4166 = vld [vmem:[%s5 + $0x30] sm:$0xff]
  %v4167 = vld [vmem:[%s5 + $0x38] sm:$0xff]
  %v4168 = vld [vmem:[%s5 + $0x40] sm:$0xff]
  %v4169 = vld [vmem:[%s5 + $0x48] sm:$0xff]
  %v4170 = vld [vmem:[%s5 + $0x50] sm:$0xff]
  %v4171 = vld [vmem:[%s5 + $0x58] sm:$0xff]
  %v4172 = vld [vmem:[%s5 + $0x60] sm:$0xff]
  %v4173 = vld [vmem:[%s5 + $0x68] sm:$0xff]
  %v4174 = vld [vmem:[%s5 + $0x70] sm:$0xff]
  %v4175 = vld [vmem:[%s5 + $0x78] sm:$0xff]
  %v4176 = vld [vmem:[%s5 + $0x80] sm:$0xff]
  %v4177 = vld [vmem:[%s5 + $0x88] sm:$0xff]
  %v4178 = vld [vmem:[%s5 + $0x90] sm:$0xff]
  %v4179 = vld [vmem:[%s5 + $0x98] sm:$0xff]
  %v4180 = vld [vmem:[%s5 + $0xa0] sm:$0xff]
  %v4181 = vld [vmem:[%s5 + $0xa8] sm:$0xff]
  %v4182 = vld [vmem:[%s5 + $0xb0] sm:$0xff]
  %v4183 = vld [vmem:[%s5 + $0xb8] sm:$0xff]
  %v4184 = vld [vmem:[%s5 + $0xc0] sm:$0xff]
  %v4185 = vld [vmem:[%s5 + $0xc8] sm:$0xff]
  %v4186 = vld [vmem:[%s5 + $0xd0] sm:$0xff]
  %v4187 = vld [vmem:[%s5 + $0xd8] sm:$0xff]
  %v4188 = vld [vmem:[%s5 + $0xe0] sm:$0xff]
  %v4189 = vld [vmem:[%s5 + $0xe8] sm:$0xff]
  %v4190 = vld [vmem:[%s5 + $0xf0] sm:$0xff]
  %v4191 = vld [vmem:[%s5 + $0xf8] sm:$0xff]
  %v4192 = vld [vmem:[%s5 + $0x100] sm:$0xff]
  %v4193 = vld [vmem:[%s5 + $0x108] sm:$0xff]
  %v4194 = vld [vmem:[%s5 + $0x110] sm:$0xff]
  %v4195 = vld [vmem:[%s5 + $0x118] sm:$0xff]
  %v4196 = vld [vmem:[%s5 + $0x120] sm:$0xff]
  %v4197 = vld [vmem:[%s5 + $0x128] sm:$0xff]
  %v4198 = vld [vmem:[%s5 + $0x130] sm:$0xff]
  %v4199 = vld [vmem:[%s5 + $0x138] sm:$0xff]
  %v4200 = vld [vmem:[%s5 + $0x140] sm:$0xff]
  %v4201 = vld [vmem:[%s5 + $0x148] sm:$0xff]
  %v4202 = vld [vmem:[%s5 + $0x150] sm:$0xff]
  %v4203 = vld [vmem:[%s5 + $0x158] sm:$0xff]
  %v4204 = vld [vmem:[%s5 + $0x160] sm:$0xff]
  %v4205 = vld [vmem:[%s5 + $0x168] sm:$0xff]
  %v4206 = vld [vmem:[%s5 + $0x170] sm:$0xff]
  %v4207 = vld [vmem:[%s5 + $0x178] sm:$0xff]
  %v4208 = vld [vmem:[%s5 + $0x180] sm:$0xff]
  %v4209 = vld [vmem:[%s5 + $0x188] sm:$0xff]
  %v4210 = vld [vmem:[%s5 + $0x190] sm:$0xff]
  %v4211 = vld [vmem:[%s5 + $0x198] sm:$0xff]
  %v4212 = vld [vmem:[%s5 + $0x1a0] sm:$0xff]
  %v4213 = vld [vmem:[%s5 + $0x1a8] sm:$0xff]
  %v4214 = vld [vmem:[%s5 + $0x1b0] sm:$0xff]
  %v4215 = vld [vmem:[%s5 + $0x1b8] sm:$0xff]
  %v4216 = vld [vmem:[%s5 + $0x1c0] sm:$0xff]
  %v4217 = vld [vmem:[%s5 + $0x1c8] sm:$0xff]
  %v4218 = vld [vmem:[%s5 + $0x1d0] sm:$0xff]
  %v4219 = vld [vmem:[%s5 + $0x1d8] sm:$0xff]
  %v4220 = vld [vmem:[%s5 + $0x1e0] sm:$0xff]
  %v4221 = vld [vmem:[%s5 + $0x1e8] sm:$0xff]
  %v4222 = vld [vmem:[%s5 + $0x1f0] sm:$0xff]
  %v4223 = vld [vmem:[%s5 + $0x1f8] sm:$0xff]
  %v4224 = vld [vmem:[%s5 + $0x200] sm:$0xff]
  %v4225 = vld [vmem:[%s5 + $0x208] sm:$0xff]
  %v4226 = vld [vmem:[%s5 + $0x210] sm:$0xff]
  %v4227 = vld [vmem:[%s5 + $0x218] sm:$0xff]
  %v4228 = vld [vmem:[%s5 + $0x220] sm:$0xff]
  %v4229 = vld [vmem:[%s5 + $0x228] sm:$0xff]
  %v4230 = vld [vmem:[%s5 + $0x230] sm:$0xff]
  %v4231 = vld [vmem:[%s5 + $0x238] sm:$0xff]
  %v4232 = vld [vmem:[%s5 + $0x240] sm:$0xff]
  %v4233 = vld [vmem:[%s5 + $0x248] sm:$0xff]
  %v4234 = vld [vmem:[%s5 + $0x250] sm:$0xff]
  %v4235 = vld [vmem:[%s5 + $0x258] sm:$0xff]
  %v4236 = vld [vmem:[%s5 + $0x260] sm:$0xff]
  %v4237 = vld [vmem:[%s5 + $0x268] sm:$0xff]
  %v4238 = vld [vmem:[%s5 + $0x270] sm:$0xff]
  %v4239 = vld [vmem:[%s5 + $0x278] sm:$0xff]
  %v4240 = vld [vmem:[%s5 + $0x280] sm:$0xff]
  %v4241 = vld [vmem:[%s5 + $0x288] sm:$0xff]
  %v4242 = vld [vmem:[%s5 + $0x290] sm:$0xff]
  %v4243 = vld [vmem:[%s5 + $0x298] sm:$0xff]
  %v4244 = vld [vmem:[%s5 + $0x2a0] sm:$0xff]
  %v4245 = vld [vmem:[%s5 + $0x2a8] sm:$0xff]
  %v4246 = vld [vmem:[%s5 + $0x2b0] sm:$0xff]
  %v4247 = vld [vmem:[%s5 + $0x2b8] sm:$0xff]
  %v4248 = vld [vmem:[%s5 + $0x2c0] sm:$0xff]
  %v4249 = vld [vmem:[%s5 + $0x2c8] sm:$0xff]
  %v4250 = vld [vmem:[%s5 + $0x2d0] sm:$0xff]
  %v4251 = vld [vmem:[%s5 + $0x2d8] sm:$0xff]
  %v4252 = vld [vmem:[%s5 + $0x2e0] sm:$0xff]
  %v4253 = vld [vmem:[%s5 + $0x2e8] sm:$0xff]
  %v4254 = vld [vmem:[%s5 + $0x2f0] sm:$0xff]
  %v4255 = vld [vmem:[%s5 + $0x2f8] sm:$0xff]
  %v4256 = vld [vmem:[%s5 + $0x300] sm:$0xff]
  %v4257 = vld [vmem:[%s5 + $0x308] sm:$0xff]
  %v4258 = vld [vmem:[%s5 + $0x310] sm:$0xff]
  %v4259 = vld [vmem:[%s5 + $0x318] sm:$0xff]
  %v4260 = vld [vmem:[%s5 + $0x320] sm:$0xff]
  %v4261 = vld [vmem:[%s5 + $0x328] sm:$0xff]
  %v4262 = vld [vmem:[%s5 + $0x330] sm:$0xff]
  %v4263 = vld [vmem:[%s5 + $0x338] sm:$0xff]
  %v4264 = vld [vmem:[%s5 + $0x340] sm:$0xff]
  %v4265 = vld [vmem:[%s5 + $0x348] sm:$0xff]
  %v4266 = vld [vmem:[%s5 + $0x350] sm:$0xff]
  %v4267 = vld [vmem:[%s5 + $0x358] sm:$0xff]
  %v4268 = vld [vmem:[%s5 + $0x360] sm:$0xff]
  %v4269 = vld [vmem:[%s5 + $0x368] sm:$0xff]
  %v4270 = vld [vmem:[%s5 + $0x370] sm:$0xff]
  %v4271 = vld [vmem:[%s5 + $0x378] sm:$0xff]
  %v4272 = vld [vmem:[%s5 + $0x380] sm:$0xff]
  %v4273 = vld [vmem:[%s5 + $0x388] sm:$0xff]
  %v4274 = vld [vmem:[%s5 + $0x390] sm:$0xff]
  %v4275 = vld [vmem:[%s5 + $0x398] sm:$0xff]
  %v4276 = vld [vmem:[%s5 + $0x3a0] sm:$0xff]
  %v4277 = vld [vmem:[%s5 + $0x3a8] sm:$0xff]
  %v4278 = vld [vmem:[%s5 + $0x3b0] sm:$0xff]
  %v4279 = vld [vmem:[%s5 + $0x3b8] sm:$0xff]
  %v4280 = vld [vmem:[%s5 + $0x3c0] sm:$0xff]
  %v4281 = vld [vmem:[%s5 + $0x3c8] sm:$0xff]
  %v4282 = vld [vmem:[%s5 + $0x3d0] sm:$0xff]
  %v4283 = vld [vmem:[%s5 + $0x3d8] sm:$0xff]
  %v4284 = vld [vmem:[%s5 + $0x3e0] sm:$0xff]
  %v4285 = vld [vmem:[%s5 + $0x3e8] sm:$0xff]
  %v4286 = vld [vmem:[%s5 + $0x3f0] sm:$0xff]
  %v4287 = vld [vmem:[%s5 + $0x3f8] sm:$0xff]
  %v4288 = vld [vmem:[%s6] sm:$0xf]
  %v4290 = vlaneseq
  %v4291 = vshrl.u32 %v4290, 7
  %v4292 = vsub.s32 0, %v4291
  %v4293 = vrot.slane %v4288, %v4292
  %v4294 = vlaneseq
  %v4295 = vshrl.u32 %v4294, 7
  %v4296 = vsub.s32 1, %v4295
  %v4297 = vrot.slane %v4288, %v4296
  %v4298 = vlaneseq
  %v4299 = vshrl.u32 %v4298, 7
  %v4300 = vsub.s32 2, %v4299
  %v4301 = vrot.slane %v4288, %v4300
  %v4302 = vlaneseq
  %v4303 = vshrl.u32 %v4302, 7
  %v4304 = vsub.s32 3, %v4303
  %v4305 = vrot.slane %v4288, %v4304
  %v4438 = vunpack.c.l.b16 %v4160
  %v4439 = vunpack.c.h.b16 %v4160
  %v4440 = vunpack.c.l.b16 %v4161
  %v4441 = vunpack.c.h.b16 %v4161
  %v4442 = vunpack.c.l.b16 %v4162
  %v4443 = vunpack.c.h.b16 %v4162
  %v4444 = vunpack.c.l.b16 %v4163
  %v4445 = vunpack.c.h.b16 %v4163
  %v4446 = vunpack.c.l.b16 %v4164
  %v4447 = vunpack.c.h.b16 %v4164
  %v4448 = vunpack.c.l.b16 %v4165
  %v4449 = vunpack.c.h.b16 %v4165
  %v4450 = vunpack.c.l.b16 %v4166
  %v4451 = vunpack.c.h.b16 %v4166
  %v4452 = vunpack.c.l.b16 %v4167
  %v4453 = vunpack.c.h.b16 %v4167
  %v4454 = vunpack.c.l.b16 %v4168
  %v4455 = vunpack.c.h.b16 %v4168
  %v4456 = vunpack.c.l.b16 %v4169
  %v4457 = vunpack.c.h.b16 %v4169
  %v4458 = vunpack.c.l.b16 %v4170
  %v4459 = vunpack.c.h.b16 %v4170
  %v4460 = vunpack.c.l.b16 %v4171
  %v4461 = vunpack.c.h.b16 %v4171
  %v4462 = vunpack.c.l.b16 %v4172
  %v4463 = vunpack.c.h.b16 %v4172
  %v4464 = vunpack.c.l.b16 %v4173
  %v4465 = vunpack.c.h.b16 %v4173
  %v4466 = vunpack.c.l.b16 %v4174
  %v4467 = vunpack.c.h.b16 %v4174
  %v4468 = vunpack.c.l.b16 %v4175
  %v4469 = vunpack.c.h.b16 %v4175
  %v4470 = vunpack.c.l.b16 %v4176
  %v4471 = vunpack.c.h.b16 %v4176
  %v4472 = vunpack.c.l.b16 %v4177
  %v4473 = vunpack.c.h.b16 %v4177
  %v4474 = vunpack.c.l.b16 %v4178
  %v4475 = vunpack.c.h.b16 %v4178
  %v4476 = vunpack.c.l.b16 %v4179
  %v4477 = vunpack.c.h.b16 %v4179
  %v4478 = vunpack.c.l.b16 %v4180
  %v4479 = vunpack.c.h.b16 %v4180
  %v4480 = vunpack.c.l.b16 %v4181
  %v4481 = vunpack.c.h.b16 %v4181
  %v4482 = vunpack.c.l.b16 %v4182
  %v4483 = vunpack.c.h.b16 %v4182
  %v4484 = vunpack.c.l.b16 %v4183
  %v4485 = vunpack.c.h.b16 %v4183
  %v4486 = vunpack.c.l.b16 %v4184
  %v4487 = vunpack.c.h.b16 %v4184
  %v4488 = vunpack.c.l.b16 %v4185
  %v4489 = vunpack.c.h.b16 %v4185
  %v4490 = vunpack.c.l.b16 %v4186
  %v4491 = vunpack.c.h.b16 %v4186
  %v4492 = vunpack.c.l.b16 %v4187
  %v4493 = vunpack.c.h.b16 %v4187
  %v4494 = vunpack.c.l.b16 %v4188
  %v4495 = vunpack.c.h.b16 %v4188
  %v4496 = vunpack.c.l.b16 %v4189
  %v4497 = vunpack.c.h.b16 %v4189
  %v4498 = vunpack.c.l.b16 %v4190
  %v4499 = vunpack.c.h.b16 %v4190
  %v4500 = vunpack.c.l.b16 %v4191
  %v4501 = vunpack.c.h.b16 %v4191
  %v4502 = vunpack.c.l.b16 %v4192
  %v4503 = vunpack.c.h.b16 %v4192
  %v4504 = vunpack.c.l.b16 %v4193
  %v4505 = vunpack.c.h.b16 %v4193
  %v4506 = vunpack.c.l.b16 %v4194
  %v4507 = vunpack.c.h.b16 %v4194
  %v4508 = vunpack.c.l.b16 %v4195
  %v4509 = vunpack.c.h.b16 %v4195
  %v4510 = vunpack.c.l.b16 %v4196
  %v4511 = vunpack.c.h.b16 %v4196
  %v4512 = vunpack.c.l.b16 %v4197
  %v4513 = vunpack.c.h.b16 %v4197
  %v4514 = vunpack.c.l.b16 %v4198
  %v4515 = vunpack.c.h.b16 %v4198
  %v4516 = vunpack.c.l.b16 %v4199
  %v4517 = vunpack.c.h.b16 %v4199
  %v4518 = vunpack.c.l.b16 %v4200
  %v4519 = vunpack.c.h.b16 %v4200
  %v4520 = vunpack.c.l.b16 %v4201
  %v4521 = vunpack.c.h.b16 %v4201
  %v4522 = vunpack.c.l.b16 %v4202
  %v4523 = vunpack.c.h.b16 %v4202
  %v4524 = vunpack.c.l.b16 %v4203
  %v4525 = vunpack.c.h.b16 %v4203
  %v4526 = vunpack.c.l.b16 %v4204
  %v4527 = vunpack.c.h.b16 %v4204
  %v4528 = vunpack.c.l.b16 %v4205
  %v4529 = vunpack.c.h.b16 %v4205
  %v4530 = vunpack.c.l.b16 %v4206
  %v4531 = vunpack.c.h.b16 %v4206
  %v4532 = vunpack.c.l.b16 %v4207
  %v4533 = vunpack.c.h.b16 %v4207
  %v4534 = vunpack.c.l.b16 %v4208
  %v4535 = vunpack.c.h.b16 %v4208
  %v4536 = vunpack.c.l.b16 %v4209
  %v4537 = vunpack.c.h.b16 %v4209
  %v4538 = vunpack.c.l.b16 %v4210
  %v4539 = vunpack.c.h.b16 %v4210
  %v4540 = vunpack.c.l.b16 %v4211
  %v4541 = vunpack.c.h.b16 %v4211
  %v4542 = vunpack.c.l.b16 %v4212
  %v4543 = vunpack.c.h.b16 %v4212
  %v4544 = vunpack.c.l.b16 %v4213
  %v4545 = vunpack.c.h.b16 %v4213
  %v4546 = vunpack.c.l.b16 %v4214
  %v4547 = vunpack.c.h.b16 %v4214
  %v4548 = vunpack.c.l.b16 %v4215
  %v4549 = vunpack.c.h.b16 %v4215
  %v4550 = vunpack.c.l.b16 %v4216
  %v4551 = vunpack.c.h.b16 %v4216
  %v4552 = vunpack.c.l.b16 %v4217
  %v4553 = vunpack.c.h.b16 %v4217
  %v4554 = vunpack.c.l.b16 %v4218
  %v4555 = vunpack.c.h.b16 %v4218
  %v4556 = vunpack.c.l.b16 %v4219
  %v4557 = vunpack.c.h.b16 %v4219
  %v4558 = vunpack.c.l.b16 %v4220
  %v4559 = vunpack.c.h.b16 %v4220
  %v4560 = vunpack.c.l.b16 %v4221
  %v4561 = vunpack.c.h.b16 %v4221
  %v4562 = vunpack.c.l.b16 %v4222
  %v4563 = vunpack.c.h.b16 %v4222
  %v4564 = vunpack.c.l.b16 %v4223
  %v4565 = vunpack.c.h.b16 %v4223
  %v4566 = vunpack.c.l.b16 %v4224
  %v4567 = vunpack.c.h.b16 %v4224
  %v4568 = vunpack.c.l.b16 %v4225
  %v4569 = vunpack.c.h.b16 %v4225
  %v4570 = vunpack.c.l.b16 %v4226
  %v4571 = vunpack.c.h.b16 %v4226
  %v4572 = vunpack.c.l.b16 %v4227
  %v4573 = vunpack.c.h.b16 %v4227
  %v4574 = vunpack.c.l.b16 %v4228
  %v4575 = vunpack.c.h.b16 %v4228
  %v4576 = vunpack.c.l.b16 %v4229
  %v4577 = vunpack.c.h.b16 %v4229
  %v4578 = vunpack.c.l.b16 %v4230
  %v4579 = vunpack.c.h.b16 %v4230
  %v4580 = vunpack.c.l.b16 %v4231
  %v4581 = vunpack.c.h.b16 %v4231
  %v4582 = vunpack.c.l.b16 %v4232
  %v4583 = vunpack.c.h.b16 %v4232
  %v4584 = vunpack.c.l.b16 %v4233
  %v4585 = vunpack.c.h.b16 %v4233
  %v4586 = vunpack.c.l.b16 %v4234
  %v4587 = vunpack.c.h.b16 %v4234
  %v4588 = vunpack.c.l.b16 %v4235
  %v4589 = vunpack.c.h.b16 %v4235
  %v4590 = vunpack.c.l.b16 %v4236
  %v4591 = vunpack.c.h.b16 %v4236
  %v4592 = vunpack.c.l.b16 %v4237
  %v4593 = vunpack.c.h.b16 %v4237
  %v4594 = vunpack.c.l.b16 %v4238
  %v4595 = vunpack.c.h.b16 %v4238
  %v4596 = vunpack.c.l.b16 %v4239
  %v4597 = vunpack.c.h.b16 %v4239
  %v4598 = vunpack.c.l.b16 %v4240
  %v4599 = vunpack.c.h.b16 %v4240
  %v4600 = vunpack.c.l.b16 %v4241
  %v4601 = vunpack.c.h.b16 %v4241
  %v4602 = vunpack.c.l.b16 %v4242
  %v4603 = vunpack.c.h.b16 %v4242
  %v4604 = vunpack.c.l.b16 %v4243
  %v4605 = vunpack.c.h.b16 %v4243
  %v4606 = vunpack.c.l.b16 %v4244
  %v4607 = vunpack.c.h.b16 %v4244
  %v4608 = vunpack.c.l.b16 %v4245
  %v4609 = vunpack.c.h.b16 %v4245
  %v4610 = vunpack.c.l.b16 %v4246
  %v4611 = vunpack.c.h.b16 %v4246
  %v4612 = vunpack.c.l.b16 %v4247
  %v4613 = vunpack.c.h.b16 %v4247
  %v4614 = vunpack.c.l.b16 %v4248
  %v4615 = vunpack.c.h.b16 %v4248
  %v4616 = vunpack.c.l.b16 %v4249
  %v4617 = vunpack.c.h.b16 %v4249
  %v4618 = vunpack.c.l.b16 %v4250
  %v4619 = vunpack.c.h.b16 %v4250
  %v4620 = vunpack.c.l.b16 %v4251
  %v4621 = vunpack.c.h.b16 %v4251
  %v4622 = vunpack.c.l.b16 %v4252
  %v4623 = vunpack.c.h.b16 %v4252
  %v4624 = vunpack.c.l.b16 %v4253
  %v4625 = vunpack.c.h.b16 %v4253
  %v4626 = vunpack.c.l.b16 %v4254
  %v4627 = vunpack.c.h.b16 %v4254
  %v4628 = vunpack.c.l.b16 %v4255
  %v4629 = vunpack.c.h.b16 %v4255
  %v4630 = vunpack.c.l.b16 %v4256
  %v4631 = vunpack.c.h.b16 %v4256
  %v4632 = vunpack.c.l.b16 %v4257
  %v4633 = vunpack.c.h.b16 %v4257
  %v4634 = vunpack.c.l.b16 %v4258
  %v4635 = vunpack.c.h.b16 %v4258
  %v4636 = vunpack.c.l.b16 %v4259
  %v4637 = vunpack.c.h.b16 %v4259
  %v4638 = vunpack.c.l.b16 %v4260
  %v4639 = vunpack.c.h.b16 %v4260
  %v4640 = vunpack.c.l.b16 %v4261
  %v4641 = vunpack.c.h.b16 %v4261
  %v4642 = vunpack.c.l.b16 %v4262
  %v4643 = vunpack.c.h.b16 %v4262
  %v4644 = vunpack.c.l.b16 %v4263
  %v4645 = vunpack.c.h.b16 %v4263
  %v4646 = vunpack.c.l.b16 %v4264
  %v4647 = vunpack.c.h.b16 %v4264
  %v4648 = vunpack.c.l.b16 %v4265
  %v4649 = vunpack.c.h.b16 %v4265
  %v4650 = vunpack.c.l.b16 %v4266
  %v4651 = vunpack.c.h.b16 %v4266
  %v4652 = vunpack.c.l.b16 %v4267
  %v4653 = vunpack.c.h.b16 %v4267
  %v4654 = vunpack.c.l.b16 %v4268
  %v4655 = vunpack.c.h.b16 %v4268
  %v4656 = vunpack.c.l.b16 %v4269
  %v4657 = vunpack.c.h.b16 %v4269
  %v4658 = vunpack.c.l.b16 %v4270
  %v4659 = vunpack.c.h.b16 %v4270
  %v4660 = vunpack.c.l.b16 %v4271
  %v4661 = vunpack.c.h.b16 %v4271
  %v4662 = vunpack.c.l.b16 %v4272
  %v4663 = vunpack.c.h.b16 %v4272
  %v4664 = vunpack.c.l.b16 %v4273
  %v4665 = vunpack.c.h.b16 %v4273
  %v4666 = vunpack.c.l.b16 %v4274
  %v4667 = vunpack.c.h.b16 %v4274
  %v4668 = vunpack.c.l.b16 %v4275
  %v4669 = vunpack.c.h.b16 %v4275
  %v4670 = vunpack.c.l.b16 %v4276
  %v4671 = vunpack.c.h.b16 %v4276
  %v4672 = vunpack.c.l.b16 %v4277
  %v4673 = vunpack.c.h.b16 %v4277
  %v4674 = vunpack.c.l.b16 %v4278
  %v4675 = vunpack.c.h.b16 %v4278
  %v4676 = vunpack.c.l.b16 %v4279
  %v4677 = vunpack.c.h.b16 %v4279
  %v4678 = vunpack.c.l.b16 %v4280
  %v4679 = vunpack.c.h.b16 %v4280
  %v4680 = vunpack.c.l.b16 %v4281
  %v4681 = vunpack.c.h.b16 %v4281
  %v4682 = vunpack.c.l.b16 %v4282
  %v4683 = vunpack.c.h.b16 %v4282
  %v4684 = vunpack.c.l.b16 %v4283
  %v4685 = vunpack.c.h.b16 %v4283
  %v4686 = vunpack.c.l.b16 %v4284
  %v4687 = vunpack.c.h.b16 %v4284
  %v4688 = vunpack.c.l.b16 %v4285
  %v4689 = vunpack.c.h.b16 %v4285
  %v4690 = vunpack.c.l.b16 %v4286
  %v4691 = vunpack.c.h.b16 %v4286
  %v4692 = vunpack.c.l.b16 %v4287
  %v4693 = vunpack.c.h.b16 %v4287
  %v4694 = vpack.c.b16 %v4442, %v4438
  %v4695 = vpack.c.b16 %v4443, %v4439
  %v4696 = vpack.c.b16 %v4444, %v4440
  %v4697 = vpack.c.b16 %v4445, %v4441
  %v4698 = vpack.c.b16 %v4450, %v4446
  %v4699 = vpack.c.b16 %v4451, %v4447
  %v4700 = vpack.c.b16 %v4452, %v4448
  %v4701 = vpack.c.b16 %v4453, %v4449
  %v4702 = vpack.c.b16 %v4458, %v4454
  %v4703 = vpack.c.b16 %v4459, %v4455
  %v4704 = vpack.c.b16 %v4460, %v4456
  %v4705 = vpack.c.b16 %v4461, %v4457
  %v4706 = vpack.c.b16 %v4466, %v4462
  %v4707 = vpack.c.b16 %v4467, %v4463
  %v4708 = vpack.c.b16 %v4468, %v4464
  %v4709 = vpack.c.b16 %v4469, %v4465
  %v4710 = vpack.c.b16 %v4474, %v4470
  %v4711 = vpack.c.b16 %v4475, %v4471
  %v4712 = vpack.c.b16 %v4476, %v4472
  %v4713 = vpack.c.b16 %v4477, %v4473
  %v4714 = vpack.c.b16 %v4482, %v4478
  %v4715 = vpack.c.b16 %v4483, %v4479
  %v4716 = vpack.c.b16 %v4484, %v4480
  %v4717 = vpack.c.b16 %v4485, %v4481
  %v4718 = vpack.c.b16 %v4490, %v4486
  %v4719 = vpack.c.b16 %v4491, %v4487
  %v4720 = vpack.c.b16 %v4492, %v4488
  %v4721 = vpack.c.b16 %v4493, %v4489
  %v4722 = vpack.c.b16 %v4498, %v4494
  %v4723 = vpack.c.b16 %v4499, %v4495
  %v4724 = vpack.c.b16 %v4500, %v4496
  %v4725 = vpack.c.b16 %v4501, %v4497
  %v4726 = vpack.c.b16 %v4506, %v4502
  %v4727 = vpack.c.b16 %v4507, %v4503
  %v4728 = vpack.c.b16 %v4508, %v4504
  %v4729 = vpack.c.b16 %v4509, %v4505
  %v4730 = vpack.c.b16 %v4514, %v4510
  %v4731 = vpack.c.b16 %v4515, %v4511
  %v4732 = vpack.c.b16 %v4516, %v4512
  %v4733 = vpack.c.b16 %v4517, %v4513
  %v4734 = vpack.c.b16 %v4522, %v4518
  %v4735 = vpack.c.b16 %v4523, %v4519
  %v4736 = vpack.c.b16 %v4524, %v4520
  %v4737 = vpack.c.b16 %v4525, %v4521
  %v4738 = vpack.c.b16 %v4530, %v4526
  %v4739 = vpack.c.b16 %v4531, %v4527
  %v4740 = vpack.c.b16 %v4532, %v4528
  %v4741 = vpack.c.b16 %v4533, %v4529
  %v4742 = vpack.c.b16 %v4538, %v4534
  %v4743 = vpack.c.b16 %v4539, %v4535
  %v4744 = vpack.c.b16 %v4540, %v4536
  %v4745 = vpack.c.b16 %v4541, %v4537
  %v4746 = vpack.c.b16 %v4546, %v4542
  %v4747 = vpack.c.b16 %v4547, %v4543
  %v4748 = vpack.c.b16 %v4548, %v4544
  %v4749 = vpack.c.b16 %v4549, %v4545
  %v4750 = vpack.c.b16 %v4554, %v4550
  %v4751 = vpack.c.b16 %v4555, %v4551
  %v4752 = vpack.c.b16 %v4556, %v4552
  %v4753 = vpack.c.b16 %v4557, %v4553
  %v4754 = vpack.c.b16 %v4562, %v4558
  %v4755 = vpack.c.b16 %v4563, %v4559
  %v4756 = vpack.c.b16 %v4564, %v4560
  %v4757 = vpack.c.b16 %v4565, %v4561
  %v4758 = vpack.c.b16 %v4570, %v4566
  %v4759 = vpack.c.b16 %v4571, %v4567
  %v4760 = vpack.c.b16 %v4572, %v4568
  %v4761 = vpack.c.b16 %v4573, %v4569
  %v4762 = vpack.c.b16 %v4578, %v4574
  %v4763 = vpack.c.b16 %v4579, %v4575
  %v4764 = vpack.c.b16 %v4580, %v4576
  %v4765 = vpack.c.b16 %v4581, %v4577
  %v4766 = vpack.c.b16 %v4586, %v4582
  %v4767 = vpack.c.b16 %v4587, %v4583
  %v4768 = vpack.c.b16 %v4588, %v4584
  %v4769 = vpack.c.b16 %v4589, %v4585
  %v4770 = vpack.c.b16 %v4594, %v4590
  %v4771 = vpack.c.b16 %v4595, %v4591
  %v4772 = vpack.c.b16 %v4596, %v4592
  %v4773 = vpack.c.b16 %v4597, %v4593
  %v4774 = vpack.c.b16 %v4602, %v4598
  %v4775 = vpack.c.b16 %v4603, %v4599
  %v4776 = vpack.c.b16 %v4604, %v4600
  %v4777 = vpack.c.b16 %v4605, %v4601
  %v4778 = vpack.c.b16 %v4610, %v4606
  %v4779 = vpack.c.b16 %v4611, %v4607
  %v4780 = vpack.c.b16 %v4612, %v4608
  %v4781 = vpack.c.b16 %v4613, %v4609
  %v4782 = vpack.c.b16 %v4618, %v4614
  %v4783 = vpack.c.b16 %v4619, %v4615
  %v4784 = vpack.c.b16 %v4620, %v4616
  %v4785 = vpack.c.b16 %v4621, %v4617
  %v4786 = vpack.c.b16 %v4626, %v4622
  %v4787 = vpack.c.b16 %v4627, %v4623
  %v4788 = vpack.c.b16 %v4628, %v4624
  %v4789 = vpack.c.b16 %v4629, %v4625
  %v4790 = vpack.c.b16 %v4634, %v4630
  %v4791 = vpack.c.b16 %v4635, %v4631
  %v4792 = vpack.c.b16 %v4636, %v4632
  %v4793 = vpack.c.b16 %v4637, %v4633
  %v4794 = vpack.c.b16 %v4642, %v4638
  %v4795 = vpack.c.b16 %v4643, %v4639
  %v4796 = vpack.c.b16 %v4644, %v4640
  %v4797 = vpack.c.b16 %v4645, %v4641
  %v4798 = vpack.c.b16 %v4650, %v4646
  %v4799 = vpack.c.b16 %v4651, %v4647
  %v4800 = vpack.c.b16 %v4652, %v4648
  %v4801 = vpack.c.b16 %v4653, %v4649
  %v4802 = vpack.c.b16 %v4658, %v4654
  %v4803 = vpack.c.b16 %v4659, %v4655
  %v4804 = vpack.c.b16 %v4660, %v4656
  %v4805 = vpack.c.b16 %v4661, %v4657
  %v4806 = vpack.c.b16 %v4666, %v4662
  %v4807 = vpack.c.b16 %v4667, %v4663
  %v4808 = vpack.c.b16 %v4668, %v4664
  %v4809 = vpack.c.b16 %v4669, %v4665
  %v4810 = vpack.c.b16 %v4674, %v4670
  %v4811 = vpack.c.b16 %v4675, %v4671
  %v4812 = vpack.c.b16 %v4676, %v4672
  %v4813 = vpack.c.b16 %v4677, %v4673
  %v4814 = vpack.c.b16 %v4682, %v4678
  %v4815 = vpack.c.b16 %v4683, %v4679
  %v4816 = vpack.c.b16 %v4684, %v4680
  %v4817 = vpack.c.b16 %v4685, %v4681
  %v4818 = vpack.c.b16 %v4690, %v4686
  %v4819 = vpack.c.b16 %v4691, %v4687
  %v4820 = vpack.c.b16 %v4692, %v4688
  %v4821 = vpack.c.b16 %v4693, %v4689
  %4950 = vmatprep.subr.bf16.mxu0 %v4695
  %4951 = vmatpush1.bf16.msra.mxu0 %v4694
  %4952 = vmatprep.subr.bf16.mxu0 %v4699
  %4953 = vmatpush1.bf16.msra.mxu0 %v4698
  %4954 = vmatprep.subr.bf16.mxu0 %v4703
  %4955 = vmatpush1.bf16.msra.mxu0 %v4702
  %4956 = vmatprep.subr.bf16.mxu0 %v4707
  %4957 = vmatpush1.bf16.msra.mxu0 %v4706
  %4958 = vmatprep.subr.bf16.mxu0 %v4711
  %4959 = vmatpush1.bf16.msra.mxu0 %v4710
  %4960 = vmatprep.subr.bf16.mxu0 %v4715
  %4961 = vmatpush1.bf16.msra.mxu0 %v4714
  %4962 = vmatprep.subr.bf16.mxu0 %v4719
  %4963 = vmatpush1.bf16.msra.mxu0 %v4718
  %4964 = vmatprep.subr.bf16.mxu0 %v4723
  %4965 = vmatpush1.bf16.msra.mxu0 %v4722
  %4966 = vmatprep.subr.bf16.mxu0 %v4727
  %4967 = vmatpush1.bf16.msra.mxu0 %v4726
  %4968 = vmatprep.subr.bf16.mxu0 %v4731
  %4969 = vmatpush1.bf16.msra.mxu0 %v4730
  %4970 = vmatprep.subr.bf16.mxu0 %v4735
  %4971 = vmatpush1.bf16.msra.mxu0 %v4734
  %4972 = vmatprep.subr.bf16.mxu0 %v4739
  %4973 = vmatpush1.bf16.msra.mxu0 %v4738
  %4974 = vmatprep.subr.bf16.mxu0 %v4743
  %4975 = vmatpush1.bf16.msra.mxu0 %v4742
  %4976 = vmatprep.subr.bf16.mxu0 %v4747
  %4977 = vmatpush1.bf16.msra.mxu0 %v4746
  %4978 = vmatprep.subr.bf16.mxu0 %v4751
  %4979 = vmatpush1.bf16.msra.mxu0 %v4750
  %4980 = vmatprep.subr.bf16.mxu0 %v4755
  %4981 = vmatpush1.bf16.msra.mxu0 %v4754
  %4982 = vmatprep.mubr.bf16.mxu0 %v4157
  %4983 = vmatmul.mubr.bf16.gmra.mrb[0].mxu0 %v4156
  %v4984 = vpop.f32.mrb[0].mxu0
  %v4985 = vadd.f32 %v4293, %v4984
  %v4986 = vpop.f32.mrb[0].mxu0
  %v4987 = vadd.f32 %v4297, %v4986
  %v4988 = vpop.f32.mrb[0].mxu0
  %v4989 = vpop.f32.mrb[0].mxu0
  %4990 = vdwg.mxu0
  %4991 = vmatprep.subr.bf16.mxu0 %v4759
  %4992 = vmatpush1.bf16.msra.mxu0 %v4758
  %4993 = vmatprep.subr.bf16.mxu0 %v4763
  %4994 = vmatpush1.bf16.msra.mxu0 %v4762
  %4995 = vmatprep.subr.bf16.mxu0 %v4767
  %4996 = vmatpush1.bf16.msra.mxu0 %v4766
  %4997 = vmatprep.subr.bf16.mxu0 %v4771
  %4998 = vmatpush1.bf16.msra.mxu0 %v4770
  %4999 = vmatprep.subr.bf16.mxu0 %v4775
  %5000 = vmatpush1.bf16.msra.mxu0 %v4774
  %5001 = vmatprep.subr.bf16.mxu0 %v4779
  %5002 = vmatpush1.bf16.msra.mxu0 %v4778
  %5003 = vmatprep.subr.bf16.mxu0 %v4783
  %5004 = vmatpush1.bf16.msra.mxu0 %v4782
  %5005 = vmatprep.subr.bf16.mxu0 %v4787
  %5006 = vmatpush1.bf16.msra.mxu0 %v4786
  %5007 = vmatprep.subr.bf16.mxu0 %v4791
  %5008 = vmatpush1.bf16.msra.mxu0 %v4790
  %5009 = vmatprep.subr.bf16.mxu0 %v4795
  %5010 = vmatpush1.bf16.msra.mxu0 %v4794
  %5011 = vmatprep.subr.bf16.mxu0 %v4799
  %5012 = vmatpush1.bf16.msra.mxu0 %v4798
  %5013 = vmatprep.subr.bf16.mxu0 %v4803
  %5014 = vmatpush1.bf16.msra.mxu0 %v4802
  %5015 = vmatprep.subr.bf16.mxu0 %v4807
  %5016 = vmatpush1.bf16.msra.mxu0 %v4806
  %5017 = vmatprep.subr.bf16.mxu0 %v4811
  %5018 = vmatpush1.bf16.msra.mxu0 %v4810
  %5019 = vmatprep.subr.bf16.mxu0 %v4815
  %5020 = vmatpush1.bf16.msra.mxu0 %v4814
  %5021 = vmatprep.subr.bf16.mxu0 %v4819
  %5022 = vmatpush1.bf16.msra.mxu0 %v4818
  %5023 = vmatprep.mubr.bf16.mxu0 %v4159
  %5024 = vmatmul.mubr.bf16.gmra.mrb[0].mxu0 %v4158
  %v5025 = vpop.f32.mrb[0].mxu0
  %v5026 = vadd.f32 %v4985, %v5025
  %v5027 = vpop.f32.mrb[0].mxu0
  %v5028 = vadd.f32 %v4987, %v5027
  %v5029 = vpop.f32.mrb[0].mxu0
  %v5030 = vpop.f32.mrb[0].mxu0
  %5031 = vdwg.mxu0
  %5032 = vmatprep.subr.bf16.mxu0 %v4697
  %5033 = vmatpush1.bf16.msra.mxu0 %v4696
  %5034 = vmatprep.subr.bf16.mxu0 %v4701
  %5035 = vmatpush1.bf16.msra.mxu0 %v4700
  %5036 = vmatprep.subr.bf16.mxu0 %v4705
  %5037 = vmatpush1.bf16.msra.mxu0 %v4704
  %5038 = vmatprep.subr.bf16.mxu0 %v4709
  %5039 = vmatpush1.bf16.msra.mxu0 %v4708
  %5040 = vmatprep.subr.bf16.mxu0 %v4713
  %5041 = vmatpush1.bf16.msra.mxu0 %v4712
  %5042 = vmatprep.subr.bf16.mxu0 %v4717
  %5043 = vmatpush1.bf16.msra.mxu0 %v4716
  %5044 = vmatprep.subr.bf16.mxu0 %v4721
  %5045 = vmatpush1.bf16.msra.mxu0 %v4720
  %5046 = vmatprep.subr.bf16.mxu0 %v4725
  %5047 = vmatpush1.bf16.msra.mxu0 %v4724
  %5048 = vmatprep.subr.bf16.mxu0 %v4729
  %5049 = vmatpush1.bf16.msra.mxu0 %v4728
  %5050 = vmatprep.subr.bf16.mxu0 %v4733
  %5051 = vmatpush1.bf16.msra.mxu0 %v4732
  %5052 = vmatprep.subr.bf16.mxu0 %v4737
  %5053 = vmatpush1.bf16.msra.mxu0 %v4736
  %5054 = vmatprep.subr.bf16.mxu0 %v4741
  %5055 = vmatpush1.bf16.msra.mxu0 %v4740
  %5056 = vmatprep.subr.bf16.mxu0 %v4745
  %5057 = vmatpush1.bf16.msra.mxu0 %v4744
  %5058 = vmatprep.subr.bf16.mxu0 %v4749
  %5059 = vmatpush1.bf16.msra.mxu0 %v4748
  %5060 = vmatprep.subr.bf16.mxu0 %v4753
  %5061 = vmatpush1.bf16.msra.mxu0 %v4752
  %5062 = vmatprep.subr.bf16.mxu0 %v4757
  %5063 = vmatpush1.bf16.msra.mxu0 %v4756
  %5064 = vmatprep.mubr.bf16.mxu0 %v4157
  %5065 = vmatmul.mubr.bf16.gmra.mrb[0].mxu0 %v4156
  %v5066 = vpop.f32.mrb[0].mxu0
  %v5067 = vadd.f32 %v4301, %v5066
  %v5068 = vpop.f32.mrb[0].mxu0
  %v5069 = vadd.f32 %v4305, %v5068
  %v5070 = vpop.f32.mrb[0].mxu0
  %v5071 = vpop.f32.mrb[0].mxu0
  %5072 = vdwg.mxu0
  %5073 = vmatprep.subr.bf16.mxu0 %v4761
  %5074 = vmatpush1.bf16.msra.mxu0 %v4760
  %5075 = vmatprep.subr.bf16.mxu0 %v4765
  %5076 = vmatpush1.bf16.msra.mxu0 %v4764
  %5077 = vmatprep.subr.bf16.mxu0 %v4769
  %5078 = vmatpush1.bf16.msra.mxu0 %v4768
  %5079 = vmatprep.subr.bf16.mxu0 %v4773
  %5080 = vmatpush1.bf16.msra.mxu0 %v4772
  %5081 = vmatprep.subr.bf16.mxu0 %v4777
  %5082 = vmatpush1.bf16.msra.mxu0 %v4776
  %5083 = vmatprep.subr.bf16.mxu0 %v4781
  %5084 = vmatpush1.bf16.msra.mxu0 %v4780
  %5085 = vmatprep.subr.bf16.mxu0 %v4785
  %5086 = vmatpush1.bf16.msra.mxu0 %v4784
  %5087 = vmatprep.subr.bf16.mxu0 %v4789
  %5088 = vmatpush1.bf16.msra.mxu0 %v4788
  %5089 = vmatprep.subr.bf16.mxu0 %v4793
  %5090 = vmatpush1.bf16.msra.mxu0 %v4792
  %5091 = vmatprep.subr.bf16.mxu0 %v4797
  %5092 = vmatpush1.bf16.msra.mxu0 %v4796
  %5093 = vmatprep.subr.bf16.mxu0 %v4801
  %5094 = vmatpush1.bf16.msra.mxu0 %v4800
  %5095 = vmatprep.subr.bf16.mxu0 %v4805
  %5096 = vmatpush1.bf16.msra.mxu0 %v4804
  %5097 = vmatprep.subr.bf16.mxu0 %v4809
  %5098 = vmatpush1.bf16.msra.mxu0 %v4808
  %5099 = vmatprep.subr.bf16.mxu0 %v4813
  %5100 = vmatpush1.bf16.msra.mxu0 %v4812
  %5101 = vmatprep.subr.bf16.mxu0 %v4817
  %5102 = vmatpush1.bf16.msra.mxu0 %v4816
  %5103 = vmatprep.subr.bf16.mxu0 %v4821
  %5104 = vmatpush1.bf16.msra.mxu0 %v4820
  %5105 = vmatprep.mubr.bf16.mxu0 %v4159
  %5106 = vmatmul.mubr.bf16.gmra.mrb[0].mxu0 %v4158
  %v5107 = vpop.f32.mrb[0].mxu0
  %v5108 = vadd.f32 %v5067, %v5107
  %v5109 = vpop.f32.mrb[0].mxu0
  %v5110 = vadd.f32 %v5069, %v5109
  %v5111 = vpop.f32.mrb[0].mxu0
  %v5112 = vpop.f32.mrb[0].mxu0
  %5113 = vdwg.mxu0
  %v5114 = vmax.f32 %v5026, 0.0
  %v5115 = vmax.f32 %v5028, 0.0
  %v5116 = vmax.f32 %v5108, 0.0
  %v5117 = vmax.f32 %v5110, 0.0
  %v5118 = vpack.c.bf16 %v5114, %v5114
  %v5119 = vpack.c.bf16 %v5115, %v5115
  %v5120 = vpack.c.bf16 %v5116, %v5116
  %v5121 = vpack.c.bf16 %v5117, %v5117
  %v5122 = vld [vmem:[%s7] sm:$0xff]
  %v5123 = vld [vmem:[%s7 + $0x8] sm:$0xff]
  %v5124 = vld [vmem:[%s7 + $0x10] sm:$0xff]
  %v5125 = vld [vmem:[%s7 + $0x18] sm:$0xff]
  %v5126 = vld [vmem:[%s7 + $0x20] sm:$0xff]
  %v5127 = vld [vmem:[%s7 + $0x28] sm:$0xff]
  %v5128 = vld [vmem:[%s7 + $0x30] sm:$0xff]
  %v5129 = vld [vmem:[%s7 + $0x38] sm:$0xff]
  %v5130 = vld [vmem:[%s7 + $0x40] sm:$0xff]
  %v5131 = vld [vmem:[%s7 + $0x48] sm:$0xff]
  %v5132 = vld [vmem:[%s7 + $0x50] sm:$0xff]
  %v5133 = vld [vmem:[%s7 + $0x58] sm:$0xff]
  %v5134 = vld [vmem:[%s7 + $0x60] sm:$0xff]
  %v5135 = vld [vmem:[%s7 + $0x68] sm:$0xff]
  %v5136 = vld [vmem:[%s7 + $0x70] sm:$0xff]
  %v5137 = vld [vmem:[%s7 + $0x78] sm:$0xff]
  %v5138 = vld [vmem:[%s7 + $0x80] sm:$0xff]
  %v5139 = vld [vmem:[%s7 + $0x88] sm:$0xff]
  %v5140 = vld [vmem:[%s7 + $0x90] sm:$0xff]
  %v5141 = vld [vmem:[%s7 + $0x98] sm:$0xff]
  %v5142 = vld [vmem:[%s7 + $0xa0] sm:$0xff]
  %v5143 = vld [vmem:[%s7 + $0xa8] sm:$0xff]
  %v5144 = vld [vmem:[%s7 + $0xb0] sm:$0xff]
  %v5145 = vld [vmem:[%s7 + $0xb8] sm:$0xff]
  %v5146 = vld [vmem:[%s7 + $0xc0] sm:$0xff]
  %v5147 = vld [vmem:[%s7 + $0xc8] sm:$0xff]
  %v5148 = vld [vmem:[%s7 + $0xd0] sm:$0xff]
  %v5149 = vld [vmem:[%s7 + $0xd8] sm:$0xff]
  %v5150 = vld [vmem:[%s7 + $0xe0] sm:$0xff]
  %v5151 = vld [vmem:[%s7 + $0xe8] sm:$0xff]
  %v5152 = vld [vmem:[%s7 + $0xf0] sm:$0xff]
  %v5153 = vld [vmem:[%s7 + $0xf8] sm:$0xff]
  %v5154 = vld [vmem:[%s7 + $0x100] sm:$0xff]
  %v5155 = vld [vmem:[%s7 + $0x108] sm:$0xff]
  %v5156 = vld [vmem:[%s7 + $0x110] sm:$0xff]
  %v5157 = vld [vmem:[%s7 + $0x118] sm:$0xff]
  %v5158 = vld [vmem:[%s7 + $0x120] sm:$0xff]
  %v5159 = vld [vmem:[%s7 + $0x128] sm:$0xff]
  %v5160 = vld [vmem:[%s7 + $0x130] sm:$0xff]
  %v5161 = vld [vmem:[%s7 + $0x138] sm:$0xff]
  %v5162 = vld [vmem:[%s7 + $0x140] sm:$0xff]
  %v5163 = vld [vmem:[%s7 + $0x148] sm:$0xff]
  %v5164 = vld [vmem:[%s7 + $0x150] sm:$0xff]
  %v5165 = vld [vmem:[%s7 + $0x158] sm:$0xff]
  %v5166 = vld [vmem:[%s7 + $0x160] sm:$0xff]
  %v5167 = vld [vmem:[%s7 + $0x168] sm:$0xff]
  %v5168 = vld [vmem:[%s7 + $0x170] sm:$0xff]
  %v5169 = vld [vmem:[%s7 + $0x178] sm:$0xff]
  %v5170 = vld [vmem:[%s7 + $0x180] sm:$0xff]
  %v5171 = vld [vmem:[%s7 + $0x188] sm:$0xff]
  %v5172 = vld [vmem:[%s7 + $0x190] sm:$0xff]
  %v5173 = vld [vmem:[%s7 + $0x198] sm:$0xff]
  %v5174 = vld [vmem:[%s7 + $0x1a0] sm:$0xff]
  %v5175 = vld [vmem:[%s7 + $0x1a8] sm:$0xff]
  %v5176 = vld [vmem:[%s7 + $0x1b0] sm:$0xff]
  %v5177 = vld [vmem:[%s7 + $0x1b8] sm:$0xff]
  %v5178 = vld [vmem:[%s7 + $0x1c0] sm:$0xff]
  %v5179 = vld [vmem:[%s7 + $0x1c8] sm:$0xff]
  %v5180 = vld [vmem:[%s7 + $0x1d0] sm:$0xff]
  %v5181 = vld [vmem:[%s7 + $0x1d8] sm:$0xff]
  %v5182 = vld [vmem:[%s7 + $0x1e0] sm:$0xff]
  %v5183 = vld [vmem:[%s7 + $0x1e8] sm:$0xff]
  %v5184 = vld [vmem:[%s7 + $0x1f0] sm:$0xff]
  %v5185 = vld [vmem:[%s7 + $0x1f8] sm:$0xff]
  %v5186 = vld [vmem:[%s7 + $0x200] sm:$0xff]
  %v5187 = vld [vmem:[%s7 + $0x208] sm:$0xff]
  %v5188 = vld [vmem:[%s7 + $0x210] sm:$0xff]
  %v5189 = vld [vmem:[%s7 + $0x218] sm:$0xff]
  %v5190 = vld [vmem:[%s7 + $0x220] sm:$0xff]
  %v5191 = vld [vmem:[%s7 + $0x228] sm:$0xff]
  %v5192 = vld [vmem:[%s7 + $0x230] sm:$0xff]
  %v5193 = vld [vmem:[%s7 + $0x238] sm:$0xff]
  %v5194 = vld [vmem:[%s7 + $0x240] sm:$0xff]
  %v5195 = vld [vmem:[%s7 + $0x248] sm:$0xff]
  %v5196 = vld [vmem:[%s7 + $0x250] sm:$0xff]
  %v5197 = vld [vmem:[%s7 + $0x258] sm:$0xff]
  %v5198 = vld [vmem:[%s7 + $0x260] sm:$0xff]
  %v5199 = vld [vmem:[%s7 + $0x268] sm:$0xff]
  %v5200 = vld [vmem:[%s7 + $0x270] sm:$0xff]
  %v5201 = vld [vmem:[%s7 + $0x278] sm:$0xff]
  %v5202 = vld [vmem:[%s7 + $0x280] sm:$0xff]
  %v5203 = vld [vmem:[%s7 + $0x288] sm:$0xff]
  %v5204 = vld [vmem:[%s7 + $0x290] sm:$0xff]
  %v5205 = vld [vmem:[%s7 + $0x298] sm:$0xff]
  %v5206 = vld [vmem:[%s7 + $0x2a0] sm:$0xff]
  %v5207 = vld [vmem:[%s7 + $0x2a8] sm:$0xff]
  %v5208 = vld [vmem:[%s7 + $0x2b0] sm:$0xff]
  %v5209 = vld [vmem:[%s7 + $0x2b8] sm:$0xff]
  %v5210 = vld [vmem:[%s7 + $0x2c0] sm:$0xff]
  %v5211 = vld [vmem:[%s7 + $0x2c8] sm:$0xff]
  %v5212 = vld [vmem:[%s7 + $0x2d0] sm:$0xff]
  %v5213 = vld [vmem:[%s7 + $0x2d8] sm:$0xff]
  %v5214 = vld [vmem:[%s7 + $0x2e0] sm:$0xff]
  %v5215 = vld [vmem:[%s7 + $0x2e8] sm:$0xff]
  %v5216 = vld [vmem:[%s7 + $0x2f0] sm:$0xff]
  %v5217 = vld [vmem:[%s7 + $0x2f8] sm:$0xff]
  %v5218 = vld [vmem:[%s7 + $0x300] sm:$0xff]
  %v5219 = vld [vmem:[%s7 + $0x308] sm:$0xff]
  %v5220 = vld [vmem:[%s7 + $0x310] sm:$0xff]
  %v5221 = vld [vmem:[%s7 + $0x318] sm:$0xff]
  %v5222 = vld [vmem:[%s7 + $0x320] sm:$0xff]
  %v5223 = vld [vmem:[%s7 + $0x328] sm:$0xff]
  %v5224 = vld [vmem:[%s7 + $0x330] sm:$0xff]
  %v5225 = vld [vmem:[%s7 + $0x338] sm:$0xff]
  %v5226 = vld [vmem:[%s7 + $0x340] sm:$0xff]
  %v5227 = vld [vmem:[%s7 + $0x348] sm:$0xff]
  %v5228 = vld [vmem:[%s7 + $0x350] sm:$0xff]
  %v5229 = vld [vmem:[%s7 + $0x358] sm:$0xff]
  %v5230 = vld [vmem:[%s7 + $0x360] sm:$0xff]
  %v5231 = vld [vmem:[%s7 + $0x368] sm:$0xff]
  %v5232 = vld [vmem:[%s7 + $0x370] sm:$0xff]
  %v5233 = vld [vmem:[%s7 + $0x378] sm:$0xff]
  %v5234 = vld [vmem:[%s7 + $0x380] sm:$0xff]
  %v5235 = vld [vmem:[%s7 + $0x388] sm:$0xff]
  %v5236 = vld [vmem:[%s7 + $0x390] sm:$0xff]
  %v5237 = vld [vmem:[%s7 + $0x398] sm:$0xff]
  %v5238 = vld [vmem:[%s7 + $0x3a0] sm:$0xff]
  %v5239 = vld [vmem:[%s7 + $0x3a8] sm:$0xff]
  %v5240 = vld [vmem:[%s7 + $0x3b0] sm:$0xff]
  %v5241 = vld [vmem:[%s7 + $0x3b8] sm:$0xff]
  %v5242 = vld [vmem:[%s7 + $0x3c0] sm:$0xff]
  %v5243 = vld [vmem:[%s7 + $0x3c8] sm:$0xff]
  %v5244 = vld [vmem:[%s7 + $0x3d0] sm:$0xff]
  %v5245 = vld [vmem:[%s7 + $0x3d8] sm:$0xff]
  %v5246 = vld [vmem:[%s7 + $0x3e0] sm:$0xff]
  %v5247 = vld [vmem:[%s7 + $0x3e8] sm:$0xff]
  %v5248 = vld [vmem:[%s7 + $0x3f0] sm:$0xff]
  %v5249 = vld [vmem:[%s7 + $0x3f8] sm:$0xff]
  %v5250 = vld [vmem:[%s8] sm:$0xf]
  %v5252 = vlaneseq
  %v5253 = vshrl.u32 %v5252, 7
  %v5254 = vsub.s32 0, %v5253
  %v5255 = vrot.slane %v5250, %v5254
  %v5256 = vlaneseq
  %v5257 = vshrl.u32 %v5256, 7
  %v5258 = vsub.s32 1, %v5257
  %v5259 = vrot.slane %v5250, %v5258
  %v5260 = vlaneseq
  %v5261 = vshrl.u32 %v5260, 7
  %v5262 = vsub.s32 2, %v5261
  %v5263 = vrot.slane %v5250, %v5262
  %v5264 = vlaneseq
  %v5265 = vshrl.u32 %v5264, 7
  %v5266 = vsub.s32 3, %v5265
  %v5267 = vrot.slane %v5250, %v5266
  %v5400 = vunpack.c.l.b16 %v5122
  %v5401 = vunpack.c.h.b16 %v5122
  %v5402 = vunpack.c.l.b16 %v5123
  %v5403 = vunpack.c.h.b16 %v5123
  %v5404 = vunpack.c.l.b16 %v5124
  %v5405 = vunpack.c.h.b16 %v5124
  %v5406 = vunpack.c.l.b16 %v5125
  %v5407 = vunpack.c.h.b16 %v5125
  %v5408 = vunpack.c.l.b16 %v5126
  %v5409 = vunpack.c.h.b16 %v5126
  %v5410 = vunpack.c.l.b16 %v5127
  %v5411 = vunpack.c.h.b16 %v5127
  %v5412 = vunpack.c.l.b16 %v5128
  %v5413 = vunpack.c.h.b16 %v5128
  %v5414 = vunpack.c.l.b16 %v5129
  %v5415 = vunpack.c.h.b16 %v5129
  %v5416 = vunpack.c.l.b16 %v5130
  %v5417 = vunpack.c.h.b16 %v5130
  %v5418 = vunpack.c.l.b16 %v5131
  %v5419 = vunpack.c.h.b16 %v5131
  %v5420 = vunpack.c.l.b16 %v5132
  %v5421 = vunpack.c.h.b16 %v5132
  %v5422 = vunpack.c.l.b16 %v5133
  %v5423 = vunpack.c.h.b16 %v5133
  %v5424 = vunpack.c.l.b16 %v5134
  %v5425 = vunpack.c.h.b16 %v5134
  %v5426 = vunpack.c.l.b16 %v5135
  %v5427 = vunpack.c.h.b16 %v5135
  %v5428 = vunpack.c.l.b16 %v5136
  %v5429 = vunpack.c.h.b16 %v5136
  %v5430 = vunpack.c.l.b16 %v5137
  %v5431 = vunpack.c.h.b16 %v5137
  %v5432 = vunpack.c.l.b16 %v5138
  %v5433 = vunpack.c.h.b16 %v5138
  %v5434 = vunpack.c.l.b16 %v5139
  %v5435 = vunpack.c.h.b16 %v5139
  %v5436 = vunpack.c.l.b16 %v5140
  %v5437 = vunpack.c.h.b16 %v5140
  %v5438 = vunpack.c.l.b16 %v5141
  %v5439 = vunpack.c.h.b16 %v5141
  %v5440 = vunpack.c.l.b16 %v5142
  %v5441 = vunpack.c.h.b16 %v5142
  %v5442 = vunpack.c.l.b16 %v5143
  %v5443 = vunpack.c.h.b16 %v5143
  %v5444 = vunpack.c.l.b16 %v5144
  %v5445 = vunpack.c.h.b16 %v5144
  %v5446 = vunpack.c.l.b16 %v5145
  %v5447 = vunpack.c.h.b16 %v5145
  %v5448 = vunpack.c.l.b16 %v5146
  %v5449 = vunpack.c.h.b16 %v5146
  %v5450 = vunpack.c.l.b16 %v5147
  %v5451 = vunpack.c.h.b16 %v5147
  %v5452 = vunpack.c.l.b16 %v5148
  %v5453 = vunpack.c.h.b16 %v5148
  %v5454 = vunpack.c.l.b16 %v5149
  %v5455 = vunpack.c.h.b16 %v5149
  %v5456 = vunpack.c.l.b16 %v5150
  %v5457 = vunpack.c.h.b16 %v5150
  %v5458 = vunpack.c.l.b16 %v5151
  %v5459 = vunpack.c.h.b16 %v5151
  %v5460 = vunpack.c.l.b16 %v5152
  %v5461 = vunpack.c.h.b16 %v5152
  %v5462 = vunpack.c.l.b16 %v5153
  %v5463 = vunpack.c.h.b16 %v5153
  %v5464 = vunpack.c.l.b16 %v5154
  %v5465 = vunpack.c.h.b16 %v5154
  %v5466 = vunpack.c.l.b16 %v5155
  %v5467 = vunpack.c.h.b16 %v5155
  %v5468 = vunpack.c.l.b16 %v5156
  %v5469 = vunpack.c.h.b16 %v5156
  %v5470 = vunpack.c.l.b16 %v5157
  %v5471 = vunpack.c.h.b16 %v5157
  %v5472 = vunpack.c.l.b16 %v5158
  %v5473 = vunpack.c.h.b16 %v5158
  %v5474 = vunpack.c.l.b16 %v5159
  %v5475 = vunpack.c.h.b16 %v5159
  %v5476 = vunpack.c.l.b16 %v5160
  %v5477 = vunpack.c.h.b16 %v5160
  %v5478 = vunpack.c.l.b16 %v5161
  %v5479 = vunpack.c.h.b16 %v5161
  %v5480 = vunpack.c.l.b16 %v5162
  %v5481 = vunpack.c.h.b16 %v5162
  %v5482 = vunpack.c.l.b16 %v5163
  %v5483 = vunpack.c.h.b16 %v5163
  %v5484 = vunpack.c.l.b16 %v5164
  %v5485 = vunpack.c.h.b16 %v5164
  %v5486 = vunpack.c.l.b16 %v5165
  %v5487 = vunpack.c.h.b16 %v5165
  %v5488 = vunpack.c.l.b16 %v5166
  %v5489 = vunpack.c.h.b16 %v5166
  %v5490 = vunpack.c.l.b16 %v5167
  %v5491 = vunpack.c.h.b16 %v5167
  %v5492 = vunpack.c.l.b16 %v5168
  %v5493 = vunpack.c.h.b16 %v5168
  %v5494 = vunpack.c.l.b16 %v5169
  %v5495 = vunpack.c.h.b16 %v5169
  %v5496 = vunpack.c.l.b16 %v5170
  %v5497 = vunpack.c.h.b16 %v5170
  %v5498 = vunpack.c.l.b16 %v5171
  %v5499 = vunpack.c.h.b16 %v5171
  %v5500 = vunpack.c.l.b16 %v5172
  %v5501 = vunpack.c.h.b16 %v5172
  %v5502 = vunpack.c.l.b16 %v5173
  %v5503 = vunpack.c.h.b16 %v5173
  %v5504 = vunpack.c.l.b16 %v5174
  %v5505 = vunpack.c.h.b16 %v5174
  %v5506 = vunpack.c.l.b16 %v5175
  %v5507 = vunpack.c.h.b16 %v5175
  %v5508 = vunpack.c.l.b16 %v5176
  %v5509 = vunpack.c.h.b16 %v5176
  %v5510 = vunpack.c.l.b16 %v5177
  %v5511 = vunpack.c.h.b16 %v5177
  %v5512 = vunpack.c.l.b16 %v5178
  %v5513 = vunpack.c.h.b16 %v5178
  %v5514 = vunpack.c.l.b16 %v5179
  %v5515 = vunpack.c.h.b16 %v5179
  %v5516 = vunpack.c.l.b16 %v5180
  %v5517 = vunpack.c.h.b16 %v5180
  %v5518 = vunpack.c.l.b16 %v5181
  %v5519 = vunpack.c.h.b16 %v5181
  %v5520 = vunpack.c.l.b16 %v5182
  %v5521 = vunpack.c.h.b16 %v5182
  %v5522 = vunpack.c.l.b16 %v5183
  %v5523 = vunpack.c.h.b16 %v5183
  %v5524 = vunpack.c.l.b16 %v5184
  %v5525 = vunpack.c.h.b16 %v5184
  %v5526 = vunpack.c.l.b16 %v5185
  %v5527 = vunpack.c.h.b16 %v5185
  %v5528 = vunpack.c.l.b16 %v5186
  %v5529 = vunpack.c.h.b16 %v5186
  %v5530 = vunpack.c.l.b16 %v5187
  %v5531 = vunpack.c.h.b16 %v5187
  %v5532 = vunpack.c.l.b16 %v5188
  %v5533 = vunpack.c.h.b16 %v5188
  %v5534 = vunpack.c.l.b16 %v5189
  %v5535 = vunpack.c.h.b16 %v5189
  %v5536 = vunpack.c.l.b16 %v5190
  %v5537 = vunpack.c.h.b16 %v5190
  %v5538 = vunpack.c.l.b16 %v5191
  %v5539 = vunpack.c.h.b16 %v5191
  %v5540 = vunpack.c.l.b16 %v5192
  %v5541 = vunpack.c.h.b16 %v5192
  %v5542 = vunpack.c.l.b16 %v5193
  %v5543 = vunpack.c.h.b16 %v5193
  %v5544 = vunpack.c.l.b16 %v5194
  %v5545 = vunpack.c.h.b16 %v5194
  %v5546 = vunpack.c.l.b16 %v5195
  %v5547 = vunpack.c.h.b16 %v5195
  %v5548 = vunpack.c.l.b16 %v5196
  %v5549 = vunpack.c.h.b16 %v5196
  %v5550 = vunpack.c.l.b16 %v5197
  %v5551 = vunpack.c.h.b16 %v5197
  %v5552 = vunpack.c.l.b16 %v5198
  %v5553 = vunpack.c.h.b16 %v5198
  %v5554 = vunpack.c.l.b16 %v5199
  %v5555 = vunpack.c.h.b16 %v5199
  %v5556 = vunpack.c.l.b16 %v5200
  %v5557 = vunpack.c.h.b16 %v5200
  %v5558 = vunpack.c.l.b16 %v5201
  %v5559 = vunpack.c.h.b16 %v5201
  %v5560 = vunpack.c.l.b16 %v5202
  %v5561 = vunpack.c.h.b16 %v5202
  %v5562 = vunpack.c.l.b16 %v5203
  %v5563 = vunpack.c.h.b16 %v5203
  %v5564 = vunpack.c.l.b16 %v5204
  %v5565 = vunpack.c.h.b16 %v5204
  %v5566 = vunpack.c.l.b16 %v5205
  %v5567 = vunpack.c.h.b16 %v5205
  %v5568 = vunpack.c.l.b16 %v5206
  %v5569 = vunpack.c.h.b16 %v5206
  %v5570 = vunpack.c.l.b16 %v5207
  %v5571 = vunpack.c.h.b16 %v5207
  %v5572 = vunpack.c.l.b16 %v5208
  %v5573 = vunpack.c.h.b16 %v5208
  %v5574 = vunpack.c.l.b16 %v5209
  %v5575 = vunpack.c.h.b16 %v5209
  %v5576 = vunpack.c.l.b16 %v5210
  %v5577 = vunpack.c.h.b16 %v5210
  %v5578 = vunpack.c.l.b16 %v5211
  %v5579 = vunpack.c.h.b16 %v5211
  %v5580 = vunpack.c.l.b16 %v5212
  %v5581 = vunpack.c.h.b16 %v5212
  %v5582 = vunpack.c.l.b16 %v5213
  %v5583 = vunpack.c.h.b16 %v5213
  %v5584 = vunpack.c.l.b16 %v5214
  %v5585 = vunpack.c.h.b16 %v5214
  %v5586 = vunpack.c.l.b16 %v5215
  %v5587 = vunpack.c.h.b16 %v5215
  %v5588 = vunpack.c.l.b16 %v5216
  %v5589 = vunpack.c.h.b16 %v5216
  %v5590 = vunpack.c.l.b16 %v5217
  %v5591 = vunpack.c.h.b16 %v5217
  %v5592 = vunpack.c.l.b16 %v5218
  %v5593 = vunpack.c.h.b16 %v5218
  %v5594 = vunpack.c.l.b16 %v5219
  %v5595 = vunpack.c.h.b16 %v5219
  %v5596 = vunpack.c.l.b16 %v5220
  %v5597 = vunpack.c.h.b16 %v5220
  %v5598 = vunpack.c.l.b16 %v5221
  %v5599 = vunpack.c.h.b16 %v5221
  %v5600 = vunpack.c.l.b16 %v5222
  %v5601 = vunpack.c.h.b16 %v5222
  %v5602 = vunpack.c.l.b16 %v5223
  %v5603 = vunpack.c.h.b16 %v5223
  %v5604 = vunpack.c.l.b16 %v5224
  %v5605 = vunpack.c.h.b16 %v5224
  %v5606 = vunpack.c.l.b16 %v5225
  %v5607 = vunpack.c.h.b16 %v5225
  %v5608 = vunpack.c.l.b16 %v5226
  %v5609 = vunpack.c.h.b16 %v5226
  %v5610 = vunpack.c.l.b16 %v5227
  %v5611 = vunpack.c.h.b16 %v5227
  %v5612 = vunpack.c.l.b16 %v5228
  %v5613 = vunpack.c.h.b16 %v5228
  %v5614 = vunpack.c.l.b16 %v5229
  %v5615 = vunpack.c.h.b16 %v5229
  %v5616 = vunpack.c.l.b16 %v5230
  %v5617 = vunpack.c.h.b16 %v5230
  %v5618 = vunpack.c.l.b16 %v5231
  %v5619 = vunpack.c.h.b16 %v5231
  %v5620 = vunpack.c.l.b16 %v5232
  %v5621 = vunpack.c.h.b16 %v5232
  %v5622 = vunpack.c.l.b16 %v5233
  %v5623 = vunpack.c.h.b16 %v5233
  %v5624 = vunpack.c.l.b16 %v5234
  %v5625 = vunpack.c.h.b16 %v5234
  %v5626 = vunpack.c.l.b16 %v5235
  %v5627 = vunpack.c.h.b16 %v5235
  %v5628 = vunpack.c.l.b16 %v5236
  %v5629 = vunpack.c.h.b16 %v5236
  %v5630 = vunpack.c.l.b16 %v5237
  %v5631 = vunpack.c.h.b16 %v5237
  %v5632 = vunpack.c.l.b16 %v5238
  %v5633 = vunpack.c.h.b16 %v5238
  %v5634 = vunpack.c.l.b16 %v5239
  %v5635 = vunpack.c.h.b16 %v5239
  %v5636 = vunpack.c.l.b16 %v5240
  %v5637 = vunpack.c.h.b16 %v5240
  %v5638 = vunpack.c.l.b16 %v5241
  %v5639 = vunpack.c.h.b16 %v5241
  %v5640 = vunpack.c.l.b16 %v5242
  %v5641 = vunpack.c.h.b16 %v5242
  %v5642 = vunpack.c.l.b16 %v5243
  %v5643 = vunpack.c.h.b16 %v5243
  %v5644 = vunpack.c.l.b16 %v5244
  %v5645 = vunpack.c.h.b16 %v5244
  %v5646 = vunpack.c.l.b16 %v5245
  %v5647 = vunpack.c.h.b16 %v5245
  %v5648 = vunpack.c.l.b16 %v5246
  %v5649 = vunpack.c.h.b16 %v5246
  %v5650 = vunpack.c.l.b16 %v5247
  %v5651 = vunpack.c.h.b16 %v5247
  %v5652 = vunpack.c.l.b16 %v5248
  %v5653 = vunpack.c.h.b16 %v5248
  %v5654 = vunpack.c.l.b16 %v5249
  %v5655 = vunpack.c.h.b16 %v5249
  %v5656 = vpack.c.b16 %v5404, %v5400
  %v5657 = vpack.c.b16 %v5405, %v5401
  %v5658 = vpack.c.b16 %v5406, %v5402
  %v5659 = vpack.c.b16 %v5407, %v5403
  %v5660 = vpack.c.b16 %v5412, %v5408
  %v5661 = vpack.c.b16 %v5413, %v5409
  %v5662 = vpack.c.b16 %v5414, %v5410
  %v5663 = vpack.c.b16 %v5415, %v5411
  %v5664 = vpack.c.b16 %v5420, %v5416
  %v5665 = vpack.c.b16 %v5421, %v5417
  %v5666 = vpack.c.b16 %v5422, %v5418
  %v5667 = vpack.c.b16 %v5423, %v5419
  %v5668 = vpack.c.b16 %v5428, %v5424
  %v5669 = vpack.c.b16 %v5429, %v5425
  %v5670 = vpack.c.b16 %v5430, %v5426
  %v5671 = vpack.c.b16 %v5431, %v5427
  %v5672 = vpack.c.b16 %v5436, %v5432
  %v5673 = vpack.c.b16 %v5437, %v5433
  %v5674 = vpack.c.b16 %v5438, %v5434
  %v5675 = vpack.c.b16 %v5439, %v5435
  %v5676 = vpack.c.b16 %v5444, %v5440
  %v5677 = vpack.c.b16 %v5445, %v5441
  %v5678 = vpack.c.b16 %v5446, %v5442
  %v5679 = vpack.c.b16 %v5447, %v5443
  %v5680 = vpack.c.b16 %v5452, %v5448
  %v5681 = vpack.c.b16 %v5453, %v5449
  %v5682 = vpack.c.b16 %v5454, %v5450
  %v5683 = vpack.c.b16 %v5455, %v5451
  %v5684 = vpack.c.b16 %v5460, %v5456
  %v5685 = vpack.c.b16 %v5461, %v5457
  %v5686 = vpack.c.b16 %v5462, %v5458
  %v5687 = vpack.c.b16 %v5463, %v5459
  %v5688 = vpack.c.b16 %v5468, %v5464
  %v5689 = vpack.c.b16 %v5469, %v5465
  %v5690 = vpack.c.b16 %v5470, %v5466
  %v5691 = vpack.c.b16 %v5471, %v5467
  %v5692 = vpack.c.b16 %v5476, %v5472
  %v5693 = vpack.c.b16 %v5477, %v5473
  %v5694 = vpack.c.b16 %v5478, %v5474
  %v5695 = vpack.c.b16 %v5479, %v5475
  %v5696 = vpack.c.b16 %v5484, %v5480
  %v5697 = vpack.c.b16 %v5485, %v5481
  %v5698 = vpack.c.b16 %v5486, %v5482
  %v5699 = vpack.c.b16 %v5487, %v5483
  %v5700 = vpack.c.b16 %v5492, %v5488
  %v5701 = vpack.c.b16 %v5493, %v5489
  %v5702 = vpack.c.b16 %v5494, %v5490
  %v5703 = vpack.c.b16 %v5495, %v5491
  %v5704 = vpack.c.b16 %v5500, %v5496
  %v5705 = vpack.c.b16 %v5501, %v5497
  %v5706 = vpack.c.b16 %v5502, %v5498
  %v5707 = vpack.c.b16 %v5503, %v5499
  %v5708 = vpack.c.b16 %v5508, %v5504
  %v5709 = vpack.c.b16 %v5509, %v5505
  %v5710 = vpack.c.b16 %v5510, %v5506
  %v5711 = vpack.c.b16 %v5511, %v5507
  %v5712 = vpack.c.b16 %v5516, %v5512
  %v5713 = vpack.c.b16 %v5517, %v5513
  %v5714 = vpack.c.b16 %v5518, %v5514
  %v5715 = vpack.c.b16 %v5519, %v5515
  %v5716 = vpack.c.b16 %v5524, %v5520
  %v5717 = vpack.c.b16 %v5525, %v5521
  %v5718 = vpack.c.b16 %v5526, %v5522
  %v5719 = vpack.c.b16 %v5527, %v5523
  %v5720 = vpack.c.b16 %v5532, %v5528
  %v5721 = vpack.c.b16 %v5533, %v5529
  %v5722 = vpack.c.b16 %v5534, %v5530
  %v5723 = vpack.c.b16 %v5535, %v5531
  %v5724 = vpack.c.b16 %v5540, %v5536
  %v5725 = vpack.c.b16 %v5541, %v5537
  %v5726 = vpack.c.b16 %v5542, %v5538
  %v5727 = vpack.c.b16 %v5543, %v5539
  %v5728 = vpack.c.b16 %v5548, %v5544
  %v5729 = vpack.c.b16 %v5549, %v5545
  %v5730 = vpack.c.b16 %v5550, %v5546
  %v5731 = vpack.c.b16 %v5551, %v5547
  %v5732 = vpack.c.b16 %v5556, %v5552
  %v5733 = vpack.c.b16 %v5557, %v5553
  %v5734 = vpack.c.b16 %v5558, %v5554
  %v5735 = vpack.c.b16 %v5559, %v5555
  %v5736 = vpack.c.b16 %v5564, %v5560
  %v5737 = vpack.c.b16 %v5565, %v5561
  %v5738 = vpack.c.b16 %v5566, %v5562
  %v5739 = vpack.c.b16 %v5567, %v5563
  %v5740 = vpack.c.b16 %v5572, %v5568
  %v5741 = vpack.c.b16 %v5573, %v5569
  %v5742 = vpack.c.b16 %v5574, %v5570
  %v5743 = vpack.c.b16 %v5575, %v5571
  %v5744 = vpack.c.b16 %v5580, %v5576
  %v5745 = vpack.c.b16 %v5581, %v5577
  %v5746 = vpack.c.b16 %v5582, %v5578
  %v5747 = vpack.c.b16 %v5583, %v5579
  %v5748 = vpack.c.b16 %v5588, %v5584
  %v5749 = vpack.c.b16 %v5589, %v5585
  %v5750 = vpack.c.b16 %v5590, %v5586
  %v5751 = vpack.c.b16 %v5591, %v5587
  %v5752 = vpack.c.b16 %v5596, %v5592
  %v5753 = vpack.c.b16 %v5597, %v5593
  %v5754 = vpack.c.b16 %v5598, %v5594
  %v5755 = vpack.c.b16 %v5599, %v5595
  %v5756 = vpack.c.b16 %v5604, %v5600
  %v5757 = vpack.c.b16 %v5605, %v5601
  %v5758 = vpack.c.b16 %v5606, %v5602
  %v5759 = vpack.c.b16 %v5607, %v5603
  %v5760 = vpack.c.b16 %v5612, %v5608
  %v5761 = vpack.c.b16 %v5613, %v5609
  %v5762 = vpack.c.b16 %v5614, %v5610
  %v5763 = vpack.c.b16 %v5615, %v5611
  %v5764 = vpack.c.b16 %v5620, %v5616
  %v5765 = vpack.c.b16 %v5621, %v5617
  %v5766 = vpack.c.b16 %v5622, %v5618
  %v5767 = vpack.c.b16 %v5623, %v5619
  %v5768 = vpack.c.b16 %v5628, %v5624
  %v5769 = vpack.c.b16 %v5629, %v5625
  %v5770 = vpack.c.b16 %v5630, %v5626
  %v5771 = vpack.c.b16 %v5631, %v5627
  %v5772 = vpack.c.b16 %v5636, %v5632
  %v5773 = vpack.c.b16 %v5637, %v5633
  %v5774 = vpack.c.b16 %v5638, %v5634
  %v5775 = vpack.c.b16 %v5639, %v5635
  %v5776 = vpack.c.b16 %v5644, %v5640
  %v5777 = vpack.c.b16 %v5645, %v5641
  %v5778 = vpack.c.b16 %v5646, %v5642
  %v5779 = vpack.c.b16 %v5647, %v5643
  %v5780 = vpack.c.b16 %v5652, %v5648
  %v5781 = vpack.c.b16 %v5653, %v5649
  %v5782 = vpack.c.b16 %v5654, %v5650
  %v5783 = vpack.c.b16 %v5655, %v5651
  %5912 = vmatprep.subr.bf16.mxu0 %v5657
  %5913 = vmatpush1.bf16.msra.mxu0 %v5656
  %5914 = vmatprep.subr.bf16.mxu0 %v5661
  %5915 = vmatpush1.bf16.msra.mxu0 %v5660
  %5916 = vmatprep.subr.bf16.mxu0 %v5665
  %5917 = vmatpush1.bf16.msra.mxu0 %v5664
  %5918 = vmatprep.subr.bf16.mxu0 %v5669
  %5919 = vmatpush1.bf16.msra.mxu0 %v5668
  %5920 = vmatprep.subr.bf16.mxu0 %v5673
  %5921 = vmatpush1.bf16.msra.mxu0 %v5672
  %5922 = vmatprep.subr.bf16.mxu0 %v5677
  %5923 = vmatpush1.bf16.msra.mxu0 %v5676
  %5924 = vmatprep.subr.bf16.mxu0 %v5681
  %5925 = vmatpush1.bf16.msra.mxu0 %v5680
  %5926 = vmatprep.subr.bf16.mxu0 %v5685
  %5927 = vmatpush1.bf16.msra.mxu0 %v5684
  %5928 = vmatprep.subr.bf16.mxu0 %v5689
  %5929 = vmatpush1.bf16.msra.mxu0 %v5688
  %5930 = vmatprep.subr.bf16.mxu0 %v5693
  %5931 = vmatpush1.bf16.msra.mxu0 %v5692
  %5932 = vmatprep.subr.bf16.mxu0 %v5697
  %5933 = vmatpush1.bf16.msra.mxu0 %v5696
  %5934 = vmatprep.subr.bf16.mxu0 %v5701
  %5935 = vmatpush1.bf16.msra.mxu0 %v5700
  %5936 = vmatprep.subr.bf16.mxu0 %v5705
  %5937 = vmatpush1.bf16.msra.mxu0 %v5704
  %5938 = vmatprep.subr.bf16.mxu0 %v5709
  %5939 = vmatpush1.bf16.msra.mxu0 %v5708
  %5940 = vmatprep.subr.bf16.mxu0 %v5713
  %5941 = vmatpush1.bf16.msra.mxu0 %v5712
  %5942 = vmatprep.subr.bf16.mxu0 %v5717
  %5943 = vmatpush1.bf16.msra.mxu0 %v5716
  %5944 = vmatprep.mubr.bf16.mxu0 %v5119
  %5945 = vmatmul.mubr.bf16.gmra.mrb[0].mxu0 %v5118
  %v5946 = vpop.f32.mrb[0].mxu0
  %v5947 = vadd.f32 %v5255, %v5946
  %v5948 = vpop.f32.mrb[0].mxu0
  %v5949 = vadd.f32 %v5259, %v5948
  %v5950 = vpop.f32.mrb[0].mxu0
  %v5951 = vpop.f32.mrb[0].mxu0
  %5952 = vdwg.mxu0
  %5953 = vmatprep.subr.bf16.mxu0 %v5721
  %5954 = vmatpush1.bf16.msra.mxu0 %v5720
  %5955 = vmatprep.subr.bf16.mxu0 %v5725
  %5956 = vmatpush1.bf16.msra.mxu0 %v5724
  %5957 = vmatprep.subr.bf16.mxu0 %v5729
  %5958 = vmatpush1.bf16.msra.mxu0 %v5728
  %5959 = vmatprep.subr.bf16.mxu0 %v5733
  %5960 = vmatpush1.bf16.msra.mxu0 %v5732
  %5961 = vmatprep.subr.bf16.mxu0 %v5737
  %5962 = vmatpush1.bf16.msra.mxu0 %v5736
  %5963 = vmatprep.subr.bf16.mxu0 %v5741
  %5964 = vmatpush1.bf16.msra.mxu0 %v5740
  %5965 = vmatprep.subr.bf16.mxu0 %v5745
  %5966 = vmatpush1.bf16.msra.mxu0 %v5744
  %5967 = vmatprep.subr.bf16.mxu0 %v5749
  %5968 = vmatpush1.bf16.msra.mxu0 %v5748
  %5969 = vmatprep.subr.bf16.mxu0 %v5753
  %5970 = vmatpush1.bf16.msra.mxu0 %v5752
  %5971 = vmatprep.subr.bf16.mxu0 %v5757
  %5972 = vmatpush1.bf16.msra.mxu0 %v5756
  %5973 = vmatprep.subr.bf16.mxu0 %v5761
  %5974 = vmatpush1.bf16.msra.mxu0 %v5760
  %5975 = vmatprep.subr.bf16.mxu0 %v5765
  %5976 = vmatpush1.bf16.msra.mxu0 %v5764
  %5977 = vmatprep.subr.bf16.mxu0 %v5769
  %5978 = vmatpush1.bf16.msra.mxu0 %v5768
  %5979 = vmatprep.subr.bf16.mxu0 %v5773
  %5980 = vmatpush1.bf16.msra.mxu0 %v5772
  %5981 = vmatprep.subr.bf16.mxu0 %v5777
  %5982 = vmatpush1.bf16.msra.mxu0 %v5776
  %5983 = vmatprep.subr.bf16.mxu0 %v5781
  %5984 = vmatpush1.bf16.msra.mxu0 %v5780
  %5985 = vmatprep.mubr.bf16.mxu0 %v5121
  %5986 = vmatmul.mubr.bf16.gmra.mrb[0].mxu0 %v5120
  %v5987 = vpop.f32.mrb[0].mxu0
  %v5988 = vadd.f32 %v5947, %v5987
  %v5989 = vpop.f32.mrb[0].mxu0
  %v5990 = vadd.f32 %v5949, %v5989
  %v5991 = vpop.f32.mrb[0].mxu0
  %v5992 = vpop.f32.mrb[0].mxu0
  %5993 = vdwg.mxu0
  %5994 = vmatprep.subr.bf16.mxu0 %v5659
  %5995 = vmatpush1.bf16.msra.mxu0 %v5658
  %5996 = vmatprep.subr.bf16.mxu0 %v5663
  %5997 = vmatpush1.bf16.msra.mxu0 %v5662
  %5998 = vmatprep.subr.bf16.mxu0 %v5667
  %5999 = vmatpush1.bf16.msra.mxu0 %v5666
  %6000 = vmatprep.subr.bf16.mxu0 %v5671
  %6001 = vmatpush1.bf16.msra.mxu0 %v5670
  %6002 = vmatprep.subr.bf16.mxu0 %v5675
  %6003 = vmatpush1.bf16.msra.mxu0 %v5674
  %6004 = vmatprep.subr.bf16.mxu0 %v5679
  %6005 = vmatpush1.bf16.msra.mxu0 %v5678
  %6006 = vmatprep.subr.bf16.mxu0 %v5683
  %6007 = vmatpush1.bf16.msra.mxu0 %v5682
  %6008 = vmatprep.subr.bf16.mxu0 %v5687
  %6009 = vmatpush1.bf16.msra.mxu0 %v5686
  %6010 = vmatprep.subr.bf16.mxu0 %v5691
  %6011 = vmatpush1.bf16.msra.mxu0 %v5690
  %6012 = vmatprep.subr.bf16.mxu0 %v5695
  %6013 = vmatpush1.bf16.msra.mxu0 %v5694
  %6014 = vmatprep.subr.bf16.mxu0 %v5699
  %6015 = vmatpush1.bf16.msra.mxu0 %v5698
  %6016 = vmatprep.subr.bf16.mxu0 %v5703
  %6017 = vmatpush1.bf16.msra.mxu0 %v5702
  %6018 = vmatprep.subr.bf16.mxu0 %v5707
  %6019 = vmatpush1.bf16.msra.mxu0 %v5706
  %6020 = vmatprep.subr.bf16.mxu0 %v5711
  %6021 = vmatpush1.bf16.msra.mxu0 %v5710
  %6022 = vmatprep.subr.bf16.mxu0 %v5715
  %6023 = vmatpush1.bf16.msra.mxu0 %v5714
  %6024 = vmatprep.subr.bf16.mxu0 %v5719
  %6025 = vmatpush1.bf16.msra.mxu0 %v5718
  %6026 = vmatprep.mubr.bf16.mxu0 %v5119
  %6027 = vmatmul.mubr.bf16.gmra.mrb[0].mxu0 %v5118
  %v6028 = vpop.f32.mrb[0].mxu0
  %v6029 = vadd.f32 %v5263, %v6028
  %v6030 = vpop.f32.mrb[0].mxu0
  %v6031 = vadd.f32 %v5267, %v6030
  %v6032 = vpop.f32.mrb[0].mxu0
  %v6033 = vpop.f32.mrb[0].mxu0
  %6034 = vdwg.mxu0
  %6035 = vmatprep.subr.bf16.mxu0 %v5723
  %6036 = vmatpush1.bf16.msra.mxu0 %v5722
  %6037 = vmatprep.subr.bf16.mxu0 %v5727
  %6038 = vmatpush1.bf16.msra.mxu0 %v5726
  %6039 = vmatprep.subr.bf16.mxu0 %v5731
  %6040 = vmatpush1.bf16.msra.mxu0 %v5730
  %6041 = vmatprep.subr.bf16.mxu0 %v5735
  %6042 = vmatpush1.bf16.msra.mxu0 %v5734
  %6043 = vmatprep.subr.bf16.mxu0 %v5739
  %6044 = vmatpush1.bf16.msra.mxu0 %v5738
  %6045 = vmatprep.subr.bf16.mxu0 %v5743
  %6046 = vmatpush1.bf16.msra.mxu0 %v5742
  %6047 = vmatprep.subr.bf16.mxu0 %v5747
  %6048 = vmatpush1.bf16.msra.mxu0 %v5746
  %6049 = vmatprep.subr.bf16.mxu0 %v5751
  %6050 = vmatpush1.bf16.msra.mxu0 %v5750
  %6051 = vmatprep.subr.bf16.mxu0 %v5755
  %6052 = vmatpush1.bf16.msra.mxu0 %v5754
  %6053 = vmatprep.subr.bf16.mxu0 %v5759
  %6054 = vmatpush1.bf16.msra.mxu0 %v5758
  %6055 = vmatprep.subr.bf16.mxu0 %v5763
  %6056 = vmatpush1.bf16.msra.mxu0 %v5762
  %6057 = vmatprep.subr.bf16.mxu0 %v5767
  %6058 = vmatpush1.bf16.msra.mxu0 %v5766
  %6059 = vmatprep.subr.bf16.mxu0 %v5771
  %6060 = vmatpush1.bf16.msra.mxu0 %v5770
  %6061 = vmatprep.subr.bf16.mxu0 %v5775
  %6062 = vmatpush1.bf16.msra.mxu0 %v5774
  %6063 = vmatprep.subr.bf16.mxu0 %v5779
  %6064 = vmatpush1.bf16.msra.mxu0 %v5778
  %6065 = vmatprep.subr.bf16.mxu0 %v5783
  %6066 = vmatpush1.bf16.msra.mxu0 %v5782
  %6067 = vmatprep.mubr.bf16.mxu0 %v5121
  %6068 = vmatmul.mubr.bf16.gmra.mrb[0].mxu0 %v5120
  %v6069 = vpop.f32.mrb[0].mxu0
  %v6070 = vadd.f32 %v6029, %v6069
  %v6071 = vpop.f32.mrb[0].mxu0
  %v6072 = vadd.f32 %v6031, %v6071
  %v6073 = vpop.f32.mrb[0].mxu0
  %v6074 = vpop.f32.mrb[0].mxu0
  %6075 = vdwg.mxu0
  %v6076 = vmax.f32 %v5988, 0.0
  %v6077 = vmax.f32 %v5990, 0.0
  %v6078 = vmax.f32 %v6070, 0.0
  %v6079 = vmax.f32 %v6072, 0.0
  %v6080 = vpack.c.bf16 %v6076, %v6076
  %v6081 = vpack.c.bf16 %v6077, %v6077
  %v6082 = vpack.c.bf16 %v6078, %v6078
  %v6083 = vpack.c.bf16 %v6079, %v6079
  %v6084 = vld [vmem:[%s9] sm:$0xff]
  %v6085 = vld [vmem:[%s9 + $0x8] sm:$0xff]
  %v6086 = vld [vmem:[%s9 + $0x10] sm:$0xff]
  %v6087 = vld [vmem:[%s9 + $0x18] sm:$0xff]
  %v6088 = vld [vmem:[%s9 + $0x20] sm:$0xff]
  %v6089 = vld [vmem:[%s9 + $0x28] sm:$0xff]
  %v6090 = vld [vmem:[%s9 + $0x30] sm:$0xff]
  %v6091 = vld [vmem:[%s9 + $0x38] sm:$0xff]
  %v6092 = vld [vmem:[%s9 + $0x40] sm:$0xff]
  %v6093 = vld [vmem:[%s9 + $0x48] sm:$0xff]
  %v6094 = vld [vmem:[%s9 + $0x50] sm:$0xff]
  %v6095 = vld [vmem:[%s9 + $0x58] sm:$0xff]
  %v6096 = vld [vmem:[%s9 + $0x60] sm:$0xff]
  %v6097 = vld [vmem:[%s9 + $0x68] sm:$0xff]
  %v6098 = vld [vmem:[%s9 + $0x70] sm:$0xff]
  %v6099 = vld [vmem:[%s9 + $0x78] sm:$0xff]
  %v6100 = vld [vmem:[%s9 + $0x80] sm:$0xff]
  %v6101 = vld [vmem:[%s9 + $0x88] sm:$0xff]
  %v6102 = vld [vmem:[%s9 + $0x90] sm:$0xff]
  %v6103 = vld [vmem:[%s9 + $0x98] sm:$0xff]
  %v6104 = vld [vmem:[%s9 + $0xa0] sm:$0xff]
  %v6105 = vld [vmem:[%s9 + $0xa8] sm:$0xff]
  %v6106 = vld [vmem:[%s9 + $0xb0] sm:$0xff]
  %v6107 = vld [vmem:[%s9 + $0xb8] sm:$0xff]
  %v6108 = vld [vmem:[%s9 + $0xc0] sm:$0xff]
  %v6109 = vld [vmem:[%s9 + $0xc8] sm:$0xff]
  %v6110 = vld [vmem:[%s9 + $0xd0] sm:$0xff]
  %v6111 = vld [vmem:[%s9 + $0xd8] sm:$0xff]
  %v6112 = vld [vmem:[%s9 + $0xe0] sm:$0xff]
  %v6113 = vld [vmem:[%s9 + $0xe8] sm:$0xff]
  %v6114 = vld [vmem:[%s9 + $0xf0] sm:$0xff]
  %v6115 = vld [vmem:[%s9 + $0xf8] sm:$0xff]
  %v6116 = vld [vmem:[%s9 + $0x100] sm:$0xff]
  %v6117 = vld [vmem:[%s9 + $0x108] sm:$0xff]
  %v6118 = vld [vmem:[%s9 + $0x110] sm:$0xff]
  %v6119 = vld [vmem:[%s9 + $0x118] sm:$0xff]
  %v6120 = vld [vmem:[%s9 + $0x120] sm:$0xff]
  %v6121 = vld [vmem:[%s9 + $0x128] sm:$0xff]
  %v6122 = vld [vmem:[%s9 + $0x130] sm:$0xff]
  %v6123 = vld [vmem:[%s9 + $0x138] sm:$0xff]
  %v6124 = vld [vmem:[%s9 + $0x140] sm:$0xff]
  %v6125 = vld [vmem:[%s9 + $0x148] sm:$0xff]
  %v6126 = vld [vmem:[%s9 + $0x150] sm:$0xff]
  %v6127 = vld [vmem:[%s9 + $0x158] sm:$0xff]
  %v6128 = vld [vmem:[%s9 + $0x160] sm:$0xff]
  %v6129 = vld [vmem:[%s9 + $0x168] sm:$0xff]
  %v6130 = vld [vmem:[%s9 + $0x170] sm:$0xff]
  %v6131 = vld [vmem:[%s9 + $0x178] sm:$0xff]
  %v6132 = vld [vmem:[%s9 + $0x180] sm:$0xff]
  %v6133 = vld [vmem:[%s9 + $0x188] sm:$0xff]
  %v6134 = vld [vmem:[%s9 + $0x190] sm:$0xff]
  %v6135 = vld [vmem:[%s9 + $0x198] sm:$0xff]
  %v6136 = vld [vmem:[%s9 + $0x1a0] sm:$0xff]
  %v6137 = vld [vmem:[%s9 + $0x1a8] sm:$0xff]
  %v6138 = vld [vmem:[%s9 + $0x1b0] sm:$0xff]
  %v6139 = vld [vmem:[%s9 + $0x1b8] sm:$0xff]
  %v6140 = vld [vmem:[%s9 + $0x1c0] sm:$0xff]
  %v6141 = vld [vmem:[%s9 + $0x1c8] sm:$0xff]
  %v6142 = vld [vmem:[%s9 + $0x1d0] sm:$0xff]
  %v6143 = vld [vmem:[%s9 + $0x1d8] sm:$0xff]
  %v6144 = vld [vmem:[%s9 + $0x1e0] sm:$0xff]
  %v6145 = vld [vmem:[%s9 + $0x1e8] sm:$0xff]
  %v6146 = vld [vmem:[%s9 + $0x1f0] sm:$0xff]
  %v6147 = vld [vmem:[%s9 + $0x1f8] sm:$0xff]
  %v6148 = vld [vmem:[%s9 + $0x200] sm:$0xff]
  %v6149 = vld [vmem:[%s9 + $0x208] sm:$0xff]
  %v6150 = vld [vmem:[%s9 + $0x210] sm:$0xff]
  %v6151 = vld [vmem:[%s9 + $0x218] sm:$0xff]
  %v6152 = vld [vmem:[%s9 + $0x220] sm:$0xff]
  %v6153 = vld [vmem:[%s9 + $0x228] sm:$0xff]
  %v6154 = vld [vmem:[%s9 + $0x230] sm:$0xff]
  %v6155 = vld [vmem:[%s9 + $0x238] sm:$0xff]
  %v6156 = vld [vmem:[%s9 + $0x240] sm:$0xff]
  %v6157 = vld [vmem:[%s9 + $0x248] sm:$0xff]
  %v6158 = vld [vmem:[%s9 + $0x250] sm:$0xff]
  %v6159 = vld [vmem:[%s9 + $0x258] sm:$0xff]
  %v6160 = vld [vmem:[%s9 + $0x260] sm:$0xff]
  %v6161 = vld [vmem:[%s9 + $0x268] sm:$0xff]
  %v6162 = vld [vmem:[%s9 + $0x270] sm:$0xff]
  %v6163 = vld [vmem:[%s9 + $0x278] sm:$0xff]
  %v6164 = vld [vmem:[%s9 + $0x280] sm:$0xff]
  %v6165 = vld [vmem:[%s9 + $0x288] sm:$0xff]
  %v6166 = vld [vmem:[%s9 + $0x290] sm:$0xff]
  %v6167 = vld [vmem:[%s9 + $0x298] sm:$0xff]
  %v6168 = vld [vmem:[%s9 + $0x2a0] sm:$0xff]
  %v6169 = vld [vmem:[%s9 + $0x2a8] sm:$0xff]
  %v6170 = vld [vmem:[%s9 + $0x2b0] sm:$0xff]
  %v6171 = vld [vmem:[%s9 + $0x2b8] sm:$0xff]
  %v6172 = vld [vmem:[%s9 + $0x2c0] sm:$0xff]
  %v6173 = vld [vmem:[%s9 + $0x2c8] sm:$0xff]
  %v6174 = vld [vmem:[%s9 + $0x2d0] sm:$0xff]
  %v6175 = vld [vmem:[%s9 + $0x2d8] sm:$0xff]
  %v6176 = vld [vmem:[%s9 + $0x2e0] sm:$0xff]
  %v6177 = vld [vmem:[%s9 + $0x2e8] sm:$0xff]
  %v6178 = vld [vmem:[%s9 + $0x2f0] sm:$0xff]
  %v6179 = vld [vmem:[%s9 + $0x2f8] sm:$0xff]
  %v6180 = vld [vmem:[%s9 + $0x300] sm:$0xff]
  %v6181 = vld [vmem:[%s9 + $0x308] sm:$0xff]
  %v6182 = vld [vmem:[%s9 + $0x310] sm:$0xff]
  %v6183 = vld [vmem:[%s9 + $0x318] sm:$0xff]
  %v6184 = vld [vmem:[%s9 + $0x320] sm:$0xff]
  %v6185 = vld [vmem:[%s9 + $0x328] sm:$0xff]
  %v6186 = vld [vmem:[%s9 + $0x330] sm:$0xff]
  %v6187 = vld [vmem:[%s9 + $0x338] sm:$0xff]
  %v6188 = vld [vmem:[%s9 + $0x340] sm:$0xff]
  %v6189 = vld [vmem:[%s9 + $0x348] sm:$0xff]
  %v6190 = vld [vmem:[%s9 + $0x350] sm:$0xff]
  %v6191 = vld [vmem:[%s9 + $0x358] sm:$0xff]
  %v6192 = vld [vmem:[%s9 + $0x360] sm:$0xff]
  %v6193 = vld [vmem:[%s9 + $0x368] sm:$0xff]
  %v6194 = vld [vmem:[%s9 + $0x370] sm:$0xff]
  %v6195 = vld [vmem:[%s9 + $0x378] sm:$0xff]
  %v6196 = vld [vmem:[%s9 + $0x380] sm:$0xff]
  %v6197 = vld [vmem:[%s9 + $0x388] sm:$0xff]
  %v6198 = vld [vmem:[%s9 + $0x390] sm:$0xff]
  %v6199 = vld [vmem:[%s9 + $0x398] sm:$0xff]
  %v6200 = vld [vmem:[%s9 + $0x3a0] sm:$0xff]
  %v6201 = vld [vmem:[%s9 + $0x3a8] sm:$0xff]
  %v6202 = vld [vmem:[%s9 + $0x3b0] sm:$0xff]
  %v6203 = vld [vmem:[%s9 + $0x3b8] sm:$0xff]
  %v6204 = vld [vmem:[%s9 + $0x3c0] sm:$0xff]
  %v6205 = vld [vmem:[%s9 + $0x3c8] sm:$0xff]
  %v6206 = vld [vmem:[%s9 + $0x3d0] sm:$0xff]
  %v6207 = vld [vmem:[%s9 + $0x3d8] sm:$0xff]
  %v6208 = vld [vmem:[%s9 + $0x3e0] sm:$0xff]
  %v6209 = vld [vmem:[%s9 + $0x3e8] sm:$0xff]
  %v6210 = vld [vmem:[%s9 + $0x3f0] sm:$0xff]
  %v6211 = vld [vmem:[%s9 + $0x3f8] sm:$0xff]
  %v6212 = vld [vmem:[%s10] sm:$0xf]
  %v6214 = vlaneseq
  %v6215 = vshrl.u32 %v6214, 7
  %v6216 = vsub.s32 0, %v6215
  %v6217 = vrot.slane %v6212, %v6216
  %v6218 = vlaneseq
  %v6219 = vshrl.u32 %v6218, 7
  %v6220 = vsub.s32 1, %v6219
  %v6221 = vrot.slane %v6212, %v6220
  %v6222 = vlaneseq
  %v6223 = vshrl.u32 %v6222, 7
  %v6224 = vsub.s32 2, %v6223
  %v6225 = vrot.slane %v6212, %v6224
  %v6226 = vlaneseq
  %v6227 = vshrl.u32 %v6226, 7
  %v6228 = vsub.s32 3, %v6227
  %v6229 = vrot.slane %v6212, %v6228
  %v6362 = vunpack.c.l.b16 %v6084
  %v6363 = vunpack.c.h.b16 %v6084
  %v6364 = vunpack.c.l.b16 %v6085
  %v6365 = vunpack.c.h.b16 %v6085
  %v6366 = vunpack.c.l.b16 %v6086
  %v6367 = vunpack.c.h.b16 %v6086
  %v6368 = vunpack.c.l.b16 %v6087
  %v6369 = vunpack.c.h.b16 %v6087
  %v6370 = vunpack.c.l.b16 %v6088
  %v6371 = vunpack.c.h.b16 %v6088
  %v6372 = vunpack.c.l.b16 %v6089
  %v6373 = vunpack.c.h.b16 %v6089
  %v6374 = vunpack.c.l.b16 %v6090
  %v6375 = vunpack.c.h.b16 %v6090
  %v6376 = vunpack.c.l.b16 %v6091
  %v6377 = vunpack.c.h.b16 %v6091
  %v6378 = vunpack.c.l.b16 %v6092
  %v6379 = vunpack.c.h.b16 %v6092
  %v6380 = vunpack.c.l.b16 %v6093
  %v6381 = vunpack.c.h.b16 %v6093
  %v6382 = vunpack.c.l.b16 %v6094
  %v6383 = vunpack.c.h.b16 %v6094
  %v6384 = vunpack.c.l.b16 %v6095
  %v6385 = vunpack.c.h.b16 %v6095
  %v6386 = vunpack.c.l.b16 %v6096
  %v6387 = vunpack.c.h.b16 %v6096
  %v6388 = vunpack.c.l.b16 %v6097
  %v6389 = vunpack.c.h.b16 %v6097
  %v6390 = vunpack.c.l.b16 %v6098
  %v6391 = vunpack.c.h.b16 %v6098
  %v6392 = vunpack.c.l.b16 %v6099
  %v6393 = vunpack.c.h.b16 %v6099
  %v6394 = vunpack.c.l.b16 %v6100
  %v6395 = vunpack.c.h.b16 %v6100
  %v6396 = vunpack.c.l.b16 %v6101
  %v6397 = vunpack.c.h.b16 %v6101
  %v6398 = vunpack.c.l.b16 %v6102
  %v6399 = vunpack.c.h.b16 %v6102
  %v6400 = vunpack.c.l.b16 %v6103
  %v6401 = vunpack.c.h.b16 %v6103
  %v6402 = vunpack.c.l.b16 %v6104
  %v6403 = vunpack.c.h.b16 %v6104
  %v6404 = vunpack.c.l.b16 %v6105
  %v6405 = vunpack.c.h.b16 %v6105
  %v6406 = vunpack.c.l.b16 %v6106
  %v6407 = vunpack.c.h.b16 %v6106
  %v6408 = vunpack.c.l.b16 %v6107
  %v6409 = vunpack.c.h.b16 %v6107
  %v6410 = vunpack.c.l.b16 %v6108
  %v6411 = vunpack.c.h.b16 %v6108
  %v6412 = vunpack.c.l.b16 %v6109
  %v6413 = vunpack.c.h.b16 %v6109
  %v6414 = vunpack.c.l.b16 %v6110
  %v6415 = vunpack.c.h.b16 %v6110
  %v6416 = vunpack.c.l.b16 %v6111
  %v6417 = vunpack.c.h.b16 %v6111
  %v6418 = vunpack.c.l.b16 %v6112
  %v6419 = vunpack.c.h.b16 %v6112
  %v6420 = vunpack.c.l.b16 %v6113
  %v6421 = vunpack.c.h.b16 %v6113
  %v6422 = vunpack.c.l.b16 %v6114
  %v6423 = vunpack.c.h.b16 %v6114
  %v6424 = vunpack.c.l.b16 %v6115
  %v6425 = vunpack.c.h.b16 %v6115
  %v6426 = vunpack.c.l.b16 %v6116
  %v6427 = vunpack.c.h.b16 %v6116
  %v6428 = vunpack.c.l.b16 %v6117
  %v6429 = vunpack.c.h.b16 %v6117
  %v6430 = vunpack.c.l.b16 %v6118
  %v6431 = vunpack.c.h.b16 %v6118
  %v6432 = vunpack.c.l.b16 %v6119
  %v6433 = vunpack.c.h.b16 %v6119
  %v6434 = vunpack.c.l.b16 %v6120
  %v6435 = vunpack.c.h.b16 %v6120
  %v6436 = vunpack.c.l.b16 %v6121
  %v6437 = vunpack.c.h.b16 %v6121
  %v6438 = vunpack.c.l.b16 %v6122
  %v6439 = vunpack.c.h.b16 %v6122
  %v6440 = vunpack.c.l.b16 %v6123
  %v6441 = vunpack.c.h.b16 %v6123
  %v6442 = vunpack.c.l.b16 %v6124
  %v6443 = vunpack.c.h.b16 %v6124
  %v6444 = vunpack.c.l.b16 %v6125
  %v6445 = vunpack.c.h.b16 %v6125
  %v6446 = vunpack.c.l.b16 %v6126
  %v6447 = vunpack.c.h.b16 %v6126
  %v6448 = vunpack.c.l.b16 %v6127
  %v6449 = vunpack.c.h.b16 %v6127
  %v6450 = vunpack.c.l.b16 %v6128
  %v6451 = vunpack.c.h.b16 %v6128
  %v6452 = vunpack.c.l.b16 %v6129
  %v6453 = vunpack.c.h.b16 %v6129
  %v6454 = vunpack.c.l.b16 %v6130
  %v6455 = vunpack.c.h.b16 %v6130
  %v6456 = vunpack.c.l.b16 %v6131
  %v6457 = vunpack.c.h.b16 %v6131
  %v6458 = vunpack.c.l.b16 %v6132
  %v6459 = vunpack.c.h.b16 %v6132
  %v6460 = vunpack.c.l.b16 %v6133
  %v6461 = vunpack.c.h.b16 %v6133
  %v6462 = vunpack.c.l.b16 %v6134
  %v6463 = vunpack.c.h.b16 %v6134
  %v6464 = vunpack.c.l.b16 %v6135
  %v6465 = vunpack.c.h.b16 %v6135
  %v6466 = vunpack.c.l.b16 %v6136
  %v6467 = vunpack.c.h.b16 %v6136
  %v6468 = vunpack.c.l.b16 %v6137
  %v6469 = vunpack.c.h.b16 %v6137
  %v6470 = vunpack.c.l.b16 %v6138
  %v6471 = vunpack.c.h.b16 %v6138
  %v6472 = vunpack.c.l.b16 %v6139
  %v6473 = vunpack.c.h.b16 %v6139
  %v6474 = vunpack.c.l.b16 %v6140
  %v6475 = vunpack.c.h.b16 %v6140
  %v6476 = vunpack.c.l.b16 %v6141
  %v6477 = vunpack.c.h.b16 %v6141
  %v6478 = vunpack.c.l.b16 %v6142
  %v6479 = vunpack.c.h.b16 %v6142
  %v6480 = vunpack.c.l.b16 %v6143
  %v6481 = vunpack.c.h.b16 %v6143
  %v6482 = vunpack.c.l.b16 %v6144
  %v6483 = vunpack.c.h.b16 %v6144
  %v6484 = vunpack.c.l.b16 %v6145
  %v6485 = vunpack.c.h.b16 %v6145
  %v6486 = vunpack.c.l.b16 %v6146
  %v6487 = vunpack.c.h.b16 %v6146
  %v6488 = vunpack.c.l.b16 %v6147
  %v6489 = vunpack.c.h.b16 %v6147
  %v6490 = vunpack.c.l.b16 %v6148
  %v6491 = vunpack.c.h.b16 %v6148
  %v6492 = vunpack.c.l.b16 %v6149
  %v6493 = vunpack.c.h.b16 %v6149
  %v6494 = vunpack.c.l.b16 %v6150
  %v6495 = vunpack.c.h.b16 %v6150
  %v6496 = vunpack.c.l.b16 %v6151
  %v6497 = vunpack.c.h.b16 %v6151
  %v6498 = vunpack.c.l.b16 %v6152
  %v6499 = vunpack.c.h.b16 %v6152
  %v6500 = vunpack.c.l.b16 %v6153
  %v6501 = vunpack.c.h.b16 %v6153
  %v6502 = vunpack.c.l.b16 %v6154
  %v6503 = vunpack.c.h.b16 %v6154
  %v6504 = vunpack.c.l.b16 %v6155
  %v6505 = vunpack.c.h.b16 %v6155
  %v6506 = vunpack.c.l.b16 %v6156
  %v6507 = vunpack.c.h.b16 %v6156
  %v6508 = vunpack.c.l.b16 %v6157
  %v6509 = vunpack.c.h.b16 %v6157
  %v6510 = vunpack.c.l.b16 %v6158
  %v6511 = vunpack.c.h.b16 %v6158
  %v6512 = vunpack.c.l.b16 %v6159
  %v6513 = vunpack.c.h.b16 %v6159
  %v6514 = vunpack.c.l.b16 %v6160
  %v6515 = vunpack.c.h.b16 %v6160
  %v6516 = vunpack.c.l.b16 %v6161
  %v6517 = vunpack.c.h.b16 %v6161
  %v6518 = vunpack.c.l.b16 %v6162
  %v6519 = vunpack.c.h.b16 %v6162
  %v6520 = vunpack.c.l.b16 %v6163
  %v6521 = vunpack.c.h.b16 %v6163
  %v6522 = vunpack.c.l.b16 %v6164
  %v6523 = vunpack.c.h.b16 %v6164
  %v6524 = vunpack.c.l.b16 %v6165
  %v6525 = vunpack.c.h.b16 %v6165
  %v6526 = vunpack.c.l.b16 %v6166
  %v6527 = vunpack.c.h.b16 %v6166
  %v6528 = vunpack.c.l.b16 %v6167
  %v6529 = vunpack.c.h.b16 %v6167
  %v6530 = vunpack.c.l.b16 %v6168
  %v6531 = vunpack.c.h.b16 %v6168
  %v6532 = vunpack.c.l.b16 %v6169
  %v6533 = vunpack.c.h.b16 %v6169
  %v6534 = vunpack.c.l.b16 %v6170
  %v6535 = vunpack.c.h.b16 %v6170
  %v6536 = vunpack.c.l.b16 %v6171
  %v6537 = vunpack.c.h.b16 %v6171
  %v6538 = vunpack.c.l.b16 %v6172
  %v6539 = vunpack.c.h.b16 %v6172
  %v6540 = vunpack.c.l.b16 %v6173
  %v6541 = vunpack.c.h.b16 %v6173
  %v6542 = vunpack.c.l.b16 %v6174
  %v6543 = vunpack.c.h.b16 %v6174
  %v6544 = vunpack.c.l.b16 %v6175
  %v6545 = vunpack.c.h.b16 %v6175
  %v6546 = vunpack.c.l.b16 %v6176
  %v6547 = vunpack.c.h.b16 %v6176
  %v6548 = vunpack.c.l.b16 %v6177
  %v6549 = vunpack.c.h.b16 %v6177
  %v6550 = vunpack.c.l.b16 %v6178
  %v6551 = vunpack.c.h.b16 %v6178
  %v6552 = vunpack.c.l.b16 %v6179
  %v6553 = vunpack.c.h.b16 %v6179
  %v6554 = vunpack.c.l.b16 %v6180
  %v6555 = vunpack.c.h.b16 %v6180
  %v6556 = vunpack.c.l.b16 %v6181
  %v6557 = vunpack.c.h.b16 %v6181
  %v6558 = vunpack.c.l.b16 %v6182
  %v6559 = vunpack.c.h.b16 %v6182
  %v6560 = vunpack.c.l.b16 %v6183
  %v6561 = vunpack.c.h.b16 %v6183
  %v6562 = vunpack.c.l.b16 %v6184
  %v6563 = vunpack.c.h.b16 %v6184
  %v6564 = vunpack.c.l.b16 %v6185
  %v6565 = vunpack.c.h.b16 %v6185
  %v6566 = vunpack.c.l.b16 %v6186
  %v6567 = vunpack.c.h.b16 %v6186
  %v6568 = vunpack.c.l.b16 %v6187
  %v6569 = vunpack.c.h.b16 %v6187
  %v6570 = vunpack.c.l.b16 %v6188
  %v6571 = vunpack.c.h.b16 %v6188
  %v6572 = vunpack.c.l.b16 %v6189
  %v6573 = vunpack.c.h.b16 %v6189
  %v6574 = vunpack.c.l.b16 %v6190
  %v6575 = vunpack.c.h.b16 %v6190
  %v6576 = vunpack.c.l.b16 %v6191
  %v6577 = vunpack.c.h.b16 %v6191
  %v6578 = vunpack.c.l.b16 %v6192
  %v6579 = vunpack.c.h.b16 %v6192
  %v6580 = vunpack.c.l.b16 %v6193
  %v6581 = vunpack.c.h.b16 %v6193
  %v6582 = vunpack.c.l.b16 %v6194
  %v6583 = vunpack.c.h.b16 %v6194
  %v6584 = vunpack.c.l.b16 %v6195
  %v6585 = vunpack.c.h.b16 %v6195
  %v6586 = vunpack.c.l.b16 %v6196
  %v6587 = vunpack.c.h.b16 %v6196
  %v6588 = vunpack.c.l.b16 %v6197
  %v6589 = vunpack.c.h.b16 %v6197
  %v6590 = vunpack.c.l.b16 %v6198
  %v6591 = vunpack.c.h.b16 %v6198
  %v6592 = vunpack.c.l.b16 %v6199
  %v6593 = vunpack.c.h.b16 %v6199
  %v6594 = vunpack.c.l.b16 %v6200
  %v6595 = vunpack.c.h.b16 %v6200
  %v6596 = vunpack.c.l.b16 %v6201
  %v6597 = vunpack.c.h.b16 %v6201
  %v6598 = vunpack.c.l.b16 %v6202
  %v6599 = vunpack.c.h.b16 %v6202
  %v6600 = vunpack.c.l.b16 %v6203
  %v6601 = vunpack.c.h.b16 %v6203
  %v6602 = vunpack.c.l.b16 %v6204
  %v6603 = vunpack.c.h.b16 %v6204
  %v6604 = vunpack.c.l.b16 %v6205
  %v6605 = vunpack.c.h.b16 %v6205
  %v6606 = vunpack.c.l.b16 %v6206
  %v6607 = vunpack.c.h.b16 %v6206
  %v6608 = vunpack.c.l.b16 %v6207
  %v6609 = vunpack.c.h.b16 %v6207
  %v6610 = vunpack.c.l.b16 %v6208
  %v6611 = vunpack.c.h.b16 %v6208
  %v6612 = vunpack.c.l.b16 %v6209
  %v6613 = vunpack.c.h.b16 %v6209
  %v6614 = vunpack.c.l.b16 %v6210
  %v6615 = vunpack.c.h.b16 %v6210
  %v6616 = vunpack.c.l.b16 %v6211
  %v6617 = vunpack.c.h.b16 %v6211
  %v6618 = vpack.c.b16 %v6366, %v6362
  %v6619 = vpack.c.b16 %v6367, %v6363
  %v6620 = vpack.c.b16 %v6368, %v6364
  %v6621 = vpack.c.b16 %v6369, %v6365
  %v6622 = vpack.c.b16 %v6374, %v6370
  %v6623 = vpack.c.b16 %v6375, %v6371
  %v6624 = vpack.c.b16 %v6376, %v6372
  %v6625 = vpack.c.b16 %v6377, %v6373
  %v6626 = vpack.c.b16 %v6382, %v6378
  %v6627 = vpack.c.b16 %v6383, %v6379
  %v6628 = vpack.c.b16 %v6384, %v6380
  %v6629 = vpack.c.b16 %v6385, %v6381
  %v6630 = vpack.c.b16 %v6390, %v6386
  %v6631 = vpack.c.b16 %v6391, %v6387
  %v6632 = vpack.c.b16 %v6392, %v6388
  %v6633 = vpack.c.b16 %v6393, %v6389
  %v6634 = vpack.c.b16 %v6398, %v6394
  %v6635 = vpack.c.b16 %v6399, %v6395
  %v6636 = vpack.c.b16 %v6400, %v6396
  %v6637 = vpack.c.b16 %v6401, %v6397
  %v6638 = vpack.c.b16 %v6406, %v6402
  %v6639 = vpack.c.b16 %v6407, %v6403
  %v6640 = vpack.c.b16 %v6408, %v6404
  %v6641 = vpack.c.b16 %v6409, %v6405
  %v6642 = vpack.c.b16 %v6414, %v6410
  %v6643 = vpack.c.b16 %v6415, %v6411
  %v6644 = vpack.c.b16 %v6416, %v6412
  %v6645 = vpack.c.b16 %v6417, %v6413
  %v6646 = vpack.c.b16 %v6422, %v6418
  %v6647 = vpack.c.b16 %v6423, %v6419
  %v6648 = vpack.c.b16 %v6424, %v6420
  %v6649 = vpack.c.b16 %v6425, %v6421
  %v6650 = vpack.c.b16 %v6430, %v6426
  %v6651 = vpack.c.b16 %v6431, %v6427
  %v6652 = vpack.c.b16 %v6432, %v6428
  %v6653 = vpack.c.b16 %v6433, %v6429
  %v6654 = vpack.c.b16 %v6438, %v6434
  %v6655 = vpack.c.b16 %v6439, %v6435
  %v6656 = vpack.c.b16 %v6440, %v6436
  %v6657 = vpack.c.b16 %v6441, %v6437
  %v6658 = vpack.c.b16 %v6446, %v6442
  %v6659 = vpack.c.b16 %v6447, %v6443
  %v6660 = vpack.c.b16 %v6448, %v6444
  %v6661 = vpack.c.b16 %v6449, %v6445
  %v6662 = vpack.c.b16 %v6454, %v6450
  %v6663 = vpack.c.b16 %v6455, %v6451
  %v6664 = vpack.c.b16 %v6456, %v6452
  %v6665 = vpack.c.b16 %v6457, %v6453
  %v6666 = vpack.c.b16 %v6462, %v6458
  %v6667 = vpack.c.b16 %v6463, %v6459
  %v6668 = vpack.c.b16 %v6464, %v6460
  %v6669 = vpack.c.b16 %v6465, %v6461
  %v6670 = vpack.c.b16 %v6470, %v6466
  %v6671 = vpack.c.b16 %v6471, %v6467
  %v6672 = vpack.c.b16 %v6472, %v6468
  %v6673 = vpack.c.b16 %v6473, %v6469
  %v6674 = vpack.c.b16 %v6478, %v6474
  %v6675 = vpack.c.b16 %v6479, %v6475
  %v6676 = vpack.c.b16 %v6480, %v6476
  %v6677 = vpack.c.b16 %v6481, %v6477
  %v6678 = vpack.c.b16 %v6486, %v6482
  %v6679 = vpack.c.b16 %v6487, %v6483
  %v6680 = vpack.c.b16 %v6488, %v6484
  %v6681 = vpack.c.b16 %v6489, %v6485
  %v6682 = vpack.c.b16 %v6494, %v6490
  %v6683 = vpack.c.b16 %v6495, %v6491
  %v6684 = vpack.c.b16 %v6496, %v6492
  %v6685 = vpack.c.b16 %v6497, %v6493
  %v6686 = vpack.c.b16 %v6502, %v6498
  %v6687 = vpack.c.b16 %v6503, %v6499
  %v6688 = vpack.c.b16 %v6504, %v6500
  %v6689 = vpack.c.b16 %v6505, %v6501
  %v6690 = vpack.c.b16 %v6510, %v6506
  %v6691 = vpack.c.b16 %v6511, %v6507
  %v6692 = vpack.c.b16 %v6512, %v6508
  %v6693 = vpack.c.b16 %v6513, %v6509
  %v6694 = vpack.c.b16 %v6518, %v6514
  %v6695 = vpack.c.b16 %v6519, %v6515
  %v6696 = vpack.c.b16 %v6520, %v6516
  %v6697 = vpack.c.b16 %v6521, %v6517
  %v6698 = vpack.c.b16 %v6526, %v6522
  %v6699 = vpack.c.b16 %v6527, %v6523
  %v6700 = vpack.c.b16 %v6528, %v6524
  %v6701 = vpack.c.b16 %v6529, %v6525
  %v6702 = vpack.c.b16 %v6534, %v6530
  %v6703 = vpack.c.b16 %v6535, %v6531
  %v6704 = vpack.c.b16 %v6536, %v6532
  %v6705 = vpack.c.b16 %v6537, %v6533
  %v6706 = vpack.c.b16 %v6542, %v6538
  %v6707 = vpack.c.b16 %v6543, %v6539
  %v6708 = vpack.c.b16 %v6544, %v6540
  %v6709 = vpack.c.b16 %v6545, %v6541
  %v6710 = vpack.c.b16 %v6550, %v6546
  %v6711 = vpack.c.b16 %v6551, %v6547
  %v6712 = vpack.c.b16 %v6552, %v6548
  %v6713 = vpack.c.b16 %v6553, %v6549
  %v6714 = vpack.c.b16 %v6558, %v6554
  %v6715 = vpack.c.b16 %v6559, %v6555
  %v6716 = vpack.c.b16 %v6560, %v6556
  %v6717 = vpack.c.b16 %v6561, %v6557
  %v6718 = vpack.c.b16 %v6566, %v6562
  %v6719 = vpack.c.b16 %v6567, %v6563
  %v6720 = vpack.c.b16 %v6568, %v6564
  %v6721 = vpack.c.b16 %v6569, %v6565
  %v6722 = vpack.c.b16 %v6574, %v6570
  %v6723 = vpack.c.b16 %v6575, %v6571
  %v6724 = vpack.c.b16 %v6576, %v6572
  %v6725 = vpack.c.b16 %v6577, %v6573
  %v6726 = vpack.c.b16 %v6582, %v6578
  %v6727 = vpack.c.b16 %v6583, %v6579
  %v6728 = vpack.c.b16 %v6584, %v6580
  %v6729 = vpack.c.b16 %v6585, %v6581
  %v6730 = vpack.c.b16 %v6590, %v6586
  %v6731 = vpack.c.b16 %v6591, %v6587
  %v6732 = vpack.c.b16 %v6592, %v6588
  %v6733 = vpack.c.b16 %v6593, %v6589
  %v6734 = vpack.c.b16 %v6598, %v6594
  %v6735 = vpack.c.b16 %v6599, %v6595
  %v6736 = vpack.c.b16 %v6600, %v6596
  %v6737 = vpack.c.b16 %v6601, %v6597
  %v6738 = vpack.c.b16 %v6606, %v6602
  %v6739 = vpack.c.b16 %v6607, %v6603
  %v6740 = vpack.c.b16 %v6608, %v6604
  %v6741 = vpack.c.b16 %v6609, %v6605
  %v6742 = vpack.c.b16 %v6614, %v6610
  %v6743 = vpack.c.b16 %v6615, %v6611
  %v6744 = vpack.c.b16 %v6616, %v6612
  %v6745 = vpack.c.b16 %v6617, %v6613
  %6874 = vmatprep.subr.bf16.mxu0 %v6619
  %6875 = vmatpush1.bf16.msra.mxu0 %v6618
  %6876 = vmatprep.subr.bf16.mxu0 %v6623
  %6877 = vmatpush1.bf16.msra.mxu0 %v6622
  %6878 = vmatprep.subr.bf16.mxu0 %v6627
  %6879 = vmatpush1.bf16.msra.mxu0 %v6626
  %6880 = vmatprep.subr.bf16.mxu0 %v6631
  %6881 = vmatpush1.bf16.msra.mxu0 %v6630
  %6882 = vmatprep.subr.bf16.mxu0 %v6635
  %6883 = vmatpush1.bf16.msra.mxu0 %v6634
  %6884 = vmatprep.subr.bf16.mxu0 %v6639
  %6885 = vmatpush1.bf16.msra.mxu0 %v6638
  %6886 = vmatprep.subr.bf16.mxu0 %v6643
  %6887 = vmatpush1.bf16.msra.mxu0 %v6642
  %6888 = vmatprep.subr.bf16.mxu0 %v6647
  %6889 = vmatpush1.bf16.msra.mxu0 %v6646
  %6890 = vmatprep.subr.bf16.mxu0 %v6651
  %6891 = vmatpush1.bf16.msra.mxu0 %v6650
  %6892 = vmatprep.subr.bf16.mxu0 %v6655
  %6893 = vmatpush1.bf16.msra.mxu0 %v6654
  %6894 = vmatprep.subr.bf16.mxu0 %v6659
  %6895 = vmatpush1.bf16.msra.mxu0 %v6658
  %6896 = vmatprep.subr.bf16.mxu0 %v6663
  %6897 = vmatpush1.bf16.msra.mxu0 %v6662
  %6898 = vmatprep.subr.bf16.mxu0 %v6667
  %6899 = vmatpush1.bf16.msra.mxu0 %v6666
  %6900 = vmatprep.subr.bf16.mxu0 %v6671
  %6901 = vmatpush1.bf16.msra.mxu0 %v6670
  %6902 = vmatprep.subr.bf16.mxu0 %v6675
  %6903 = vmatpush1.bf16.msra.mxu0 %v6674
  %6904 = vmatprep.subr.bf16.mxu0 %v6679
  %6905 = vmatpush1.bf16.msra.mxu0 %v6678
  %6906 = vmatprep.mubr.bf16.mxu0 %v6081
  %6907 = vmatmul.mubr.bf16.gmra.mrb[0].mxu0 %v6080
  %v6908 = vpop.f32.mrb[0].mxu0
  %v6909 = vadd.f32 %v6217, %v6908
  %v6910 = vpop.f32.mrb[0].mxu0
  %v6911 = vadd.f32 %v6221, %v6910
  %v6912 = vpop.f32.mrb[0].mxu0
  %v6913 = vpop.f32.mrb[0].mxu0
  %6914 = vdwg.mxu0
  %6915 = vmatprep.subr.bf16.mxu0 %v6683
  %6916 = vmatpush1.bf16.msra.mxu0 %v6682
  %6917 = vmatprep.subr.bf16.mxu0 %v6687
  %6918 = vmatpush1.bf16.msra.mxu0 %v6686
  %6919 = vmatprep.subr.bf16.mxu0 %v6691
  %6920 = vmatpush1.bf16.msra.mxu0 %v6690
  %6921 = vmatprep.subr.bf16.mxu0 %v6695
  %6922 = vmatpush1.bf16.msra.mxu0 %v6694
  %6923 = vmatprep.subr.bf16.mxu0 %v6699
  %6924 = vmatpush1.bf16.msra.mxu0 %v6698
  %6925 = vmatprep.subr.bf16.mxu0 %v6703
  %6926 = vmatpush1.bf16.msra.mxu0 %v6702
  %6927 = vmatprep.subr.bf16.mxu0 %v6707
  %6928 = vmatpush1.bf16.msra.mxu0 %v6706
  %6929 = vmatprep.subr.bf16.mxu0 %v6711
  %6930 = vmatpush1.bf16.msra.mxu0 %v6710
  %6931 = vmatprep.subr.bf16.mxu0 %v6715
  %6932 = vmatpush1.bf16.msra.mxu0 %v6714
  %6933 = vmatprep.subr.bf16.mxu0 %v6719
  %6934 = vmatpush1.bf16.msra.mxu0 %v6718
  %6935 = vmatprep.subr.bf16.mxu0 %v6723
  %6936 = vmatpush1.bf16.msra.mxu0 %v6722
  %6937 = vmatprep.subr.bf16.mxu0 %v6727
  %6938 = vmatpush1.bf16.msra.mxu0 %v6726
  %6939 = vmatprep.subr.bf16.mxu0 %v6731
  %6940 = vmatpush1.bf16.msra.mxu0 %v6730
  %6941 = vmatprep.subr.bf16.mxu0 %v6735
  %6942 = vmatpush1.bf16.msra.mxu0 %v6734
  %6943 = vmatprep.subr.bf16.mxu0 %v6739
  %6944 = vmatpush1.bf16.msra.mxu0 %v6738
  %6945 = vmatprep.subr.bf16.mxu0 %v6743
  %6946 = vmatpush1.bf16.msra.mxu0 %v6742
  %6947 = vmatprep.mubr.bf16.mxu0 %v6083
  %6948 = vmatmul.mubr.bf16.gmra.mrb[0].mxu0 %v6082
  %v6949 = vpop.f32.mrb[0].mxu0
  %v6950 = vadd.f32 %v6909, %v6949
  %v6951 = vpop.f32.mrb[0].mxu0
  %v6952 = vadd.f32 %v6911, %v6951
  %v6953 = vpop.f32.mrb[0].mxu0
  %v6954 = vpop.f32.mrb[0].mxu0
  %6955 = vdwg.mxu0
  %6956 = vmatprep.subr.bf16.mxu0 %v6621
  %6957 = vmatpush1.bf16.msra.mxu0 %v6620
  %6958 = vmatprep.subr.bf16.mxu0 %v6625
  %6959 = vmatpush1.bf16.msra.mxu0 %v6624
  %6960 = vmatprep.subr.bf16.mxu0 %v6629
  %6961 = vmatpush1.bf16.msra.mxu0 %v6628
  %6962 = vmatprep.subr.bf16.mxu0 %v6633
  %6963 = vmatpush1.bf16.msra.mxu0 %v6632
  %6964 = vmatprep.subr.bf16.mxu0 %v6637
  %6965 = vmatpush1.bf16.msra.mxu0 %v6636
  %6966 = vmatprep.subr.bf16.mxu0 %v6641
  %6967 = vmatpush1.bf16.msra.mxu0 %v6640
  %6968 = vmatprep.subr.bf16.mxu0 %v6645
  %6969 = vmatpush1.bf16.msra.mxu0 %v6644
  %6970 = vmatprep.subr.bf16.mxu0 %v6649
  %6971 = vmatpush1.bf16.msra.mxu0 %v6648
  %6972 = vmatprep.subr.bf16.mxu0 %v6653
  %6973 = vmatpush1.bf16.msra.mxu0 %v6652
  %6974 = vmatprep.subr.bf16.mxu0 %v6657
  %6975 = vmatpush1.bf16.msra.mxu0 %v6656
  %6976 = vmatprep.subr.bf16.mxu0 %v6661
  %6977 = vmatpush1.bf16.msra.mxu0 %v6660
  %6978 = vmatprep.subr.bf16.mxu0 %v6665
  %6979 = vmatpush1.bf16.msra.mxu0 %v6664
  %6980 = vmatprep.subr.bf16.mxu0 %v6669
  %6981 = vmatpush1.bf16.msra.mxu0 %v6668
  %6982 = vmatprep.subr.bf16.mxu0 %v6673
  %6983 = vmatpush1.bf16.msra.mxu0 %v6672
  %6984 = vmatprep.subr.bf16.mxu0 %v6677
  %6985 = vmatpush1.bf16.msra.mxu0 %v6676
  %6986 = vmatprep.subr.bf16.mxu0 %v6681
  %6987 = vmatpush1.bf16.msra.mxu0 %v6680
  %6988 = vmatprep.mubr.bf16.mxu0 %v6081
  %6989 = vmatmul.mubr.bf16.gmra.mrb[0].mxu0 %v6080
  %v6990 = vpop.f32.mrb[0].mxu0
  %v6991 = vadd.f32 %v6225, %v6990
  %v6992 = vpop.f32.mrb[0].mxu0
  %v6993 = vadd.f32 %v6229, %v6992
  %v6994 = vpop.f32.mrb[0].mxu0
  %v6995 = vpop.f32.mrb[0].mxu0
  %6996 = vdwg.mxu0
  %6997 = vmatprep.subr.bf16.mxu0 %v6685
  %6998 = vmatpush1.bf16.msra.mxu0 %v6684
  %6999 = vmatprep.subr.bf16.mxu0 %v6689
  %7000 = vmatpush1.bf16.msra.mxu0 %v6688
  %7001 = vmatprep.subr.bf16.mxu0 %v6693
  %7002 = vmatpush1.bf16.msra.mxu0 %v6692
  %7003 = vmatprep.subr.bf16.mxu0 %v6697
  %7004 = vmatpush1.bf16.msra.mxu0 %v6696
  %7005 = vmatprep.subr.bf16.mxu0 %v6701
  %7006 = vmatpush1.bf16.msra.mxu0 %v6700
  %7007 = vmatprep.subr.bf16.mxu0 %v6705
  %7008 = vmatpush1.bf16.msra.mxu0 %v6704
  %7009 = vmatprep.subr.bf16.mxu0 %v6709
  %7010 = vmatpush1.bf16.msra.mxu0 %v6708
  %7011 = vmatprep.subr.bf16.mxu0 %v6713
  %7012 = vmatpush1.bf16.msra.mxu0 %v6712
  %7013 = vmatprep.subr.bf16.mxu0 %v6717
  %7014 = vmatpush1.bf16.msra.mxu0 %v6716
  %7015 = vmatprep.subr.bf16.mxu0 %v6721
  %7016 = vmatpush1.bf16.msra.mxu0 %v6720
  %7017 = vmatprep.subr.bf16.mxu0 %v6725
  %7018 = vmatpush1.bf16.msra.mxu0 %v6724
  %7019 = vmatprep.subr.bf16.mxu0 %v6729
  %7020 = vmatpush1.bf16.msra.mxu0 %v6728
  %7021 = vmatprep.subr.bf16.mxu0 %v6733
  %7022 = vmatpush1.bf16.msra.mxu0 %v6732
  %7023 = vmatprep.subr.bf16.mxu0 %v6737
  %7024 = vmatpush1.bf16.msra.mxu0 %v6736
  %7025 = vmatprep.subr.bf16.mxu0 %v6741
  %7026 = vmatpush1.bf16.msra.mxu0 %v6740
  %7027 = vmatprep.subr.bf16.mxu0 %v6745
  %7028 = vmatpush1.bf16.msra.mxu0 %v6744
  %7029 = vmatprep.mubr.bf16.mxu0 %v6083
  %7030 = vmatmul.mubr.bf16.gmra.mrb[0].mxu0 %v6082
  %v7031 = vpop.f32.mrb[0].mxu0
  %v7032 = vadd.f32 %v6991, %v7031
  %v7033 = vpop.f32.mrb[0].mxu0
  %v7034 = vadd.f32 %v6993, %v7033
  %v7035 = vpop.f32.mrb[0].mxu0
  %v7036 = vpop.f32.mrb[0].mxu0
  %7037 = vdwg.mxu0
  %v7038 = vmax.f32 %v6950, 0.0
  %v7039 = vmax.f32 %v6952, 0.0
  %v7040 = vmax.f32 %v7032, 0.0
  %v7041 = vmax.f32 %v7034, 0.0
  %v7042 = vpack.c.bf16 %v7038, %v7038
  %v7043 = vpack.c.bf16 %v7039, %v7039
  %v7044 = vpack.c.bf16 %v7040, %v7040
  %v7045 = vpack.c.bf16 %v7041, %v7041
  %v7046 = vld [vmem:[%s11] sm:$0xf]
  %v7047 = vld [vmem:[%s11 + $0x4] sm:$0xf]
  %v7048 = vld [vmem:[%s11 + $0x8] sm:$0xf]
  %v7049 = vld [vmem:[%s11 + $0xc] sm:$0xf]
  %v7050 = vld [vmem:[%s11 + $0x10] sm:$0xf]
  %v7051 = vld [vmem:[%s11 + $0x14] sm:$0xf]
  %v7052 = vld [vmem:[%s11 + $0x18] sm:$0xf]
  %v7053 = vld [vmem:[%s11 + $0x1c] sm:$0xf]
  %v7054 = vld [vmem:[%s11 + $0x20] sm:$0xf]
  %v7055 = vld [vmem:[%s11 + $0x24] sm:$0xf]
  %v7056 = vld [vmem:[%s11 + $0x28] sm:$0xf]
  %v7057 = vld [vmem:[%s11 + $0x2c] sm:$0xf]
  %v7058 = vld [vmem:[%s11 + $0x30] sm:$0xf]
  %v7059 = vld [vmem:[%s11 + $0x34] sm:$0xf]
  %v7060 = vld [vmem:[%s11 + $0x38] sm:$0xf]
  %v7061 = vld [vmem:[%s11 + $0x3c] sm:$0xf]
  %v7062 = vld [vmem:[%s11 + $0x40] sm:$0xf]
  %v7063 = vld [vmem:[%s11 + $0x44] sm:$0xf]
  %v7064 = vld [vmem:[%s11 + $0x48] sm:$0xf]
  %v7065 = vld [vmem:[%s11 + $0x4c] sm:$0xf]
  %v7066 = vld [vmem:[%s11 + $0x50] sm:$0xf]
  %v7067 = vld [vmem:[%s11 + $0x54] sm:$0xf]
  %v7068 = vld [vmem:[%s11 + $0x58] sm:$0xf]
  %v7069 = vld [vmem:[%s11 + $0x5c] sm:$0xf]
  %v7070 = vld [vmem:[%s11 + $0x60] sm:$0xf]
  %v7071 = vld [vmem:[%s11 + $0x64] sm:$0xf]
  %v7072 = vld [vmem:[%s11 + $0x68] sm:$0xf]
  %v7073 = vld [vmem:[%s11 + $0x6c] sm:$0xf]
  %v7074 = vld [vmem:[%s11 + $0x70] sm:$0xf]
  %v7075 = vld [vmem:[%s11 + $0x74] sm:$0xf]
  %v7076 = vld [vmem:[%s11 + $0x78] sm:$0xf]
  %v7077 = vld [vmem:[%s11 + $0x7c] sm:$0xf]
  %v7078 = vld [vmem:[%s11 + $0x80] sm:$0xf]
  %v7079 = vld [vmem:[%s11 + $0x84] sm:$0xf]
  %v7080 = vld [vmem:[%s11 + $0x88] sm:$0xf]
  %v7081 = vld [vmem:[%s11 + $0x8c] sm:$0xf]
  %v7082 = vld [vmem:[%s11 + $0x90] sm:$0xf]
  %v7083 = vld [vmem:[%s11 + $0x94] sm:$0xf]
  %v7084 = vld [vmem:[%s11 + $0x98] sm:$0xf]
  %v7085 = vld [vmem:[%s11 + $0x9c] sm:$0xf]
  %v7086 = vld [vmem:[%s11 + $0xa0] sm:$0xf]
  %v7087 = vld [vmem:[%s11 + $0xa4] sm:$0xf]
  %v7088 = vld [vmem:[%s11 + $0xa8] sm:$0xf]
  %v7089 = vld [vmem:[%s11 + $0xac] sm:$0xf]
  %v7090 = vld [vmem:[%s11 + $0xb0] sm:$0xf]
  %v7091 = vld [vmem:[%s11 + $0xb4] sm:$0xf]
  %v7092 = vld [vmem:[%s11 + $0xb8] sm:$0xf]
  %v7093 = vld [vmem:[%s11 + $0xbc] sm:$0xf]
  %v7094 = vld [vmem:[%s11 + $0xc0] sm:$0xf]
  %v7095 = vld [vmem:[%s11 + $0xc4] sm:$0xf]
  %v7096 = vld [vmem:[%s11 + $0xc8] sm:$0xf]
  %v7097 = vld [vmem:[%s11 + $0xcc] sm:$0xf]
  %v7098 = vld [vmem:[%s11 + $0xd0] sm:$0xf]
  %v7099 = vld [vmem:[%s11 + $0xd4] sm:$0xf]
  %v7100 = vld [vmem:[%s11 + $0xd8] sm:$0xf]
  %v7101 = vld [vmem:[%s11 + $0xdc] sm:$0xf]
  %v7102 = vld [vmem:[%s11 + $0xe0] sm:$0xf]
  %v7103 = vld [vmem:[%s11 + $0xe4] sm:$0xf]
  %v7104 = vld [vmem:[%s11 + $0xe8] sm:$0xf]
  %v7105 = vld [vmem:[%s11 + $0xec] sm:$0xf]
  %v7106 = vld [vmem:[%s11 + $0xf0] sm:$0xf]
  %v7107 = vld [vmem:[%s11 + $0xf4] sm:$0xf]
  %v7108 = vld [vmem:[%s11 + $0xf8] sm:$0xf]
  %v7109 = vld [vmem:[%s11 + $0xfc] sm:$0xf]
  %v7110 = vld [vmem:[%s12] sm:$0x1]
  %v7112 = vlaneseq
  %v7113 = vshrl.u32 %v7112, 7
  %v7114 = vsub.s32 0, %v7113
  %v7115 = vrot.slane %v7110, %v7114
  %v7181 = vunpack.c.l.b16 %v7046
  %v7182 = vunpack.c.l.b16 %v7047
  %v7183 = vunpack.c.l.b16 %v7048
  %v7184 = vunpack.c.l.b16 %v7049
  %v7185 = vunpack.c.l.b16 %v7050
  %v7186 = vunpack.c.l.b16 %v7051
  %v7187 = vunpack.c.l.b16 %v7052
  %v7188 = vunpack.c.l.b16 %v7053
  %v7189 = vunpack.c.l.b16 %v7054
  %v7190 = vunpack.c.l.b16 %v7055
  %v7191 = vunpack.c.l.b16 %v7056
  %v7192 = vunpack.c.l.b16 %v7057
  %v7193 = vunpack.c.l.b16 %v7058
  %v7194 = vunpack.c.l.b16 %v7059
  %v7195 = vunpack.c.l.b16 %v7060
  %v7196 = vunpack.c.l.b16 %v7061
  %v7197 = vunpack.c.l.b16 %v7062
  %v7198 = vunpack.c.l.b16 %v7063
  %v7199 = vunpack.c.l.b16 %v7064
  %v7200 = vunpack.c.l.b16 %v7065
  %v7201 = vunpack.c.l.b16 %v7066
  %v7202 = vunpack.c.l.b16 %v7067
  %v7203 = vunpack.c.l.b16 %v7068
  %v7204 = vunpack.c.l.b16 %v7069
  %v7205 = vunpack.c.l.b16 %v7070
  %v7206 = vunpack.c.l.b16 %v7071
  %v7207 = vunpack.c.l.b16 %v7072
  %v7208 = vunpack.c.l.b16 %v7073
  %v7209 = vunpack.c.l.b16 %v7074
  %v7210 = vunpack.c.l.b16 %v7075
  %v7211 = vunpack.c.l.b16 %v7076
  %v7212 = vunpack.c.l.b16 %v7077
  %v7213 = vunpack.c.l.b16 %v7078
  %v7214 = vunpack.c.l.b16 %v7079
  %v7215 = vunpack.c.l.b16 %v7080
  %v7216 = vunpack.c.l.b16 %v7081
  %v7217 = vunpack.c.l.b16 %v7082
  %v7218 = vunpack.c.l.b16 %v7083
  %v7219 = vunpack.c.l.b16 %v7084
  %v7220 = vunpack.c.l.b16 %v7085
  %v7221 = vunpack.c.l.b16 %v7086
  %v7222 = vunpack.c.l.b16 %v7087
  %v7223 = vunpack.c.l.b16 %v7088
  %v7224 = vunpack.c.l.b16 %v7089
  %v7225 = vunpack.c.l.b16 %v7090
  %v7226 = vunpack.c.l.b16 %v7091
  %v7227 = vunpack.c.l.b16 %v7092
  %v7228 = vunpack.c.l.b16 %v7093
  %v7229 = vunpack.c.l.b16 %v7094
  %v7230 = vunpack.c.l.b16 %v7095
  %v7231 = vunpack.c.l.b16 %v7096
  %v7232 = vunpack.c.l.b16 %v7097
  %v7233 = vunpack.c.l.b16 %v7098
  %v7234 = vunpack.c.l.b16 %v7099
  %v7235 = vunpack.c.l.b16 %v7100
  %v7236 = vunpack.c.l.b16 %v7101
  %v7237 = vunpack.c.l.b16 %v7102
  %v7238 = vunpack.c.l.b16 %v7103
  %v7239 = vunpack.c.l.b16 %v7104
  %v7240 = vunpack.c.l.b16 %v7105
  %v7241 = vunpack.c.l.b16 %v7106
  %v7242 = vunpack.c.l.b16 %v7107
  %v7243 = vunpack.c.l.b16 %v7108
  %v7244 = vunpack.c.l.b16 %v7109
  %v7245 = vpack.c.b16 %v7182, %v7181
  %v7246 = vpack.c.b16 %v7184, %v7183
  %v7247 = vpack.c.b16 %v7186, %v7185
  %v7248 = vpack.c.b16 %v7188, %v7187
  %v7249 = vpack.c.b16 %v7190, %v7189
  %v7250 = vpack.c.b16 %v7192, %v7191
  %v7251 = vpack.c.b16 %v7194, %v7193
  %v7252 = vpack.c.b16 %v7196, %v7195
  %v7253 = vpack.c.b16 %v7198, %v7197
  %v7254 = vpack.c.b16 %v7200, %v7199
  %v7255 = vpack.c.b16 %v7202, %v7201
  %v7256 = vpack.c.b16 %v7204, %v7203
  %v7257 = vpack.c.b16 %v7206, %v7205
  %v7258 = vpack.c.b16 %v7208, %v7207
  %v7259 = vpack.c.b16 %v7210, %v7209
  %v7260 = vpack.c.b16 %v7212, %v7211
  %v7261 = vpack.c.b16 %v7214, %v7213
  %v7262 = vpack.c.b16 %v7216, %v7215
  %v7263 = vpack.c.b16 %v7218, %v7217
  %v7264 = vpack.c.b16 %v7220, %v7219
  %v7265 = vpack.c.b16 %v7222, %v7221
  %v7266 = vpack.c.b16 %v7224, %v7223
  %v7267 = vpack.c.b16 %v7226, %v7225
  %v7268 = vpack.c.b16 %v7228, %v7227
  %v7269 = vpack.c.b16 %v7230, %v7229
  %v7270 = vpack.c.b16 %v7232, %v7231
  %v7271 = vpack.c.b16 %v7234, %v7233
  %v7272 = vpack.c.b16 %v7236, %v7235
  %v7273 = vpack.c.b16 %v7238, %v7237
  %v7274 = vpack.c.b16 %v7240, %v7239
  %v7275 = vpack.c.b16 %v7242, %v7241
  %v7276 = vpack.c.b16 %v7244, %v7243
  %7309 = vmatprep.subr.bf16.mxu0 0
  %7310 = vmatpush1.bf16.msra.mxu0 %v7245
  %7311 = vmatprep.subr.bf16.mxu0 0
  %7312 = vmatpush1.bf16.msra.mxu0 %v7246
  %7313 = vmatprep.subr.bf16.mxu0 0
  %7314 = vmatpush1.bf16.msra.mxu0 %v7247
  %7315 = vmatprep.subr.bf16.mxu0 0
  %7316 = vmatpush1.bf16.msra.mxu0 %v7248
  %7317 = vmatprep.subr.bf16.mxu0 0
  %7318 = vmatpush1.bf16.msra.mxu0 %v7249
  %7319 = vmatprep.subr.bf16.mxu0 0
  %7320 = vmatpush1.bf16.msra.mxu0 %v7250
  %7321 = vmatprep.subr.bf16.mxu0 0
  %7322 = vmatpush1.bf16.msra.mxu0 %v7251
  %7323 = vmatprep.subr.bf16.mxu0 0
  %7324 = vmatpush1.bf16.msra.mxu0 %v7252
  %7325 = vmatprep.subr.bf16.mxu0 0
  %7326 = vmatpush1.bf16.msra.mxu0 %v7253
  %7327 = vmatprep.subr.bf16.mxu0 0
  %7328 = vmatpush1.bf16.msra.mxu0 %v7254
  %7329 = vmatprep.subr.bf16.mxu0 0
  %7330 = vmatpush1.bf16.msra.mxu0 %v7255
  %7331 = vmatprep.subr.bf16.mxu0 0
  %7332 = vmatpush1.bf16.msra.mxu0 %v7256
  %7333 = vmatprep.subr.bf16.mxu0 0
  %7334 = vmatpush1.bf16.msra.mxu0 %v7257
  %7335 = vmatprep.subr.bf16.mxu0 0
  %7336 = vmatpush1.bf16.msra.mxu0 %v7258
  %7337 = vmatprep.subr.bf16.mxu0 0
  %7338 = vmatpush1.bf16.msra.mxu0 %v7259
  %7339 = vmatprep.subr.bf16.mxu0 0
  %7340 = vmatpush1.bf16.msra.mxu0 %v7260
  %7341 = vmatprep.mubr.bf16.mxu0 %v7043
  %7342 = vmatmul.mubr.bf16.gmra.mrb[0].mxu0 %v7042
  %v7343 = vpop.f32.mrb[0].mxu0
  %v7344 = vadd.f32 %v7115, %v7343
  %v7345 = vpop.f32.mrb[0].mxu0
  %v7346 = vpop.f32.mrb[0].mxu0
  %v7347 = vpop.f32.mrb[0].mxu0
  %7348 = vdwg.mxu0
  %7349 = vmatprep.subr.bf16.mxu0 0
  %7350 = vmatpush1.bf16.msra.mxu0 %v7261
  %7351 = vmatprep.subr.bf16.mxu0 0
  %7352 = vmatpush1.bf16.msra.mxu0 %v7262
  %7353 = vmatprep.subr.bf16.mxu0 0
  %7354 = vmatpush1.bf16.msra.mxu0 %v7263
  %7355 = vmatprep.subr.bf16.mxu0 0
  %7356 = vmatpush1.bf16.msra.mxu0 %v7264
  %7357 = vmatprep.subr.bf16.mxu0 0
  %7358 = vmatpush1.bf16.msra.mxu0 %v7265
  %7359 = vmatprep.subr.bf16.mxu0 0
  %7360 = vmatpush1.bf16.msra.mxu0 %v7266
  %7361 = vmatprep.subr.bf16.mxu0 0
  %7362 = vmatpush1.bf16.msra.mxu0 %v7267
  %7363 = vmatprep.subr.bf16.mxu0 0
  %7364 = vmatpush1.bf16.msra.mxu0 %v7268
  %7365 = vmatprep.subr.bf16.mxu0 0
  %7366 = vmatpush1.bf16.msra.mxu0 %v7269
  %7367 = vmatprep.subr.bf16.mxu0 0
  %7368 = vmatpush1.bf16.msra.mxu0 %v7270
  %7369 = vmatprep.subr.bf16.mxu0 0
  %7370 = vmatpush1.bf16.msra.mxu0 %v7271
  %7371 = vmatprep.subr.bf16.mxu0 0
  %7372 = vmatpush1.bf16.msra.mxu0 %v7272
  %7373 = vmatprep.subr.bf16.mxu0 0
  %7374 = vmatpush1.bf16.msra.mxu0 %v7273
  %7375 = vmatprep.subr.bf16.mxu0 0
  %7376 = vmatpush1.bf16.msra.mxu0 %v7274
  %7377 = vmatprep.subr.bf16.mxu0 0
  %7378 = vmatpush1.bf16.msra.mxu0 %v7275
  %7379 = vmatprep.subr.bf16.mxu0 0
  %7380 = vmatpush1.bf16.msra.mxu0 %v7276
  %7381 = vmatprep.mubr.bf16.mxu0 %v7045
  %7382 = vmatmul.mubr.bf16.gmra.mrb[0].mxu0 %v7044
  %v7383 = vpop.f32.mrb[0].mxu0
  %v7384 = vadd.f32 %v7344, %v7383
  %v7385 = vpop.f32.mrb[0].mxu0
  %v7386 = vpop.f32.mrb[0].mxu0
  %v7387 = vpop.f32.mrb[0].mxu0
  %7388 = vdwg.mxu0
  %7389 = vst [vmem:[%s13] sm:$0xff] %v7384
  // Predicated region
  $region54: #{_forward_impl.1} parent=0 // pred_check
    _
  $region55: #{_forward_impl.1} parent=0 // pred_check_branch
    %7391 = sbr.rel (0) target = $region57
  $region56: #{_forward_impl.1} parent=0 // pred_region
    _
  $region57: #{_forward_impl.1} parent=0 // pred_fallthru
    _
  // Predicated region
  $region58: #{_forward_impl.1} parent=0 // pred_check
    _
  $region59: #{_forward_impl.1} parent=0 // pred_check_branch
    %7393 = sbr.rel (0) target = $region61
  $region60: #{_forward_impl.1} parent=0 // pred_region
    _
  $region61: #{_forward_impl.1} parent=0 // pred_fallthru
    _

</llo_original>
